<compile_context>
chip_gen: v5e
topology: v5e:2x2
jax: 0.10.0
libtpu: 0.0.40
codegen_flags: <defaults>
</compile_context>

<pallas_src>
import functools

import numpy as np

import jax
import jax.numpy as jnp
from jax.experimental import pallas as pl
from jax.experimental.pallas import tpu as pltpu


# ------------------------------- helpers -----------------------------------

def _full_spec(shape):
    nd = len(shape)
    return pl.BlockSpec(shape, lambda *_: (0,) * nd)


# ----------------- init-time conv / deconv "lowering" to matrices ----------

def _conv_matrix(w, cin, hin, win, k, s, p):
    """Conv2d(Cout,Cin,k,k) -> M (Cin*H*W, Cout*OH*OW) on NCHW-flat layout."""
    cout = w.shape[0]
    oh = (hin + 2 * p - k) // s + 1
    ow = (win + 2 * p - k) // s + 1
    m = np.zeros((cin, hin, win, cout, oh, ow), np.float32)
    for kh in range(k):
        for kw in range(k):
            wt = np.asarray(w[:, :, kh, kw]).T          # (cin, cout)
            for y in range(oh):
                ih = y * s - p + kh
                if ih < 0 or ih >= hin:
                    continue
                for x in range(ow):
                    iw = x * s - p + kw
                    if iw < 0 or iw >= win:
                        continue
                    m[:, ih, iw, :, y, x] += wt
    return m.reshape(cin * hin * win, cout * oh * ow), oh, ow


def _deconv_matrix(w, cin, hin, win, k, s, p):
    """ConvTranspose2d(Cin,Cout,k,k) -> M (Cin*H*W, Cout*OH*OW), NCHW-flat."""
    cout = w.shape[1]
    oh = (hin - 1) * s - 2 * p + k
    ow = (win - 1) * s - 2 * p + k
    m = np.zeros((cin, hin, win, cout, oh, ow), np.float32)
    for kh in range(k):
        for kw in range(k):
            wt = np.asarray(w[:, :, kh, kw])             # (cin, cout)
            for ih in range(hin):
                y = ih * s - p + kh
                if y < 0 or y >= oh:
                    continue
                for iw in range(win):
                    x = iw * s - p + kw
                    if x < 0 or x >= ow:
                        continue
                    m[:, ih, iw, :, y, x] += wt
    return m.reshape(cin * hin * win, cout * oh * ow), oh, ow


def _bias_vec(b, oh, ow):
    return np.repeat(np.asarray(b), oh * ow)[None, :].astype(np.float32)


# ------------------------- the single fused kernel --------------------------

def _vae_kernel(*refs, n_enc, n_dec, latent):
    """refs = [x, eps, (M,b)*n_enc, Wcat, bcat, (M,b)*n_dec, mulv_out, recon_out].

    Every layer is a lowered dense matmul on the per-batch NCHW-flat layout,
    so the whole network is matmul + bias + activation chained in VMEM.
    """
    x_ref, eps_ref = refs[0], refs[1]
    pos = 2

    h = x_ref[...]
    for _ in range(n_enc):                               # encoder convs + relu
        m_ref, b_ref = refs[pos], refs[pos + 1]
        pos += 2
        h = jnp.dot(h, m_ref[...], preferred_element_type=jnp.float32)
        h = jnp.maximum(h + b_ref[...], 0.0)

    wcat_ref, bcat_ref = refs[pos], refs[pos + 1]        # fused fc_mu|fc_log_var
    pos += 2
    y = jnp.dot(h, wcat_ref[...], preferred_element_type=jnp.float32)
    y = y + bcat_ref[...]
    mu = y[:, :latent]
    lv = y[:, latent:]
    h = mu + eps_ref[...] * jnp.exp(0.5 * lv)            # reparameterization

    for i in range(n_dec):                               # decoder deconvs
        m_ref, b_ref = refs[pos], refs[pos + 1]
        pos += 2
        h = jnp.dot(h, m_ref[...], preferred_element_type=jnp.float32)
        h = h + b_ref[...]
        if i < n_dec - 1:
            h = jnp.maximum(h, 0.0)
        else:
            h = jax.nn.sigmoid(jax.nn.sigmoid(h))        # intentional double sigmoid

    mulv_ref, recon_ref = refs[pos], refs[pos + 1]
    mulv_ref[...] = y.astype(mulv_ref.dtype)
    recon_ref[...] = h.astype(recon_ref.dtype)


# ------------------------------ VAE model -----------------------------------

def build_vae(cfg, key):
    """Returns (params: arrays-only pytree, raw: reference weights, meta: static)."""
    in_c, in_h, in_w = cfg["input_dimension"]
    enc_layers = [tuple(map(int, l)) for l in cfg["encoder_conv_layers"]]
    dec_layers = [tuple(map(int, l)) for l in cfg["decoder_deconv_layers"]]
    latent = int(cfg["latent_dimension"])

    keys = iter(jax.random.split(key, 2 * (len(enc_layers) + len(dec_layers)) + 4))
    params = {"enc": [], "dec": []}
    raw = {"enc": [], "dec": []}

    # ----- Encoder convs: lowered matrices built once at init -----
    c, h, w = in_c, in_h, in_w
    for (co, k, s, p) in enc_layers:
        wt = jax.random.normal(next(keys), (co, c, k, k), jnp.float32) * 0.05
        bt = jax.random.normal(next(keys), (co,), jnp.float32) * 0.01
        raw["enc"].append((wt, bt, k, s, p))
        m, oh, ow = _conv_matrix(np.asarray(wt), c, h, w, k, s, p)
        params["enc"].append((jnp.asarray(m), jnp.asarray(_bias_vec(bt, oh, ow))))
        c, h, w = co, oh, ow
    flat = c * h * w

    # ----- fc_mu / fc_log_var fused along N -----
    w_mu = jax.random.normal(next(keys), (flat, latent), jnp.float32) * 0.05
    w_lv = jax.random.normal(next(keys), (flat, latent), jnp.float32) * 0.05
    b_mu = jax.random.normal(next(keys), (latent,), jnp.float32) * 0.01
    b_lv = jax.random.normal(next(keys), (latent,), jnp.float32) * 0.01
    raw["fc"] = (w_mu, w_lv, b_mu, b_lv)
    params["fc"] = (jnp.concatenate([w_mu, w_lv], axis=1),
                    jnp.concatenate([b_mu, b_lv]).reshape(1, 2 * latent))

    # ----- Decoder deconvs: lowered matrices built once at init -----
    c, h, w = latent, 1, 1
    for (co, k, s, p) in dec_layers:
        wt = jax.random.normal(next(keys), (c, co, k, k), jnp.float32) * 0.05
        bt = jax.random.normal(next(keys), (co,), jnp.float32) * 0.01
        raw["dec"].append((wt, bt, k, s, p))
        m, oh, ow = _deconv_matrix(np.asarray(wt), c, h, w, k, s, p)
        params["dec"].append((jnp.asarray(m), jnp.asarray(_bias_vec(bt, oh, ow))))
        c, h, w = co, oh, ow

    meta = {"latent": latent, "n_enc": len(enc_layers), "n_dec": len(dec_layers),
            "out_dim": (c, h, w)}
    return params, raw, meta


def make_forward(meta):
    latent = meta["latent"]
    n_enc, n_dec = meta["n_enc"], meta["n_dec"]
    out_c, out_h, out_w = meta["out_dim"]

    def forward(params, x, eps):
        B = x.shape[0]
        xflat = x.reshape(B, -1)                         # NCHW flatten (free)

        operands = [xflat, eps]
        for m, b in params["enc"]:
            operands += [m, b]
        operands += [params["fc"][0], params["fc"][1]]
        for m, b in params["dec"]:
            operands += [m, b]
        n_out = params["dec"][-1][0].shape[1]

        flops = 2 * B * params["fc"][0].shape[0] * params["fc"][0].shape[1]
        for m, _ in params["enc"] + params["dec"]:
            flops += 2 * B * m.shape[0] * m.shape[1]
        transcendentals = B * latent + 2 * B * n_out
        bytes_accessed = 4 * (sum(int(np.prod(op.shape)) for op in operands)
                              + B * 2 * latent + B * n_out)
        cost = pl.CostEstimate(flops=flops, transcendentals=transcendentals,
                               bytes_accessed=bytes_accessed)

        mulv, recon_flat = pl.pallas_call(
            functools.partial(_vae_kernel, n_enc=n_enc, n_dec=n_dec, latent=latent),
            out_shape=(jax.ShapeDtypeStruct((B, 2 * latent), jnp.float32),
                       jax.ShapeDtypeStruct((B, n_out), jnp.float32)),
            in_specs=[_full_spec(op.shape) for op in operands],
            out_specs=(_full_spec((B, 2 * latent)), _full_spec((B, n_out))),
            compiler_params=pltpu.CompilerParams(vmem_limit_bytes=32 * 1024 * 1024),
            cost_estimate=cost,
        )(*operands)

        mu = mulv[:, :latent]
        log_var = mulv[:, latent:]
        recon = recon_flat.reshape(B, out_c, out_h, out_w)   # contiguous, free
        return recon, mu, log_var

    return forward


# ----------------------- pure-JAX reference (validation) --------------------

def reference_forward(raw, x, eps):
    hp = jax.lax.Precision.HIGHEST
    h = x
    for (w, b, k, s, p) in raw["enc"]:
        h = jax.lax.conv_general_dilated(
            h, w, (s, s), [(p, p), (p, p)],
            dimension_numbers=("NCHW", "OIHW", "NCHW"), precision=hp)
        h = jax.nn.relu(h + b.reshape(1, -1, 1, 1))
    B = h.shape[0]
    flat = h.reshape(B, -1)
    w_mu, w_lv, b_mu, b_lv = raw["fc"]
    mu = jnp.dot(flat, w_mu, precision=hp) + b_mu
    lv = jnp.dot(flat, w_lv, precision=hp) + b_lv
    z = mu + eps * jnp.exp(0.5 * lv)
    h = z.reshape(B, -1, 1, 1)
    n = len(raw["dec"])
    for i, (w, b, k, s, p) in enumerate(raw["dec"]):
        w_conv = jnp.flip(w, axis=(2, 3)).transpose(1, 0, 2, 3)
        h = jax.lax.conv_general_dilated(
            h, w_conv, (1, 1), [(k - 1 - p, k - 1 - p)] * 2, lhs_dilation=(s, s),
            dimension_numbers=("NCHW", "OIHW", "NCHW"), precision=hp)
        h = h + b.reshape(1, -1, 1, 1)
        h = jax.nn.relu(h) if i < n - 1 else jax.nn.sigmoid(jax.nn.sigmoid(h))
    return h, mu, lv


# ---------------------------------- main -------------------------------------

if __name__ == "__main__":
    config = {
        "VAE": {
            "input_dimension": [4, 16, 16],           # [C, H, W]
            "latent_dimension": 16,
            "encoder_conv_layers": [(8, 3, 2, 1), (16, 3, 2, 1)],
            "decoder_deconv_layers": [(16, 4, 1, 0), (8, 4, 2, 1), (4, 4, 2, 1)],
        }
    }
    cfg = config["VAE"]

    key = jax.random.PRNGKey(0)
    kx, keps, kp = jax.random.split(key, 3)

    batch = 2
    x = jax.random.uniform(kx, (batch, *cfg["input_dimension"]), jnp.float32)
    eps = jax.random.normal(keps, (batch, cfg["latent_dimension"]), jnp.float32)

    params, raw, meta = build_vae(cfg, kp)
    vae_forward = jax.jit(make_forward(meta))

    recon, mu, log_var = vae_forward(params, x, eps)
    jax.block_until_ready((recon, mu, log_var))

    # shape / range checks (double sigmoid -> outputs in (0.5, 0.732))
    assert recon.shape == x.shape, recon.shape
    assert mu.shape == (batch, cfg["latent_dimension"])
    assert log_var.shape == (batch, cfg["latent_dimension"])
    assert bool(jnp.all((recon > 0.0) & (recon < 1.0)))

    # numerical parity vs the pure-JAX reference
    r_recon, r_mu, r_lv = reference_forward(raw, x, eps)
    for got, ref in ((recon, r_recon), (mu, r_mu), (log_var, r_lv)):
        err = float(jnp.max(jnp.abs(got - ref)))
        assert bool(jnp.allclose(got, ref, atol=1e-3, rtol=1e-2)), err

    print("KERNEL_OK")
</pallas_src>

<mosaic_0001>
module attributes {stable_mosaic.version = 11 : i64} {
  func.func @_vae_kernel(%arg0: memref<2x1024xf32, #tpu.memory_space<vmem>>, %arg1: memref<2x16xf32, #tpu.memory_space<vmem>>, %arg2: memref<1024x512xf32, #tpu.memory_space<vmem>>, %arg3: memref<1x512xf32, #tpu.memory_space<vmem>>, %arg4: memref<512x256xf32, #tpu.memory_space<vmem>>, %arg5: memref<1x256xf32, #tpu.memory_space<vmem>>, %arg6: memref<256x32xf32, #tpu.memory_space<vmem>>, %arg7: memref<1x32xf32, #tpu.memory_space<vmem>>, %arg8: memref<16x256xf32, #tpu.memory_space<vmem>>, %arg9: memref<1x256xf32, #tpu.memory_space<vmem>>, %arg10: memref<256x512xf32, #tpu.memory_space<vmem>>, %arg11: memref<1x512xf32, #tpu.memory_space<vmem>>, %arg12: memref<512x1024xf32, #tpu.memory_space<vmem>>, %arg13: memref<1x1024xf32, #tpu.memory_space<vmem>>, %arg14: memref<2x32xf32, #tpu.memory_space<vmem>>, %arg15: memref<2x1024xf32, #tpu.memory_space<vmem>>) attributes {dimension_semantics = [], scalar_prefetch = 0 : i64, scratch_operands = 0 : i64, tpu.core_type = #tpu.core_type<tc>} {
    %c0 = arith.constant 0 : index
    %c0_0 = arith.constant 0 : index
    %0 = vector.load %arg0[%c0, %c0_0] : memref<2x1024xf32, #tpu.memory_space<vmem>>, vector<2x1024xf32>
    %c0_1 = arith.constant 0 : index
    %c0_2 = arith.constant 0 : index
    %1 = vector.load %arg2[%c0_1, %c0_2] : memref<1024x512xf32, #tpu.memory_space<vmem>>, vector<1024x512xf32>
    %cst = arith.constant dense<0.000000e+00> : vector<2x512xf32>
    %2 = tpu.matmul %0, %1, %cst {dimension_numbers = #tpu.dot_dimension_numbers<[1], [0], [0], [1], [0, 0, 1, 1], [], []>} : vector<2x1024xf32>, vector<1024x512xf32>, vector<2x512xf32> -> vector<2x512xf32>
    %c0_3 = arith.constant 0 : index
    %c0_4 = arith.constant 0 : index
    %3 = vector.load %arg3[%c0_3, %c0_4] : memref<1x512xf32, #tpu.memory_space<vmem>>, vector<1x512xf32>
    %4 = vector.broadcast %3 : vector<1x512xf32> to vector<2x512xf32>
    %5 = arith.addf %2, %4 : vector<2x512xf32>
    %cst_5 = arith.constant 0.000000e+00 : f32
    %6 = vector.broadcast %cst_5 : f32 to vector<2x512xf32>
    %7 = arith.maximumf %5, %6 : vector<2x512xf32>
    %c0_6 = arith.constant 0 : index
    %c0_7 = arith.constant 0 : index
    %8 = vector.load %arg4[%c0_6, %c0_7] : memref<512x256xf32, #tpu.memory_space<vmem>>, vector<512x256xf32>
    %cst_8 = arith.constant dense<0.000000e+00> : vector<2x256xf32>
    %9 = tpu.matmul %7, %8, %cst_8 {dimension_numbers = #tpu.dot_dimension_numbers<[1], [0], [0], [1], [0, 0, 1, 1], [], []>} : vector<2x512xf32>, vector<512x256xf32>, vector<2x256xf32> -> vector<2x256xf32>
    %c0_9 = arith.constant 0 : index
    %c0_10 = arith.constant 0 : index
    %10 = vector.load %arg5[%c0_9, %c0_10] : memref<1x256xf32, #tpu.memory_space<vmem>>, vector<1x256xf32>
    %11 = vector.broadcast %10 : vector<1x256xf32> to vector<2x256xf32>
    %12 = arith.addf %9, %11 : vector<2x256xf32>
    %cst_11 = arith.constant 0.000000e+00 : f32
    %13 = vector.broadcast %cst_11 : f32 to vector<2x256xf32>
    %14 = arith.maximumf %12, %13 : vector<2x256xf32>
    %c0_12 = arith.constant 0 : index
    %c0_13 = arith.constant 0 : index
    %15 = vector.load %arg6[%c0_12, %c0_13] : memref<256x32xf32, #tpu.memory_space<vmem>>, vector<256x32xf32>
    %cst_14 = arith.constant dense<0.000000e+00> : vector<2x32xf32>
    %16 = tpu.matmul %14, %15, %cst_14 {dimension_numbers = #tpu.dot_dimension_numbers<[1], [0], [0], [1], [0, 0, 1, 1], [], []>} : vector<2x256xf32>, vector<256x32xf32>, vector<2x32xf32> -> vector<2x32xf32>
    %c0_15 = arith.constant 0 : index
    %c0_16 = arith.constant 0 : index
    %17 = vector.load %arg7[%c0_15, %c0_16] : memref<1x32xf32, #tpu.memory_space<vmem>>, vector<1x32xf32>
    %18 = vector.broadcast %17 : vector<1x32xf32> to vector<2x32xf32>
    %19 = arith.addf %16, %18 : vector<2x32xf32>
    %20 = vector.extract_strided_slice %19 {offsets = [0, 0], sizes = [2, 16], strides = [1, 1]} : vector<2x32xf32> to vector<2x16xf32>
    %21 = vector.extract_strided_slice %19 {offsets = [0, 16], sizes = [2, 16], strides = [1, 1]} : vector<2x32xf32> to vector<2x16xf32>
    %c0_17 = arith.constant 0 : index
    %c0_18 = arith.constant 0 : index
    %22 = vector.load %arg1[%c0_17, %c0_18] : memref<2x16xf32, #tpu.memory_space<vmem>>, vector<2x16xf32>
    %cst_19 = arith.constant 5.000000e-01 : f32
    %23 = vector.broadcast %cst_19 : f32 to vector<2x16xf32>
    %24 = arith.mulf %23, %21 : vector<2x16xf32>
    %25 = math.exp %24 : vector<2x16xf32>
    %26 = arith.mulf %22, %25 : vector<2x16xf32>
    %27 = arith.addf %20, %26 : vector<2x16xf32>
    %c0_20 = arith.constant 0 : index
    %c0_21 = arith.constant 0 : index
    %28 = vector.load %arg8[%c0_20, %c0_21] : memref<16x256xf32, #tpu.memory_space<vmem>>, vector<16x256xf32>
    %cst_22 = arith.constant dense<0.000000e+00> : vector<2x256xf32>
    %29 = tpu.matmul %27, %28, %cst_22 {dimension_numbers = #tpu.dot_dimension_numbers<[1], [0], [0], [1], [0, 0, 1, 1], [], []>} : vector<2x16xf32>, vector<16x256xf32>, vector<2x256xf32> -> vector<2x256xf32>
    %c0_23 = arith.constant 0 : index
    %c0_24 = arith.constant 0 : index
    %30 = vector.load %arg9[%c0_23, %c0_24] : memref<1x256xf32, #tpu.memory_space<vmem>>, vector<1x256xf32>
    %31 = vector.broadcast %30 : vector<1x256xf32> to vector<2x256xf32>
    %32 = arith.addf %29, %31 : vector<2x256xf32>
    %cst_25 = arith.constant 0.000000e+00 : f32
    %33 = vector.broadcast %cst_25 : f32 to vector<2x256xf32>
    %34 = arith.maximumf %32, %33 : vector<2x256xf32>
    %c0_26 = arith.constant 0 : index
    %c0_27 = arith.constant 0 : index
    %35 = vector.load %arg10[%c0_26, %c0_27] : memref<256x512xf32, #tpu.memory_space<vmem>>, vector<256x512xf32>
    %cst_28 = arith.constant dense<0.000000e+00> : vector<2x512xf32>
    %36 = tpu.matmul %34, %35, %cst_28 {dimension_numbers = #tpu.dot_dimension_numbers<[1], [0], [0], [1], [0, 0, 1, 1], [], []>} : vector<2x256xf32>, vector<256x512xf32>, vector<2x512xf32> -> vector<2x512xf32>
    %c0_29 = arith.constant 0 : index
    %c0_30 = arith.constant 0 : index
    %37 = vector.load %arg11[%c0_29, %c0_30] : memref<1x512xf32, #tpu.memory_space<vmem>>, vector<1x512xf32>
    %38 = vector.broadcast %37 : vector<1x512xf32> to vector<2x512xf32>
    %39 = arith.addf %36, %38 : vector<2x512xf32>
    %cst_31 = arith.constant 0.000000e+00 : f32
    %40 = vector.broadcast %cst_31 : f32 to vector<2x512xf32>
    %41 = arith.maximumf %39, %40 : vector<2x512xf32>
    %c0_32 = arith.constant 0 : index
    %c0_33 = arith.constant 0 : index
    %42 = vector.load %arg12[%c0_32, %c0_33] : memref<512x1024xf32, #tpu.memory_space<vmem>>, vector<512x1024xf32>
    %cst_34 = arith.constant dense<0.000000e+00> : vector<2x1024xf32>
    %43 = tpu.matmul %41, %42, %cst_34 {dimension_numbers = #tpu.dot_dimension_numbers<[1], [0], [0], [1], [0, 0, 1, 1], [], []>} : vector<2x512xf32>, vector<512x1024xf32>, vector<2x1024xf32> -> vector<2x1024xf32>
    %c0_35 = arith.constant 0 : index
    %c0_36 = arith.constant 0 : index
    %44 = vector.load %arg13[%c0_35, %c0_36] : memref<1x1024xf32, #tpu.memory_space<vmem>>, vector<1x1024xf32>
    %45 = vector.broadcast %44 : vector<1x1024xf32> to vector<2x1024xf32>
    %46 = arith.addf %43, %45 : vector<2x1024xf32>
    %47 = arith.negf %46 : vector<2x1024xf32>
    %48 = math.exp %47 : vector<2x1024xf32>
    %cst_37 = arith.constant 1.000000e+00 : f32
    %49 = vector.broadcast %cst_37 : f32 to vector<2x1024xf32>
    %50 = arith.addf %49, %48 : vector<2x1024xf32>
    %51 = arith.divf %49, %50 : vector<2x1024xf32>
    %52 = arith.negf %51 : vector<2x1024xf32>
    %53 = math.exp %52 : vector<2x1024xf32>
    %cst_38 = arith.constant 1.000000e+00 : f32
    %54 = vector.broadcast %cst_38 : f32 to vector<2x1024xf32>
    %55 = arith.addf %54, %53 : vector<2x1024xf32>
    %56 = arith.divf %54, %55 : vector<2x1024xf32>
    %c0_39 = arith.constant 0 : index
    %c0_40 = arith.constant 0 : index
    %57 = vector.load %arg14[%c0_39, %c0_40] : memref<2x32xf32, #tpu.memory_space<vmem>>, vector<2x32xf32>
    tpu.vector_store %arg14[%c0_39, %c0_40], %19 {strides = array<i32>} : memref<2x32xf32, #tpu.memory_space<vmem>>, vector<2x32xf32>,
    %c0_41 = arith.constant 0 : index
    %c0_42 = arith.constant 0 : index
    %58 = vector.load %arg15[%c0_41, %c0_42] : memref<2x1024xf32, #tpu.memory_space<vmem>>, vector<2x1024xf32>
    tpu.vector_store %arg15[%c0_41, %c0_42], %56 {strides = array<i32>} : memref<2x1024xf32, #tpu.memory_space<vmem>>, vector<2x1024xf32>,
    return
  }
}

</mosaic_0001>

<llo_original>
// kernel: forward.1
$region0: #{forward.1}
  #allocation0 [shape = 'u32[]', space=smem, size = 0x4, offset = 0x4, fixed_abs, tag = 'smem constant byte address 0x4 - core index']
  #allocation1 [shape = 'u32[72,128]{1,0:T(1,128)}', space=vmem, size = 0x9000, scoped, tag = 'internal scratch']
  %s0 = inlined_call_operand.vmem [shape: f32[2,1024], index: 0, kind: input, shape index: {}]
  %s1 = inlined_call_operand.hbm [shape: f32[2,16], index: 1, kind: input, shape index: {}]
  %s2 = inlined_call_operand.hbm [shape: f32[1024,512], index: 2, kind: input, shape index: {}]
  %s3 = inlined_call_operand.hbm [shape: f32[1,512], index: 3, kind: input, shape index: {}]
  %s4 = inlined_call_operand.hbm [shape: f32[512,256], index: 4, kind: input, shape index: {}]
  %s5 = inlined_call_operand.hbm [shape: f32[1,256], index: 5, kind: input, shape index: {}]
  %s6 = inlined_call_operand.vmem [shape: f32[256,32], index: 6, kind: input, shape index: {}]
  %s7 = inlined_call_operand.hbm [shape: f32[1,32], index: 7, kind: input, shape index: {}]
  %s8 = inlined_call_operand.hbm [shape: f32[16,256], index: 8, kind: input, shape index: {}]
  %s9 = inlined_call_operand.hbm [shape: f32[1,256], index: 9, kind: input, shape index: {}]
  %s10 = inlined_call_operand.hbm [shape: f32[256,512], index: 10, kind: input, shape index: {}]
  %s11 = inlined_call_operand.hbm [shape: f32[1,512], index: 11, kind: input, shape index: {}]
  %s12 = inlined_call_operand.hbm [shape: f32[512,1024], index: 12, kind: input, shape index: {}]
  %s13 = inlined_call_operand.hbm [shape: f32[1,1024], index: 13, kind: input, shape index: {}]
  %s14 = inlined_call_operand.vmem [shape: f32[2,32], index: 14, kind: output, shape index: {0}]
  %s15 = inlined_call_operand.vmem [shape: f32[2,1024], index: 15, kind: output, shape index: {1}]
  %16 = xla_tuple %s14, %s15
  %s17 = sld [smem:[#allocation0]]
  $region122: #{forward.1} parent=0
    _
  %s19 = ssub.s32 1, %s17
  %s20 = scalar_select 0, %s19, %s17
  $region1: #{forward.1} parent=0
    #allocation2 [shape = 'u8[1024]{0}', space=vmem, size = 0x400, scoped, tag = 'input window, operand 1, single buffered']
    #allocation3 [shape = 's32[1]{0}', space=sflag, size = 0x4, scoped, tag = 'scoped memory for forward.1']
    #allocation4 [shape = 'u8[2097152]{0}', space=vmem, size = 0x200000, scoped, tag = 'input window, operand 2, single buffered']
    #allocation5 [shape = 's32[1]{0}', space=sflag, size = 0x4, scoped, tag = 'scoped memory for forward.1']
    #allocation6 [shape = 'u8[2048]{0}', space=vmem, size = 0x800, scoped, tag = 'input window, operand 3, single buffered']
    #allocation7 [shape = 'u8[524288]{0}', space=vmem, size = 0x80000, scoped, tag = 'input window, operand 4, single buffered']
    #allocation8 [shape = 's32[1]{0}', space=sflag, size = 0x4, scoped, tag = 'scoped memory for forward.1']
    #allocation9 [shape = 'u8[1024]{0}', space=vmem, size = 0x400, scoped, tag = 'input window, operand 5, single buffered']
    #allocation10 [shape = 'u8[512]{0}', space=vmem, size = 0x400, scoped, tag = 'input window, operand 7, single buffered']
    #allocation11 [shape = 's32[1]{0}', space=sflag, size = 0x4, scoped, tag = 'scoped memory for forward.1']
    #allocation12 [shape = 'u8[16384]{0}', space=vmem, size = 0x4000, scoped, tag = 'input window, operand 8, single buffered']
    #allocation13 [shape = 'u8[1024]{0}', space=vmem, size = 0x400, scoped, tag = 'input window, operand 9, single buffered']
    #allocation14 [shape = 's32[1]{0}', space=sflag, size = 0x4, scoped, tag = 'scoped memory for forward.1']
    #allocation15 [shape = 'u8[524288]{0}', space=vmem, size = 0x80000, scoped, tag = 'input window, operand 10, single buffered']
    #allocation16 [shape = 'u8[2048]{0}', space=vmem, size = 0x800, scoped, tag = 'input window, operand 11, single buffered']
    #allocation17 [shape = 's32[1]{0}', space=sflag, size = 0x4, scoped, tag = 'scoped memory for forward.1']
    #allocation18 [shape = 'u8[2097152]{0}', space=vmem, size = 0x200000, scoped, tag = 'input window, operand 12, single buffered']
    #allocation19 [shape = 'u8[4096]{0}', space=vmem, size = 0x1000, scoped, tag = 'input window, operand 13, single buffered']
    #allocation20 [shape = 's32[1]{0}', space=sflag, size = 0x4, scoped, tag = 'scoped memory for forward.1']
    %21 = vsyncpa [#allocation3], 0
    %22 = vsyncpa [#allocation5], 0
    %23 = vsyncpa [#allocation8], 0
    %24 = vsyncpa [#allocation11], 0
    %25 = vsyncpa [#allocation14], 0
    %26 = vsyncpa [#allocation17], 0
    %27 = vsyncpa [#allocation20], 0
    // Predicated region
    $region2: #{forward.1} parent=1 // pred_check
      _
    $region3: #{forward.1} parent=1 // pred_check_branch
      %29 = sbr.rel (0) target = $region5
    $region4: #{forward.1} parent=1 // pred_region
      _
    $region5: #{forward.1} parent=1 // pred_fallthru
      _
    // Predicated region
    $region6: #{forward.1} parent=1 // pred_check
      _
    $region7: #{forward.1} parent=1 // pred_check_branch
      %31 = sbr.rel (0) target = $region9
    $region8: #{forward.1} parent=1 // pred_region
      %33 = vsyncadd [#allocation3], 0
      %s35 = sshll.u32 %s1, 4
      %s36 = int_to_ptr.hbm [resolvable:$true] %s35
      %s37 = sshll.u32 [#allocation2], 4
      %s38 = int_to_ptr.vmem [resolvable:$true] %s37
      %40 = dma.hbm_to_vmem [thread:$0]  %s36, 32, %s38, [#allocation3]
    $region9: #{forward.1} parent=1 // pred_fallthru
      _
    // Predicated region
    $region10: #{forward.1} parent=1 // pred_check
      _
    $region11: #{forward.1} parent=1 // pred_check_branch
      %42 = sbr.rel (0) target = $region13
    $region12: #{forward.1} parent=1 // pred_region
      %44 = vsyncadd [#allocation5], 0
      %s45 = sshll.u32 %s2, 4
      %s46 = int_to_ptr.hbm [resolvable:$true] %s45
      %s47 = sshll.u32 [#allocation4], 4
      %s48 = int_to_ptr.vmem [resolvable:$true] %s47
      %53 = dma.hbm_to_vmem [thread:$0]  %s46, 65536, %s48, [#allocation5], 512, 512, 32
    $region13: #{forward.1} parent=1 // pred_fallthru
      _
    // Predicated region
    $region14: #{forward.1} parent=1 // pred_check
      _
    $region15: #{forward.1} parent=1 // pred_check_branch
      %55 = sbr.rel (0) target = $region17
    $region16: #{forward.1} parent=1 // pred_region
      %57 = vsyncadd [#allocation5], 0
      %s59 = sshll.u32 %s3, 4
      %s60 = int_to_ptr.hbm [resolvable:$true] %s59
      %s61 = sshll.u32 [#allocation6], 4
      %s62 = int_to_ptr.vmem [resolvable:$true] %s61
      %64 = dma.hbm_to_vmem [thread:$0]  %s60, 64, %s62, [#allocation5]
    $region17: #{forward.1} parent=1 // pred_fallthru
      _
    // Predicated region
    $region18: #{forward.1} parent=1 // pred_check
      _
    $region19: #{forward.1} parent=1 // pred_check_branch
      %66 = sbr.rel (0) target = $region21
    $region20: #{forward.1} parent=1 // pred_region
      %68 = vsyncadd [#allocation8], 0
      %s69 = sshll.u32 %s4, 4
      %s70 = int_to_ptr.hbm [resolvable:$true] %s69
      %s71 = sshll.u32 [#allocation7], 4
      %s72 = int_to_ptr.vmem [resolvable:$true] %s71
      %77 = dma.hbm_to_vmem [thread:$0]  %s70, 16384, %s72, [#allocation8], 256, 256, 16
    $region21: #{forward.1} parent=1 // pred_fallthru
      _
    // Predicated region
    $region22: #{forward.1} parent=1 // pred_check
      _
    $region23: #{forward.1} parent=1 // pred_check_branch
      %79 = sbr.rel (0) target = $region25
    $region24: #{forward.1} parent=1 // pred_region
      %81 = vsyncadd [#allocation8], 0
      %s83 = sshll.u32 %s5, 4
      %s84 = int_to_ptr.hbm [resolvable:$true] %s83
      %s85 = sshll.u32 [#allocation9], 4
      %s86 = int_to_ptr.vmem [resolvable:$true] %s85
      %88 = dma.hbm_to_vmem [thread:$0]  %s84, 32, %s86, [#allocation8]
    $region25: #{forward.1} parent=1 // pred_fallthru
      _
    // Predicated region
    $region26: #{forward.1} parent=1 // pred_check
      _
    $region27: #{forward.1} parent=1 // pred_check_branch
      %90 = sbr.rel (0) target = $region29
    $region28: #{forward.1} parent=1 // pred_region
      _
    $region29: #{forward.1} parent=1 // pred_fallthru
      _
    // Predicated region
    $region30: #{forward.1} parent=1 // pred_check
      _
    $region31: #{forward.1} parent=1 // pred_check_branch
      %92 = sbr.rel (0) target = $region33
    $region32: #{forward.1} parent=1 // pred_region
      %94 = vsyncadd [#allocation11], 0
      %s96 = sshll.u32 %s7, 4
      %s97 = int_to_ptr.hbm [resolvable:$true] %s96
      %s98 = sshll.u32 [#allocation10], 4
      %s99 = int_to_ptr.vmem [resolvable:$true] %s98
      %101 = dma.hbm_to_vmem [thread:$0]  %s97, 16, %s99, [#allocation11]
    $region33: #{forward.1} parent=1 // pred_fallthru
      _
    // Predicated region
    $region34: #{forward.1} parent=1 // pred_check
      _
    $region35: #{forward.1} parent=1 // pred_check_branch
      %103 = sbr.rel (0) target = $region37
    $region36: #{forward.1} parent=1 // pred_region
      %105 = vsyncadd [#allocation11], 0
      %s106 = sshll.u32 %s8, 4
      %s107 = int_to_ptr.hbm [resolvable:$true] %s106
      %s108 = sshll.u32 [#allocation12], 4
      %s109 = int_to_ptr.vmem [resolvable:$true] %s108
      %114 = dma.hbm_to_vmem [thread:$0]  %s107, 512, %s109, [#allocation11], 256, 256, 16
    $region37: #{forward.1} parent=1 // pred_fallthru
      _
    // Predicated region
    $region38: #{forward.1} parent=1 // pred_check
      _
    $region39: #{forward.1} parent=1 // pred_check_branch
      %116 = sbr.rel (0) target = $region41
    $region40: #{forward.1} parent=1 // pred_region
      %118 = vsyncadd [#allocation14], 0
      %s120 = sshll.u32 %s9, 4
      %s121 = int_to_ptr.hbm [resolvable:$true] %s120
      %s122 = sshll.u32 [#allocation13], 4
      %s123 = int_to_ptr.vmem [resolvable:$true] %s122
      %125 = dma.hbm_to_vmem [thread:$0]  %s121, 32, %s123, [#allocation14]
    $region41: #{forward.1} parent=1 // pred_fallthru
      _
    // Predicated region
    $region42: #{forward.1} parent=1 // pred_check
      _
    $region43: #{forward.1} parent=1 // pred_check_branch
      %127 = sbr.rel (0) target = $region45
    $region44: #{forward.1} parent=1 // pred_region
      %129 = vsyncadd [#allocation14], 0
      %s130 = sshll.u32 %s10, 4
      %s131 = int_to_ptr.hbm [resolvable:$true] %s130
      %s132 = sshll.u32 [#allocation15], 4
      %s133 = int_to_ptr.vmem [resolvable:$true] %s132
      %138 = dma.hbm_to_vmem [thread:$0]  %s131, 16384, %s133, [#allocation14], 512, 512, 32
    $region45: #{forward.1} parent=1 // pred_fallthru
      _
    // Predicated region
    $region46: #{forward.1} parent=1 // pred_check
      _
    $region47: #{forward.1} parent=1 // pred_check_branch
      %140 = sbr.rel (0) target = $region49
    $region48: #{forward.1} parent=1 // pred_region
      %142 = vsyncadd [#allocation17], 0
      %s144 = sshll.u32 %s11, 4
      %s145 = int_to_ptr.hbm [resolvable:$true] %s144
      %s146 = sshll.u32 [#allocation16], 4
      %s147 = int_to_ptr.vmem [resolvable:$true] %s146
      %149 = dma.hbm_to_vmem [thread:$0]  %s145, 64, %s147, [#allocation17]
    $region49: #{forward.1} parent=1 // pred_fallthru
      _
    // Predicated region
    $region50: #{forward.1} parent=1 // pred_check
      _
    $region51: #{forward.1} parent=1 // pred_check_branch
      %151 = sbr.rel (0) target = $region53
    $region52: #{forward.1} parent=1 // pred_region
      %153 = vsyncadd [#allocation17], 0
      %s154 = sshll.u32 %s12, 4
      %s155 = int_to_ptr.hbm [resolvable:$true] %s154
      %s156 = sshll.u32 [#allocation18], 4
      %s157 = int_to_ptr.vmem [resolvable:$true] %s156
      %162 = dma.hbm_to_vmem [thread:$0]  %s155, 65536, %s157, [#allocation17], 1024, 1024, 64
    $region53: #{forward.1} parent=1 // pred_fallthru
      _
    // Predicated region
    $region54: #{forward.1} parent=1 // pred_check
      _
    $region55: #{forward.1} parent=1 // pred_check_branch
      %164 = sbr.rel (0) target = $region57
    $region56: #{forward.1} parent=1 // pred_region
      %166 = vsyncadd [#allocation20], 0
      %s168 = sshll.u32 %s13, 4
      %s169 = int_to_ptr.hbm [resolvable:$true] %s168
      %s170 = sshll.u32 [#allocation19], 4
      %s171 = int_to_ptr.vmem [resolvable:$true] %s170
      %173 = dma.hbm_to_vmem [thread:$0]  %s169, 128, %s171, [#allocation20]
    $region57: #{forward.1} parent=1 // pred_fallthru
      _
    // Predicated region
    $region58: #{forward.1} parent=1 // pred_check
      _
    $region59: #{forward.1} parent=1 // pred_check_branch
      %175 = sbr.rel (0) target = $region61
    $region60: #{forward.1} parent=1 // pred_region
      %177 = dma.done [#allocation3], 32
    $region61: #{forward.1} parent=1 // pred_fallthru
      _
    // Predicated region
    $region62: #{forward.1} parent=1 // pred_check
      _
    $region63: #{forward.1} parent=1 // pred_check_branch
      %179 = sbr.rel (0) target = $region65
    $region64: #{forward.1} parent=1 // pred_region
      %181 = dma.done [#allocation5], 65536
    $region65: #{forward.1} parent=1 // pred_fallthru
      _
    // Predicated region
    $region66: #{forward.1} parent=1 // pred_check
      _
    $region67: #{forward.1} parent=1 // pred_check_branch
      %183 = sbr.rel (0) target = $region69
    $region68: #{forward.1} parent=1 // pred_region
      %185 = dma.done [#allocation5], 64
    $region69: #{forward.1} parent=1 // pred_fallthru
      _
    // Predicated region
    $region70: #{forward.1} parent=1 // pred_check
      _
    $region71: #{forward.1} parent=1 // pred_check_branch
      %187 = sbr.rel (0) target = $region73
    $region72: #{forward.1} parent=1 // pred_region
      %189 = dma.done [#allocation8], 16384
    $region73: #{forward.1} parent=1 // pred_fallthru
      _
    // Predicated region
    $region74: #{forward.1} parent=1 // pred_check
      _
    $region75: #{forward.1} parent=1 // pred_check_branch
      %191 = sbr.rel (0) target = $region77
    $region76: #{forward.1} parent=1 // pred_region
      %193 = dma.done [#allocation8], 32
    $region77: #{forward.1} parent=1 // pred_fallthru
      _
    // Predicated region
    $region78: #{forward.1} parent=1 // pred_check
      _
    $region79: #{forward.1} parent=1 // pred_check_branch
      %195 = sbr.rel (0) target = $region81
    $region80: #{forward.1} parent=1 // pred_region
      %197 = dma.done [#allocation11], 16
    $region81: #{forward.1} parent=1 // pred_fallthru
      _
    // Predicated region
    $region82: #{forward.1} parent=1 // pred_check
      _
    $region83: #{forward.1} parent=1 // pred_check_branch
      %199 = sbr.rel (0) target = $region85
    $region84: #{forward.1} parent=1 // pred_region
      %201 = dma.done [#allocation11], 512
    $region85: #{forward.1} parent=1 // pred_fallthru
      _
    // Predicated region
    $region86: #{forward.1} parent=1 // pred_check
      _
    $region87: #{forward.1} parent=1 // pred_check_branch
      %203 = sbr.rel (0) target = $region89
    $region88: #{forward.1} parent=1 // pred_region
      %205 = dma.done [#allocation14], 32
    $region89: #{forward.1} parent=1 // pred_fallthru
      _
    // Predicated region
    $region90: #{forward.1} parent=1 // pred_check
      _
    $region91: #{forward.1} parent=1 // pred_check_branch
      %207 = sbr.rel (0) target = $region93
    $region92: #{forward.1} parent=1 // pred_region
      %209 = dma.done [#allocation14], 16384
    $region93: #{forward.1} parent=1 // pred_fallthru
      _
    // Predicated region
    $region94: #{forward.1} parent=1 // pred_check
      _
    $region95: #{forward.1} parent=1 // pred_check_branch
      %211 = sbr.rel (0) target = $region97
    $region96: #{forward.1} parent=1 // pred_region
      %213 = dma.done [#allocation17], 64
    $region97: #{forward.1} parent=1 // pred_fallthru
      _
    // Predicated region
    $region98: #{forward.1} parent=1 // pred_check
      _
    $region99: #{forward.1} parent=1 // pred_check_branch
      %215 = sbr.rel (0) target = $region101
    $region100: #{forward.1} parent=1 // pred_region
      %217 = dma.done [#allocation17], 65536
    $region101: #{forward.1} parent=1 // pred_fallthru
      _
    // Predicated region
    $region102: #{forward.1} parent=1 // pred_check
      _
    $region103: #{forward.1} parent=1 // pred_check_branch
      %219 = sbr.rel (0) target = $region105
    $region104: #{forward.1} parent=1 // pred_region
      %221 = dma.done [#allocation20], 128
    $region105: #{forward.1} parent=1 // pred_fallthru
      _
    %v222 = vld [vmem:[%s0] sm:$0xff]
    %v223 = vld [vmem:[%s0 + $0x8] sm:$0xff]
    %v224 = vld [vmem:[#allocation4] sm:$0xff]
    %v225 = vld [vmem:[#allocation4 + $0x8] sm:$0xff]
    %v226 = vld [vmem:[#allocation4 + $0x10] sm:$0xff]
    %v227 = vld [vmem:[#allocation4 + $0x18] sm:$0xff]
    %v228 = vld [vmem:[#allocation4 + $0x20] sm:$0xff]
    %v229 = vld [vmem:[#allocation4 + $0x28] sm:$0xff]
    %v230 = vld [vmem:[#allocation4 + $0x30] sm:$0xff]
    %v231 = vld [vmem:[#allocation4 + $0x38] sm:$0xff]
    %v232 = vld [vmem:[#allocation4 + $0x40] sm:$0xff]
    %v233 = vld [vmem:[#allocation4 + $0x48] sm:$0xff]
    %v234 = vld [vmem:[#allocation4 + $0x50] sm:$0xff]
    %v235 = vld [vmem:[#allocation4 + $0x58] sm:$0xff]
    %v236 = vld [vmem:[#allocation4 + $0x60] sm:$0xff]
    %v237 = vld [vmem:[#allocation4 + $0x68] sm:$0xff]
    %v238 = vld [vmem:[#allocation4 + $0x70] sm:$0xff]
    %v239 = vld [vmem:[#allocation4 + $0x78] sm:$0xff]
    %v240 = vld [vmem:[#allocation4 + $0x80] sm:$0xff]
    %v241 = vld [vmem:[#allocation4 + $0x88] sm:$0xff]
    %v242 = vld [vmem:[#allocation4 + $0x90] sm:$0xff]
    %v243 = vld [vmem:[#allocation4 + $0x98] sm:$0xff]
    %v244 = vld [vmem:[#allocation4 + $0xa0] sm:$0xff]
    %v245 = vld [vmem:[#allocation4 + $0xa8] sm:$0xff]
    %v246 = vld [vmem:[#allocation4 + $0xb0] sm:$0xff]
    %v247 = vld [vmem:[#allocation4 + $0xb8] sm:$0xff]
    %v248 = vld [vmem:[#allocation4 + $0xc0] sm:$0xff]
    %v249 = vld [vmem:[#allocation4 + $0xc8] sm:$0xff]
    %v250 = vld [vmem:[#allocation4 + $0xd0] sm:$0xff]
    %v251 = vld [vmem:[#allocation4 + $0xd8] sm:$0xff]
    %v252 = vld [vmem:[#allocation4 + $0xe0] sm:$0xff]
    %v253 = vld [vmem:[#allocation4 + $0xe8] sm:$0xff]
    %v254 = vld [vmem:[#allocation4 + $0xf0] sm:$0xff]
    %v255 = vld [vmem:[#allocation4 + $0xf8] sm:$0xff]
    %v256 = vld [vmem:[#allocation4 + $0x100] sm:$0xff]
    %v257 = vld [vmem:[#allocation4 + $0x108] sm:$0xff]
    %v258 = vld [vmem:[#allocation4 + $0x110] sm:$0xff]
    %v259 = vld [vmem:[#allocation4 + $0x118] sm:$0xff]
    %v260 = vld [vmem:[#allocation4 + $0x120] sm:$0xff]
    %v261 = vld [vmem:[#allocation4 + $0x128] sm:$0xff]
    %v262 = vld [vmem:[#allocation4 + $0x130] sm:$0xff]
    %v263 = vld [vmem:[#allocation4 + $0x138] sm:$0xff]
    %v264 = vld [vmem:[#allocation4 + $0x140] sm:$0xff]
    %v265 = vld [vmem:[#allocation4 + $0x148] sm:$0xff]
    %v266 = vld [vmem:[#allocation4 + $0x150] sm:$0xff]
    %v267 = vld [vmem:[#allocation4 + $0x158] sm:$0xff]
    %v268 = vld [vmem:[#allocation4 + $0x160] sm:$0xff]
    %v269 = vld [vmem:[#allocation4 + $0x168] sm:$0xff]
    %v270 = vld [vmem:[#allocation4 + $0x170] sm:$0xff]
    %v271 = vld [vmem:[#allocation4 + $0x178] sm:$0xff]
    %v272 = vld [vmem:[#allocation4 + $0x180] sm:$0xff]
    %v273 = vld [vmem:[#allocation4 + $0x188] sm:$0xff]
    %v274 = vld [vmem:[#allocation4 + $0x190] sm:$0xff]
    %v275 = vld [vmem:[#allocation4 + $0x198] sm:$0xff]
    %v276 = vld [vmem:[#allocation4 + $0x1a0] sm:$0xff]
    %v277 = vld [vmem:[#allocation4 + $0x1a8] sm:$0xff]
    %v278 = vld [vmem:[#allocation4 + $0x1b0] sm:$0xff]
    %v279 = vld [vmem:[#allocation4 + $0x1b8] sm:$0xff]
    %v280 = vld [vmem:[#allocation4 + $0x1c0] sm:$0xff]
    %v281 = vld [vmem:[#allocation4 + $0x1c8] sm:$0xff]
    %v282 = vld [vmem:[#allocation4 + $0x1d0] sm:$0xff]
    %v283 = vld [vmem:[#allocation4 + $0x1d8] sm:$0xff]
    %v284 = vld [vmem:[#allocation4 + $0x1e0] sm:$0xff]
    %v285 = vld [vmem:[#allocation4 + $0x1e8] sm:$0xff]
    %v286 = vld [vmem:[#allocation4 + $0x1f0] sm:$0xff]
    %v287 = vld [vmem:[#allocation4 + $0x1f8] sm:$0xff]
    %v288 = vld [vmem:[#allocation4 + $0x200] sm:$0xff]
    %v289 = vld [vmem:[#allocation4 + $0x208] sm:$0xff]
    %v290 = vld [vmem:[#allocation4 + $0x210] sm:$0xff]
    %v291 = vld [vmem:[#allocation4 + $0x218] sm:$0xff]
    %v292 = vld [vmem:[#allocation4 + $0x220] sm:$0xff]
    %v293 = vld [vmem:[#allocation4 + $0x228] sm:$0xff]
    %v294 = vld [vmem:[#allocation4 + $0x230] sm:$0xff]
    %v295 = vld [vmem:[#allocation4 + $0x238] sm:$0xff]
    %v296 = vld [vmem:[#allocation4 + $0x240] sm:$0xff]
    %v297 = vld [vmem:[#allocation4 + $0x248] sm:$0xff]
    %v298 = vld [vmem:[#allocation4 + $0x250] sm:$0xff]
    %v299 = vld [vmem:[#allocation4 + $0x258] sm:$0xff]
    %v300 = vld [vmem:[#allocation4 + $0x260] sm:$0xff]
    %v301 = vld [vmem:[#allocation4 + $0x268] sm:$0xff]
    %v302 = vld [vmem:[#allocation4 + $0x270] sm:$0xff]
    %v303 = vld [vmem:[#allocation4 + $0x278] sm:$0xff]
    %v304 = vld [vmem:[#allocation4 + $0x280] sm:$0xff]
    %v305 = vld [vmem:[#allocation4 + $0x288] sm:$0xff]
    %v306 = vld [vmem:[#allocation4 + $0x290] sm:$0xff]
    %v307 = vld [vmem:[#allocation4 + $0x298] sm:$0xff]
    %v308 = vld [vmem:[#allocation4 + $0x2a0] sm:$0xff]
    %v309 = vld [vmem:[#allocation4 + $0x2a8] sm:$0xff]
    %v310 = vld [vmem:[#allocation4 + $0x2b0] sm:$0xff]
    %v311 = vld [vmem:[#allocation4 + $0x2b8] sm:$0xff]
    %v312 = vld [vmem:[#allocation4 + $0x2c0] sm:$0xff]
    %v313 = vld [vmem:[#allocation4 + $0x2c8] sm:$0xff]
    %v314 = vld [vmem:[#allocation4 + $0x2d0] sm:$0xff]
    %v315 = vld [vmem:[#allocation4 + $0x2d8] sm:$0xff]
    %v316 = vld [vmem:[#allocation4 + $0x2e0] sm:$0xff]
    %v317 = vld [vmem:[#allocation4 + $0x2e8] sm:$0xff]
    %v318 = vld [vmem:[#allocation4 + $0x2f0] sm:$0xff]
    %v319 = vld [vmem:[#allocation4 + $0x2f8] sm:$0xff]
    %v320 = vld [vmem:[#allocation4 + $0x300] sm:$0xff]
    %v321 = vld [vmem:[#allocation4 + $0x308] sm:$0xff]
    %v322 = vld [vmem:[#allocation4 + $0x310] sm:$0xff]
    %v323 = vld [vmem:[#allocation4 + $0x318] sm:$0xff]
    %v324 = vld [vmem:[#allocation4 + $0x320] sm:$0xff]
    %v325 = vld [vmem:[#allocation4 + $0x328] sm:$0xff]
    %v326 = vld [vmem:[#allocation4 + $0x330] sm:$0xff]
    %v327 = vld [vmem:[#allocation4 + $0x338] sm:$0xff]
    %v328 = vld [vmem:[#allocation4 + $0x340] sm:$0xff]
    %v329 = vld [vmem:[#allocation4 + $0x348] sm:$0xff]
    %v330 = vld [vmem:[#allocation4 + $0x350] sm:$0xff]
    %v331 = vld [vmem:[#allocation4 + $0x358] sm:$0xff]
    %v332 = vld [vmem:[#allocation4 + $0x360] sm:$0xff]
    %v333 = vld [vmem:[#allocation4 + $0x368] sm:$0xff]
    %v334 = vld [vmem:[#allocation4 + $0x370] sm:$0xff]
    %v335 = vld [vmem:[#allocation4 + $0x378] sm:$0xff]
    %v336 = vld [vmem:[#allocation4 + $0x380] sm:$0xff]
    %v337 = vld [vmem:[#allocation4 + $0x388] sm:$0xff]
    %v338 = vld [vmem:[#allocation4 + $0x390] sm:$0xff]
    %v339 = vld [vmem:[#allocation4 + $0x398] sm:$0xff]
    %v340 = vld [vmem:[#allocation4 + $0x3a0] sm:$0xff]
    %v341 = vld [vmem:[#allocation4 + $0x3a8] sm:$0xff]
    %v342 = vld [vmem:[#allocation4 + $0x3b0] sm:$0xff]
    %v343 = vld [vmem:[#allocation4 + $0x3b8] sm:$0xff]
    %v344 = vld [vmem:[#allocation4 + $0x3c0] sm:$0xff]
    %v345 = vld [vmem:[#allocation4 + $0x3c8] sm:$0xff]
    %v346 = vld [vmem:[#allocation4 + $0x3d0] sm:$0xff]
    %v347 = vld [vmem:[#allocation4 + $0x3d8] sm:$0xff]
    %v348 = vld [vmem:[#allocation4 + $0x3e0] sm:$0xff]
    %v349 = vld [vmem:[#allocation4 + $0x3e8] sm:$0xff]
    %v350 = vld [vmem:[#allocation4 + $0x3f0] sm:$0xff]
    %v351 = vld [vmem:[#allocation4 + $0x3f8] sm:$0xff]
    %v352 = vld [vmem:[#allocation4 + $0x400] sm:$0xff]
    %v353 = vld [vmem:[#allocation4 + $0x408] sm:$0xff]
    %v354 = vld [vmem:[#allocation4 + $0x410] sm:$0xff]
    %v355 = vld [vmem:[#allocation4 + $0x418] sm:$0xff]
    %v356 = vld [vmem:[#allocation4 + $0x420] sm:$0xff]
    %v357 = vld [vmem:[#allocation4 + $0x428] sm:$0xff]
    %v358 = vld [vmem:[#allocation4 + $0x430] sm:$0xff]
    %v359 = vld [vmem:[#allocation4 + $0x438] sm:$0xff]
    %v360 = vld [vmem:[#allocation4 + $0x440] sm:$0xff]
    %v361 = vld [vmem:[#allocation4 + $0x448] sm:$0xff]
    %v362 = vld [vmem:[#allocation4 + $0x450] sm:$0xff]
    %v363 = vld [vmem:[#allocation4 + $0x458] sm:$0xff]
    %v364 = vld [vmem:[#allocation4 + $0x460] sm:$0xff]
    %v365 = vld [vmem:[#allocation4 + $0x468] sm:$0xff]
    %v366 = vld [vmem:[#allocation4 + $0x470] sm:$0xff]
    %v367 = vld [vmem:[#allocation4 + $0x478] sm:$0xff]
    %v368 = vld [vmem:[#allocation4 + $0x480] sm:$0xff]
    %v369 = vld [vmem:[#allocation4 + $0x488] sm:$0xff]
    %v370 = vld [vmem:[#allocation4 + $0x490] sm:$0xff]
    %v371 = vld [vmem:[#allocation4 + $0x498] sm:$0xff]
    %v372 = vld [vmem:[#allocation4 + $0x4a0] sm:$0xff]
    %v373 = vld [vmem:[#allocation4 + $0x4a8] sm:$0xff]
    %v374 = vld [vmem:[#allocation4 + $0x4b0] sm:$0xff]
    %v375 = vld [vmem:[#allocation4 + $0x4b8] sm:$0xff]
    %v376 = vld [vmem:[#allocation4 + $0x4c0] sm:$0xff]
    %v377 = vld [vmem:[#allocation4 + $0x4c8] sm:$0xff]
    %v378 = vld [vmem:[#allocation4 + $0x4d0] sm:$0xff]
    %v379 = vld [vmem:[#allocation4 + $0x4d8] sm:$0xff]
    %v380 = vld [vmem:[#allocation4 + $0x4e0] sm:$0xff]
    %v381 = vld [vmem:[#allocation4 + $0x4e8] sm:$0xff]
    %v382 = vld [vmem:[#allocation4 + $0x4f0] sm:$0xff]
    %v383 = vld [vmem:[#allocation4 + $0x4f8] sm:$0xff]
    %v384 = vld [vmem:[#allocation4 + $0x500] sm:$0xff]
    %v385 = vld [vmem:[#allocation4 + $0x508] sm:$0xff]
    %v386 = vld [vmem:[#allocation4 + $0x510] sm:$0xff]
    %v387 = vld [vmem:[#allocation4 + $0x518] sm:$0xff]
    %v388 = vld [vmem:[#allocation4 + $0x520] sm:$0xff]
    %v389 = vld [vmem:[#allocation4 + $0x528] sm:$0xff]
    %v390 = vld [vmem:[#allocation4 + $0x530] sm:$0xff]
    %v391 = vld [vmem:[#allocation4 + $0x538] sm:$0xff]
    %v392 = vld [vmem:[#allocation4 + $0x540] sm:$0xff]
    %v393 = vld [vmem:[#allocation4 + $0x548] sm:$0xff]
    %v394 = vld [vmem:[#allocation4 + $0x550] sm:$0xff]
    %v395 = vld [vmem:[#allocation4 + $0x558] sm:$0xff]
    %v396 = vld [vmem:[#allocation4 + $0x560] sm:$0xff]
    %v397 = vld [vmem:[#allocation4 + $0x568] sm:$0xff]
    %v398 = vld [vmem:[#allocation4 + $0x570] sm:$0xff]
    %v399 = vld [vmem:[#allocation4 + $0x578] sm:$0xff]
    %v400 = vld [vmem:[#allocation4 + $0x580] sm:$0xff]
    %v401 = vld [vmem:[#allocation4 + $0x588] sm:$0xff]
    %v402 = vld [vmem:[#allocation4 + $0x590] sm:$0xff]
    %v403 = vld [vmem:[#allocation4 + $0x598] sm:$0xff]
    %v404 = vld [vmem:[#allocation4 + $0x5a0] sm:$0xff]
    %v405 = vld [vmem:[#allocation4 + $0x5a8] sm:$0xff]
    %v406 = vld [vmem:[#allocation4 + $0x5b0] sm:$0xff]
    %v407 = vld [vmem:[#allocation4 + $0x5b8] sm:$0xff]
    %v408 = vld [vmem:[#allocation4 + $0x5c0] sm:$0xff]
    %v409 = vld [vmem:[#allocation4 + $0x5c8] sm:$0xff]
    %v410 = vld [vmem:[#allocation4 + $0x5d0] sm:$0xff]
    %v411 = vld [vmem:[#allocation4 + $0x5d8] sm:$0xff]
    %v412 = vld [vmem:[#allocation4 + $0x5e0] sm:$0xff]
    %v413 = vld [vmem:[#allocation4 + $0x5e8] sm:$0xff]
    %v414 = vld [vmem:[#allocation4 + $0x5f0] sm:$0xff]
    %v415 = vld [vmem:[#allocation4 + $0x5f8] sm:$0xff]
    %v416 = vld [vmem:[#allocation4 + $0x600] sm:$0xff]
    %v417 = vld [vmem:[#allocation4 + $0x608] sm:$0xff]
    %v418 = vld [vmem:[#allocation4 + $0x610] sm:$0xff]
    %v419 = vld [vmem:[#allocation4 + $0x618] sm:$0xff]
    %v420 = vld [vmem:[#allocation4 + $0x620] sm:$0xff]
    %v421 = vld [vmem:[#allocation4 + $0x628] sm:$0xff]
    %v422 = vld [vmem:[#allocation4 + $0x630] sm:$0xff]
    %v423 = vld [vmem:[#allocation4 + $0x638] sm:$0xff]
    %v424 = vld [vmem:[#allocation4 + $0x640] sm:$0xff]
    %v425 = vld [vmem:[#allocation4 + $0x648] sm:$0xff]
    %v426 = vld [vmem:[#allocation4 + $0x650] sm:$0xff]
    %v427 = vld [vmem:[#allocation4 + $0x658] sm:$0xff]
    %v428 = vld [vmem:[#allocation4 + $0x660] sm:$0xff]
    %v429 = vld [vmem:[#allocation4 + $0x668] sm:$0xff]
    %v430 = vld [vmem:[#allocation4 + $0x670] sm:$0xff]
    %v431 = vld [vmem:[#allocation4 + $0x678] sm:$0xff]
    %v432 = vld [vmem:[#allocation4 + $0x680] sm:$0xff]
    %v433 = vld [vmem:[#allocation4 + $0x688] sm:$0xff]
    %v434 = vld [vmem:[#allocation4 + $0x690] sm:$0xff]
    %v435 = vld [vmem:[#allocation4 + $0x698] sm:$0xff]
    %v436 = vld [vmem:[#allocation4 + $0x6a0] sm:$0xff]
    %v437 = vld [vmem:[#allocation4 + $0x6a8] sm:$0xff]
    %v438 = vld [vmem:[#allocation4 + $0x6b0] sm:$0xff]
    %v439 = vld [vmem:[#allocation4 + $0x6b8] sm:$0xff]
    %v440 = vld [vmem:[#allocation4 + $0x6c0] sm:$0xff]
    %v441 = vld [vmem:[#allocation4 + $0x6c8] sm:$0xff]
    %v442 = vld [vmem:[#allocation4 + $0x6d0] sm:$0xff]
    %v443 = vld [vmem:[#allocation4 + $0x6d8] sm:$0xff]
    %v444 = vld [vmem:[#allocation4 + $0x6e0] sm:$0xff]
    %v445 = vld [vmem:[#allocation4 + $0x6e8] sm:$0xff]
    %v446 = vld [vmem:[#allocation4 + $0x6f0] sm:$0xff]
    %v447 = vld [vmem:[#allocation4 + $0x6f8] sm:$0xff]
    %v448 = vld [vmem:[#allocation4 + $0x700] sm:$0xff]
    %v449 = vld [vmem:[#allocation4 + $0x708] sm:$0xff]
    %v450 = vld [vmem:[#allocation4 + $0x710] sm:$0xff]
    %v451 = vld [vmem:[#allocation4 + $0x718] sm:$0xff]
    %v452 = vld [vmem:[#allocation4 + $0x720] sm:$0xff]
    %v453 = vld [vmem:[#allocation4 + $0x728] sm:$0xff]
    %v454 = vld [vmem:[#allocation4 + $0x730] sm:$0xff]
    %v455 = vld [vmem:[#allocation4 + $0x738] sm:$0xff]
    %v456 = vld [vmem:[#allocation4 + $0x740] sm:$0xff]
    %v457 = vld [vmem:[#allocation4 + $0x748] sm:$0xff]
    %v458 = vld [vmem:[#allocation4 + $0x750] sm:$0xff]
    %v459 = vld [vmem:[#allocation4 + $0x758] sm:$0xff]
    %v460 = vld [vmem:[#allocation4 + $0x760] sm:$0xff]
    %v461 = vld [vmem:[#allocation4 + $0x768] sm:$0xff]
    %v462 = vld [vmem:[#allocation4 + $0x770] sm:$0xff]
    %v463 = vld [vmem:[#allocation4 + $0x778] sm:$0xff]
    %v464 = vld [vmem:[#allocation4 + $0x780] sm:$0xff]
    %v465 = vld [vmem:[#allocation4 + $0x788] sm:$0xff]
    %v466 = vld [vmem:[#allocation4 + $0x790] sm:$0xff]
    %v467 = vld [vmem:[#allocation4 + $0x798] sm:$0xff]
    %v468 = vld [vmem:[#allocation4 + $0x7a0] sm:$0xff]
    %v469 = vld [vmem:[#allocation4 + $0x7a8] sm:$0xff]
    %v470 = vld [vmem:[#allocation4 + $0x7b0] sm:$0xff]
    %v471 = vld [vmem:[#allocation4 + $0x7b8] sm:$0xff]
    %v472 = vld [vmem:[#allocation4 + $0x7c0] sm:$0xff]
    %v473 = vld [vmem:[#allocation4 + $0x7c8] sm:$0xff]
    %v474 = vld [vmem:[#allocation4 + $0x7d0] sm:$0xff]
    %v475 = vld [vmem:[#allocation4 + $0x7d8] sm:$0xff]
    %v476 = vld [vmem:[#allocation4 + $0x7e0] sm:$0xff]
    %v477 = vld [vmem:[#allocation4 + $0x7e8] sm:$0xff]
    %v478 = vld [vmem:[#allocation4 + $0x7f0] sm:$0xff]
    %v479 = vld [vmem:[#allocation4 + $0x7f8] sm:$0xff]
    %v480 = vld [vmem:[#allocation4 + $0x800] sm:$0xff]
    %v481 = vld [vmem:[#allocation4 + $0x808] sm:$0xff]
    %v482 = vld [vmem:[#allocation4 + $0x810] sm:$0xff]
    %v483 = vld [vmem:[#allocation4 + $0x818] sm:$0xff]
    %v484 = vld [vmem:[#allocation4 + $0x820] sm:$0xff]
    %v485 = vld [vmem:[#allocation4 + $0x828] sm:$0xff]
    %v486 = vld [vmem:[#allocation4 + $0x830] sm:$0xff]
    %v487 = vld [vmem:[#allocation4 + $0x838] sm:$0xff]
    %v488 = vld [vmem:[#allocation4 + $0x840] sm:$0xff]
    %v489 = vld [vmem:[#allocation4 + $0x848] sm:$0xff]
    %v490 = vld [vmem:[#allocation4 + $0x850] sm:$0xff]
    %v491 = vld [vmem:[#allocation4 + $0x858] sm:$0xff]
    %v492 = vld [vmem:[#allocation4 + $0x860] sm:$0xff]
    %v493 = vld [vmem:[#allocation4 + $0x868] sm:$0xff]
    %v494 = vld [vmem:[#allocation4 + $0x870] sm:$0xff]
    %v495 = vld [vmem:[#allocation4 + $0x878] sm:$0xff]
    %v496 = vld [vmem:[#allocation4 + $0x880] sm:$0xff]
    %v497 = vld [vmem:[#allocation4 + $0x888] sm:$0xff]
    %v498 = vld [vmem:[#allocation4 + $0x890] sm:$0xff]
    %v499 = vld [vmem:[#allocation4 + $0x898] sm:$0xff]
    %v500 = vld [vmem:[#allocation4 + $0x8a0] sm:$0xff]
    %v501 = vld [vmem:[#allocation4 + $0x8a8] sm:$0xff]
    %v502 = vld [vmem:[#allocation4 + $0x8b0] sm:$0xff]
    %v503 = vld [vmem:[#allocation4 + $0x8b8] sm:$0xff]
    %v504 = vld [vmem:[#allocation4 + $0x8c0] sm:$0xff]
    %v505 = vld [vmem:[#allocation4 + $0x8c8] sm:$0xff]
    %v506 = vld [vmem:[#allocation4 + $0x8d0] sm:$0xff]
    %v507 = vld [vmem:[#allocation4 + $0x8d8] sm:$0xff]
    %v508 = vld [vmem:[#allocation4 + $0x8e0] sm:$0xff]
    %v509 = vld [vmem:[#allocation4 + $0x8e8] sm:$0xff]
    %v510 = vld [vmem:[#allocation4 + $0x8f0] sm:$0xff]
    %v511 = vld [vmem:[#allocation4 + $0x8f8] sm:$0xff]
    %v512 = vld [vmem:[#allocation4 + $0x900] sm:$0xff]
    %v513 = vld [vmem:[#allocation4 + $0x908] sm:$0xff]
    %v514 = vld [vmem:[#allocation4 + $0x910] sm:$0xff]
    %v515 = vld [vmem:[#allocation4 + $0x918] sm:$0xff]
    %v516 = vld [vmem:[#allocation4 + $0x920] sm:$0xff]
    %v517 = vld [vmem:[#allocation4 + $0x928] sm:$0xff]
    %v518 = vld [vmem:[#allocation4 + $0x930] sm:$0xff]
    %v519 = vld [vmem:[#allocation4 + $0x938] sm:$0xff]
    %v520 = vld [vmem:[#allocation4 + $0x940] sm:$0xff]
    %v521 = vld [vmem:[#allocation4 + $0x948] sm:$0xff]
    %v522 = vld [vmem:[#allocation4 + $0x950] sm:$0xff]
    %v523 = vld [vmem:[#allocation4 + $0x958] sm:$0xff]
    %v524 = vld [vmem:[#allocation4 + $0x960] sm:$0xff]
    %v525 = vld [vmem:[#allocation4 + $0x968] sm:$0xff]
    %v526 = vld [vmem:[#allocation4 + $0x970] sm:$0xff]
    %v527 = vld [vmem:[#allocation4 + $0x978] sm:$0xff]
    %v528 = vld [vmem:[#allocation4 + $0x980] sm:$0xff]
    %v529 = vld [vmem:[#allocation4 + $0x988] sm:$0xff]
    %v530 = vld [vmem:[#allocation4 + $0x990] sm:$0xff]
    %v531 = vld [vmem:[#allocation4 + $0x998] sm:$0xff]
    %v532 = vld [vmem:[#allocation4 + $0x9a0] sm:$0xff]
    %v533 = vld [vmem:[#allocation4 + $0x9a8] sm:$0xff]
    %v534 = vld [vmem:[#allocation4 + $0x9b0] sm:$0xff]
    %v535 = vld [vmem:[#allocation4 + $0x9b8] sm:$0xff]
    %v536 = vld [vmem:[#allocation4 + $0x9c0] sm:$0xff]
    %v537 = vld [vmem:[#allocation4 + $0x9c8] sm:$0xff]
    %v538 = vld [vmem:[#allocation4 + $0x9d0] sm:$0xff]
    %v539 = vld [vmem:[#allocation4 + $0x9d8] sm:$0xff]
    %v540 = vld [vmem:[#allocation4 + $0x9e0] sm:$0xff]
    %v541 = vld [vmem:[#allocation4 + $0x9e8] sm:$0xff]
    %v542 = vld [vmem:[#allocation4 + $0x9f0] sm:$0xff]
    %v543 = vld [vmem:[#allocation4 + $0x9f8] sm:$0xff]
    %v544 = vld [vmem:[#allocation4 + $0xa00] sm:$0xff]
    %v545 = vld [vmem:[#allocation4 + $0xa08] sm:$0xff]
    %v546 = vld [vmem:[#allocation4 + $0xa10] sm:$0xff]
    %v547 = vld [vmem:[#allocation4 + $0xa18] sm:$0xff]
    %v548 = vld [vmem:[#allocation4 + $0xa20] sm:$0xff]
    %v549 = vld [vmem:[#allocation4 + $0xa28] sm:$0xff]
    %v550 = vld [vmem:[#allocation4 + $0xa30] sm:$0xff]
    %v551 = vld [vmem:[#allocation4 + $0xa38] sm:$0xff]
    %v552 = vld [vmem:[#allocation4 + $0xa40] sm:$0xff]
    %v553 = vld [vmem:[#allocation4 + $0xa48] sm:$0xff]
    %v554 = vld [vmem:[#allocation4 + $0xa50] sm:$0xff]
    %v555 = vld [vmem:[#allocation4 + $0xa58] sm:$0xff]
    %v556 = vld [vmem:[#allocation4 + $0xa60] sm:$0xff]
    %v557 = vld [vmem:[#allocation4 + $0xa68] sm:$0xff]
    %v558 = vld [vmem:[#allocation4 + $0xa70] sm:$0xff]
    %v559 = vld [vmem:[#allocation4 + $0xa78] sm:$0xff]
    %v560 = vld [vmem:[#allocation4 + $0xa80] sm:$0xff]
    %v561 = vld [vmem:[#allocation4 + $0xa88] sm:$0xff]
    %v562 = vld [vmem:[#allocation4 + $0xa90] sm:$0xff]
    %v563 = vld [vmem:[#allocation4 + $0xa98] sm:$0xff]
    %v564 = vld [vmem:[#allocation4 + $0xaa0] sm:$0xff]
    %v565 = vld [vmem:[#allocation4 + $0xaa8] sm:$0xff]
    %v566 = vld [vmem:[#allocation4 + $0xab0] sm:$0xff]
    %v567 = vld [vmem:[#allocation4 + $0xab8] sm:$0xff]
    %v568 = vld [vmem:[#allocation4 + $0xac0] sm:$0xff]
    %v569 = vld [vmem:[#allocation4 + $0xac8] sm:$0xff]
    %v570 = vld [vmem:[#allocation4 + $0xad0] sm:$0xff]
    %v571 = vld [vmem:[#allocation4 + $0xad8] sm:$0xff]
    %v572 = vld [vmem:[#allocation4 + $0xae0] sm:$0xff]
    %v573 = vld [vmem:[#allocation4 + $0xae8] sm:$0xff]
    %v574 = vld [vmem:[#allocation4 + $0xaf0] sm:$0xff]
    %v575 = vld [vmem:[#allocation4 + $0xaf8] sm:$0xff]
    %v576 = vld [vmem:[#allocation4 + $0xb00] sm:$0xff]
    %v577 = vld [vmem:[#allocation4 + $0xb08] sm:$0xff]
    %v578 = vld [vmem:[#allocation4 + $0xb10] sm:$0xff]
    %v579 = vld [vmem:[#allocation4 + $0xb18] sm:$0xff]
    %v580 = vld [vmem:[#allocation4 + $0xb20] sm:$0xff]
    %v581 = vld [vmem:[#allocation4 + $0xb28] sm:$0xff]
    %v582 = vld [vmem:[#allocation4 + $0xb30] sm:$0xff]
    %v583 = vld [vmem:[#allocation4 + $0xb38] sm:$0xff]
    %v584 = vld [vmem:[#allocation4 + $0xb40] sm:$0xff]
    %v585 = vld [vmem:[#allocation4 + $0xb48] sm:$0xff]
    %v586 = vld [vmem:[#allocation4 + $0xb50] sm:$0xff]
    %v587 = vld [vmem:[#allocation4 + $0xb58] sm:$0xff]
    %v588 = vld [vmem:[#allocation4 + $0xb60] sm:$0xff]
    %v589 = vld [vmem:[#allocation4 + $0xb68] sm:$0xff]
    %v590 = vld [vmem:[#allocation4 + $0xb70] sm:$0xff]
    %v591 = vld [vmem:[#allocation4 + $0xb78] sm:$0xff]
    %v592 = vld [vmem:[#allocation4 + $0xb80] sm:$0xff]
    %v593 = vld [vmem:[#allocation4 + $0xb88] sm:$0xff]
    %v594 = vld [vmem:[#allocation4 + $0xb90] sm:$0xff]
    %v595 = vld [vmem:[#allocation4 + $0xb98] sm:$0xff]
    %v596 = vld [vmem:[#allocation4 + $0xba0] sm:$0xff]
    %v597 = vld [vmem:[#allocation4 + $0xba8] sm:$0xff]
    %v598 = vld [vmem:[#allocation4 + $0xbb0] sm:$0xff]
    %v599 = vld [vmem:[#allocation4 + $0xbb8] sm:$0xff]
    %v600 = vld [vmem:[#allocation4 + $0xbc0] sm:$0xff]
    %v601 = vld [vmem:[#allocation4 + $0xbc8] sm:$0xff]
    %v602 = vld [vmem:[#allocation4 + $0xbd0] sm:$0xff]
    %v603 = vld [vmem:[#allocation4 + $0xbd8] sm:$0xff]
    %v604 = vld [vmem:[#allocation4 + $0xbe0] sm:$0xff]
    %v605 = vld [vmem:[#allocation4 + $0xbe8] sm:$0xff]
    %v606 = vld [vmem:[#allocation4 + $0xbf0] sm:$0xff]
    %v607 = vld [vmem:[#allocation4 + $0xbf8] sm:$0xff]
    %v608 = vld [vmem:[#allocation4 + $0xc00] sm:$0xff]
    %v609 = vld [vmem:[#allocation4 + $0xc08] sm:$0xff]
    %v610 = vld [vmem:[#allocation4 + $0xc10] sm:$0xff]
    %v611 = vld [vmem:[#allocation4 + $0xc18] sm:$0xff]
    %v612 = vld [vmem:[#allocation4 + $0xc20] sm:$0xff]
    %v613 = vld [vmem:[#allocation4 + $0xc28] sm:$0xff]
    %v614 = vld [vmem:[#allocation4 + $0xc30] sm:$0xff]
    %v615 = vld [vmem:[#allocation4 + $0xc38] sm:$0xff]
    %v616 = vld [vmem:[#allocation4 + $0xc40] sm:$0xff]
    %v617 = vld [vmem:[#allocation4 + $0xc48] sm:$0xff]
    %v618 = vld [vmem:[#allocation4 + $0xc50] sm:$0xff]
    %v619 = vld [vmem:[#allocation4 + $0xc58] sm:$0xff]
    %v620 = vld [vmem:[#allocation4 + $0xc60] sm:$0xff]
    %v621 = vld [vmem:[#allocation4 + $0xc68] sm:$0xff]
    %v622 = vld [vmem:[#allocation4 + $0xc70] sm:$0xff]
    %v623 = vld [vmem:[#allocation4 + $0xc78] sm:$0xff]
    %v624 = vld [vmem:[#allocation4 + $0xc80] sm:$0xff]
    %v625 = vld [vmem:[#allocation4 + $0xc88] sm:$0xff]
    %v626 = vld [vmem:[#allocation4 + $0xc90] sm:$0xff]
    %v627 = vld [vmem:[#allocation4 + $0xc98] sm:$0xff]
    %v628 = vld [vmem:[#allocation4 + $0xca0] sm:$0xff]
    %v629 = vld [vmem:[#allocation4 + $0xca8] sm:$0xff]
    %v630 = vld [vmem:[#allocation4 + $0xcb0] sm:$0xff]
    %v631 = vld [vmem:[#allocation4 + $0xcb8] sm:$0xff]
    %v632 = vld [vmem:[#allocation4 + $0xcc0] sm:$0xff]
    %v633 = vld [vmem:[#allocation4 + $0xcc8] sm:$0xff]
    %v634 = vld [vmem:[#allocation4 + $0xcd0] sm:$0xff]
    %v635 = vld [vmem:[#allocation4 + $0xcd8] sm:$0xff]
    %v636 = vld [vmem:[#allocation4 + $0xce0] sm:$0xff]
    %v637 = vld [vmem:[#allocation4 + $0xce8] sm:$0xff]
    %v638 = vld [vmem:[#allocation4 + $0xcf0] sm:$0xff]
    %v639 = vld [vmem:[#allocation4 + $0xcf8] sm:$0xff]
    %v640 = vld [vmem:[#allocation4 + $0xd00] sm:$0xff]
    %v641 = vld [vmem:[#allocation4 + $0xd08] sm:$0xff]
    %v642 = vld [vmem:[#allocation4 + $0xd10] sm:$0xff]
    %v643 = vld [vmem:[#allocation4 + $0xd18] sm:$0xff]
    %v644 = vld [vmem:[#allocation4 + $0xd20] sm:$0xff]
    %v645 = vld [vmem:[#allocation4 + $0xd28] sm:$0xff]
    %v646 = vld [vmem:[#allocation4 + $0xd30] sm:$0xff]
    %v647 = vld [vmem:[#allocation4 + $0xd38] sm:$0xff]
    %v648 = vld [vmem:[#allocation4 + $0xd40] sm:$0xff]
    %v649 = vld [vmem:[#allocation4 + $0xd48] sm:$0xff]
    %v650 = vld [vmem:[#allocation4 + $0xd50] sm:$0xff]
    %v651 = vld [vmem:[#allocation4 + $0xd58] sm:$0xff]
    %v652 = vld [vmem:[#allocation4 + $0xd60] sm:$0xff]
    %v653 = vld [vmem:[#allocation4 + $0xd68] sm:$0xff]
    %v654 = vld [vmem:[#allocation4 + $0xd70] sm:$0xff]
    %v655 = vld [vmem:[#allocation4 + $0xd78] sm:$0xff]
    %v656 = vld [vmem:[#allocation4 + $0xd80] sm:$0xff]
    %v657 = vld [vmem:[#allocation4 + $0xd88] sm:$0xff]
    %v658 = vld [vmem:[#allocation4 + $0xd90] sm:$0xff]
    %v659 = vld [vmem:[#allocation4 + $0xd98] sm:$0xff]
    %v660 = vld [vmem:[#allocation4 + $0xda0] sm:$0xff]
    %v661 = vld [vmem:[#allocation4 + $0xda8] sm:$0xff]
    %v662 = vld [vmem:[#allocation4 + $0xdb0] sm:$0xff]
    %v663 = vld [vmem:[#allocation4 + $0xdb8] sm:$0xff]
    %v664 = vld [vmem:[#allocation4 + $0xdc0] sm:$0xff]
    %v665 = vld [vmem:[#allocation4 + $0xdc8] sm:$0xff]
    %v666 = vld [vmem:[#allocation4 + $0xdd0] sm:$0xff]
    %v667 = vld [vmem:[#allocation4 + $0xdd8] sm:$0xff]
    %v668 = vld [vmem:[#allocation4 + $0xde0] sm:$0xff]
    %v669 = vld [vmem:[#allocation4 + $0xde8] sm:$0xff]
    %v670 = vld [vmem:[#allocation4 + $0xdf0] sm:$0xff]
    %v671 = vld [vmem:[#allocation4 + $0xdf8] sm:$0xff]
    %v672 = vld [vmem:[#allocation4 + $0xe00] sm:$0xff]
    %v673 = vld [vmem:[#allocation4 + $0xe08] sm:$0xff]
    %v674 = vld [vmem:[#allocation4 + $0xe10] sm:$0xff]
    %v675 = vld [vmem:[#allocation4 + $0xe18] sm:$0xff]
    %v676 = vld [vmem:[#allocation4 + $0xe20] sm:$0xff]
    %v677 = vld [vmem:[#allocation4 + $0xe28] sm:$0xff]
    %v678 = vld [vmem:[#allocation4 + $0xe30] sm:$0xff]
    %v679 = vld [vmem:[#allocation4 + $0xe38] sm:$0xff]
    %v680 = vld [vmem:[#allocation4 + $0xe40] sm:$0xff]
    %v681 = vld [vmem:[#allocation4 + $0xe48] sm:$0xff]
    %v682 = vld [vmem:[#allocation4 + $0xe50] sm:$0xff]
    %v683 = vld [vmem:[#allocation4 + $0xe58] sm:$0xff]
    %v684 = vld [vmem:[#allocation4 + $0xe60] sm:$0xff]
    %v685 = vld [vmem:[#allocation4 + $0xe68] sm:$0xff]
    %v686 = vld [vmem:[#allocation4 + $0xe70] sm:$0xff]
    %v687 = vld [vmem:[#allocation4 + $0xe78] sm:$0xff]
    %v688 = vld [vmem:[#allocation4 + $0xe80] sm:$0xff]
    %v689 = vld [vmem:[#allocation4 + $0xe88] sm:$0xff]
    %v690 = vld [vmem:[#allocation4 + $0xe90] sm:$0xff]
    %v691 = vld [vmem:[#allocation4 + $0xe98] sm:$0xff]
    %v692 = vld [vmem:[#allocation4 + $0xea0] sm:$0xff]
    %v693 = vld [vmem:[#allocation4 + $0xea8] sm:$0xff]
    %v694 = vld [vmem:[#allocation4 + $0xeb0] sm:$0xff]
    %v695 = vld [vmem:[#allocation4 + $0xeb8] sm:$0xff]
    %v696 = vld [vmem:[#allocation4 + $0xec0] sm:$0xff]
    %v697 = vld [vmem:[#allocation4 + $0xec8] sm:$0xff]
    %v698 = vld [vmem:[#allocation4 + $0xed0] sm:$0xff]
    %v699 = vld [vmem:[#allocation4 + $0xed8] sm:$0xff]
    %v700 = vld [vmem:[#allocation4 + $0xee0] sm:$0xff]
    %v701 = vld [vmem:[#allocation4 + $0xee8] sm:$0xff]
    %v702 = vld [vmem:[#allocation4 + $0xef0] sm:$0xff]
    %v703 = vld [vmem:[#allocation4 + $0xef8] sm:$0xff]
    %v704 = vld [vmem:[#allocation4 + $0xf00] sm:$0xff]
    %v705 = vld [vmem:[#allocation4 + $0xf08] sm:$0xff]
    %v706 = vld [vmem:[#allocation4 + $0xf10] sm:$0xff]
    %v707 = vld [vmem:[#allocation4 + $0xf18] sm:$0xff]
    %v708 = vld [vmem:[#allocation4 + $0xf20] sm:$0xff]
    %v709 = vld [vmem:[#allocation4 + $0xf28] sm:$0xff]
    %v710 = vld [vmem:[#allocation4 + $0xf30] sm:$0xff]
    %v711 = vld [vmem:[#allocation4 + $0xf38] sm:$0xff]
    %v712 = vld [vmem:[#allocation4 + $0xf40] sm:$0xff]
    %v713 = vld [vmem:[#allocation4 + $0xf48] sm:$0xff]
    %v714 = vld [vmem:[#allocation4 + $0xf50] sm:$0xff]
    %v715 = vld [vmem:[#allocation4 + $0xf58] sm:$0xff]
    %v716 = vld [vmem:[#allocation4 + $0xf60] sm:$0xff]
    %v717 = vld [vmem:[#allocation4 + $0xf68] sm:$0xff]
    %v718 = vld [vmem:[#allocation4 + $0xf70] sm:$0xff]
    %v719 = vld [vmem:[#allocation4 + $0xf78] sm:$0xff]
    %v720 = vld [vmem:[#allocation4 + $0xf80] sm:$0xff]
    %v721 = vld [vmem:[#allocation4 + $0xf88] sm:$0xff]
    %v722 = vld [vmem:[#allocation4 + $0xf90] sm:$0xff]
    %v723 = vld [vmem:[#allocation4 + $0xf98] sm:$0xff]
    %v724 = vld [vmem:[#allocation4 + $0xfa0] sm:$0xff]
    %v725 = vld [vmem:[#allocation4 + $0xfa8] sm:$0xff]
    %v726 = vld [vmem:[#allocation4 + $0xfb0] sm:$0xff]
    %v727 = vld [vmem:[#allocation4 + $0xfb8] sm:$0xff]
    %v728 = vld [vmem:[#allocation4 + $0xfc0] sm:$0xff]
    %v729 = vld [vmem:[#allocation4 + $0xfc8] sm:$0xff]
    %v730 = vld [vmem:[#allocation4 + $0xfd0] sm:$0xff]
    %v731 = vld [vmem:[#allocation4 + $0xfd8] sm:$0xff]
    %v732 = vld [vmem:[#allocation4 + $0xfe0] sm:$0xff]
    %v733 = vld [vmem:[#allocation4 + $0xfe8] sm:$0xff]
    %v734 = vld [vmem:[#allocation4 + $0xff0] sm:$0xff]
    %v735 = vld [vmem:[#allocation4 + $0xff8] sm:$0xff]
    %v736 = vld [vmem:[#allocation6] sm:$0xf]
    %v738 = vperm.slane %v736, 0
    %v739 = vperm.slane %v736, 1
    %v740 = vperm.slane %v736, 2
    %v741 = vperm.slane %v736, 3
    %748 = vst [vmem:[#allocation1] ss:$4 sm:$0xff] %v222
    %s749 = scalar_lea.vmem [#allocation1], 32
    %750 = vst [vmem:[%s749] ss:$4 sm:$0xff] %v223
    %v751 = vld.sshfl [vmem:[#allocation1] sm:$0xff pattern:$0x73625140]
    %v752 = vld.sshfl [vmem:[#allocation1 + $0x8] sm:$0xff pattern:$0x73625140]
    %v753 = vld.sshfl [vmem:[#allocation1 + $0x10] sm:$0xff pattern:$0x73625140]
    %v754 = vld.sshfl [vmem:[#allocation1 + $0x18] sm:$0xff pattern:$0x73625140]
    %v755 = vld.sshfl [vmem:[#allocation1 + $0x20] sm:$0xff pattern:$0x73625140]
    %v756 = vld.sshfl [vmem:[#allocation1 + $0x28] sm:$0xff pattern:$0x73625140]
    %v757 = vld.sshfl [vmem:[#allocation1 + $0x30] sm:$0xff pattern:$0x73625140]
    %v758 = vld.sshfl [vmem:[#allocation1 + $0x38] sm:$0xff pattern:$0x73625140]
    %767 = vmatpush.msra.mxu0 %v284
    %768 = vmatpush.msra.mxu0 %v280
    %769 = vmatpush.msra.mxu0 %v276
    %770 = vmatpush.msra.mxu0 %v272
    %771 = vmatpush.msra.mxu0 %v268
    %772 = vmatpush.msra.mxu0 %v264
    %773 = vmatpush.msra.mxu0 %v260
    %774 = vmatpush.msra.mxu0 %v256
    %775 = vmatpush.msra.mxu0 %v252
    %776 = vmatpush.msra.mxu0 %v248
    %777 = vmatpush.msra.mxu0 %v244
    %778 = vmatpush.msra.mxu0 %v240
    %779 = vmatpush.msra.mxu0 %v236
    %780 = vmatpush.msra.mxu0 %v232
    %781 = vmatpush.msra.mxu0 %v228
    %782 = vmatpush.msra.mxu0 %v224
    %783 = vmatmul.f32.gmra.mxu0 %v751
    %v784 = vpop.f32.mrf.mxu0
    %v785 = vadd.f32 %v738, %v784
    %786 = vdwg.mxu0
    %787 = vmatpush.msra.mxu0 %v348
    %788 = vmatpush.msra.mxu0 %v344
    %789 = vmatpush.msra.mxu0 %v340
    %790 = vmatpush.msra.mxu0 %v336
    %791 = vmatpush.msra.mxu0 %v332
    %792 = vmatpush.msra.mxu0 %v328
    %793 = vmatpush.msra.mxu0 %v324
    %794 = vmatpush.msra.mxu0 %v320
    %795 = vmatpush.msra.mxu0 %v316
    %796 = vmatpush.msra.mxu0 %v312
    %797 = vmatpush.msra.mxu0 %v308
    %798 = vmatpush.msra.mxu0 %v304
    %799 = vmatpush.msra.mxu0 %v300
    %800 = vmatpush.msra.mxu0 %v296
    %801 = vmatpush.msra.mxu0 %v292
    %802 = vmatpush.msra.mxu0 %v288
    %803 = vmatmul.f32.gmra.mxu0 %v752
    %v804 = vpop.f32.mrf.mxu0
    %v805 = vadd.f32 %v785, %v804
    %806 = vdwg.mxu0
    %807 = vmatpush.msra.mxu0 %v412
    %808 = vmatpush.msra.mxu0 %v408
    %809 = vmatpush.msra.mxu0 %v404
    %810 = vmatpush.msra.mxu0 %v400
    %811 = vmatpush.msra.mxu0 %v396
    %812 = vmatpush.msra.mxu0 %v392
    %813 = vmatpush.msra.mxu0 %v388
    %814 = vmatpush.msra.mxu0 %v384
    %815 = vmatpush.msra.mxu0 %v380
    %816 = vmatpush.msra.mxu0 %v376
    %817 = vmatpush.msra.mxu0 %v372
    %818 = vmatpush.msra.mxu0 %v368
    %819 = vmatpush.msra.mxu0 %v364
    %820 = vmatpush.msra.mxu0 %v360
    %821 = vmatpush.msra.mxu0 %v356
    %822 = vmatpush.msra.mxu0 %v352
    %823 = vmatmul.f32.gmra.mxu0 %v753
    %v824 = vpop.f32.mrf.mxu0
    %v825 = vadd.f32 %v805, %v824
    %826 = vdwg.mxu0
    %827 = vmatpush.msra.mxu0 %v476
    %828 = vmatpush.msra.mxu0 %v472
    %829 = vmatpush.msra.mxu0 %v468
    %830 = vmatpush.msra.mxu0 %v464
    %831 = vmatpush.msra.mxu0 %v460
    %832 = vmatpush.msra.mxu0 %v456
    %833 = vmatpush.msra.mxu0 %v452
    %834 = vmatpush.msra.mxu0 %v448
    %835 = vmatpush.msra.mxu0 %v444
    %836 = vmatpush.msra.mxu0 %v440
    %837 = vmatpush.msra.mxu0 %v436
    %838 = vmatpush.msra.mxu0 %v432
    %839 = vmatpush.msra.mxu0 %v428
    %840 = vmatpush.msra.mxu0 %v424
    %841 = vmatpush.msra.mxu0 %v420
    %842 = vmatpush.msra.mxu0 %v416
    %843 = vmatmul.f32.gmra.mxu0 %v754
    %v844 = vpop.f32.mrf.mxu0
    %v845 = vadd.f32 %v825, %v844
    %846 = vdwg.mxu0
    %847 = vmatpush.msra.mxu0 %v540
    %848 = vmatpush.msra.mxu0 %v536
    %849 = vmatpush.msra.mxu0 %v532
    %850 = vmatpush.msra.mxu0 %v528
    %851 = vmatpush.msra.mxu0 %v524
    %852 = vmatpush.msra.mxu0 %v520
    %853 = vmatpush.msra.mxu0 %v516
    %854 = vmatpush.msra.mxu0 %v512
    %855 = vmatpush.msra.mxu0 %v508
    %856 = vmatpush.msra.mxu0 %v504
    %857 = vmatpush.msra.mxu0 %v500
    %858 = vmatpush.msra.mxu0 %v496
    %859 = vmatpush.msra.mxu0 %v492
    %860 = vmatpush.msra.mxu0 %v488
    %861 = vmatpush.msra.mxu0 %v484
    %862 = vmatpush.msra.mxu0 %v480
    %863 = vmatmul.f32.gmra.mxu0 %v755
    %v864 = vpop.f32.mrf.mxu0
    %v865 = vadd.f32 %v845, %v864
    %866 = vdwg.mxu0
    %867 = vmatpush.msra.mxu0 %v604
    %868 = vmatpush.msra.mxu0 %v600
    %869 = vmatpush.msra.mxu0 %v596
    %870 = vmatpush.msra.mxu0 %v592
    %871 = vmatpush.msra.mxu0 %v588
    %872 = vmatpush.msra.mxu0 %v584
    %873 = vmatpush.msra.mxu0 %v580
    %874 = vmatpush.msra.mxu0 %v576
    %875 = vmatpush.msra.mxu0 %v572
    %876 = vmatpush.msra.mxu0 %v568
    %877 = vmatpush.msra.mxu0 %v564
    %878 = vmatpush.msra.mxu0 %v560
    %879 = vmatpush.msra.mxu0 %v556
    %880 = vmatpush.msra.mxu0 %v552
    %881 = vmatpush.msra.mxu0 %v548
    %882 = vmatpush.msra.mxu0 %v544
    %883 = vmatmul.f32.gmra.mxu0 %v756
    %v884 = vpop.f32.mrf.mxu0
    %v885 = vadd.f32 %v865, %v884
    %886 = vdwg.mxu0
    %887 = vmatpush.msra.mxu0 %v668
    %888 = vmatpush.msra.mxu0 %v664
    %889 = vmatpush.msra.mxu0 %v660
    %890 = vmatpush.msra.mxu0 %v656
    %891 = vmatpush.msra.mxu0 %v652
    %892 = vmatpush.msra.mxu0 %v648
    %893 = vmatpush.msra.mxu0 %v644
    %894 = vmatpush.msra.mxu0 %v640
    %895 = vmatpush.msra.mxu0 %v636
    %896 = vmatpush.msra.mxu0 %v632
    %897 = vmatpush.msra.mxu0 %v628
    %898 = vmatpush.msra.mxu0 %v624
    %899 = vmatpush.msra.mxu0 %v620
    %900 = vmatpush.msra.mxu0 %v616
    %901 = vmatpush.msra.mxu0 %v612
    %902 = vmatpush.msra.mxu0 %v608
    %903 = vmatmul.f32.gmra.mxu0 %v757
    %v904 = vpop.f32.mrf.mxu0
    %v905 = vadd.f32 %v885, %v904
    %906 = vdwg.mxu0
    %907 = vmatpush.msra.mxu0 %v732
    %908 = vmatpush.msra.mxu0 %v728
    %909 = vmatpush.msra.mxu0 %v724
    %910 = vmatpush.msra.mxu0 %v720
    %911 = vmatpush.msra.mxu0 %v716
    %912 = vmatpush.msra.mxu0 %v712
    %913 = vmatpush.msra.mxu0 %v708
    %914 = vmatpush.msra.mxu0 %v704
    %915 = vmatpush.msra.mxu0 %v700
    %916 = vmatpush.msra.mxu0 %v696
    %917 = vmatpush.msra.mxu0 %v692
    %918 = vmatpush.msra.mxu0 %v688
    %919 = vmatpush.msra.mxu0 %v684
    %920 = vmatpush.msra.mxu0 %v680
    %921 = vmatpush.msra.mxu0 %v676
    %922 = vmatpush.msra.mxu0 %v672
    %923 = vmatmul.f32.gmra.mxu0 %v758
    %v924 = vpop.f32.mrf.mxu0
    %v925 = vadd.f32 %v905, %v924
    %926 = vdwg.mxu0
    %927 = vmatpush.msra.mxu0 %v285
    %928 = vmatpush.msra.mxu0 %v281
    %929 = vmatpush.msra.mxu0 %v277
    %930 = vmatpush.msra.mxu0 %v273
    %931 = vmatpush.msra.mxu0 %v269
    %932 = vmatpush.msra.mxu0 %v265
    %933 = vmatpush.msra.mxu0 %v261
    %934 = vmatpush.msra.mxu0 %v257
    %935 = vmatpush.msra.mxu0 %v253
    %936 = vmatpush.msra.mxu0 %v249
    %937 = vmatpush.msra.mxu0 %v245
    %938 = vmatpush.msra.mxu0 %v241
    %939 = vmatpush.msra.mxu0 %v237
    %940 = vmatpush.msra.mxu0 %v233
    %941 = vmatpush.msra.mxu0 %v229
    %942 = vmatpush.msra.mxu0 %v225
    %943 = vmatmul.f32.gmra.mxu0 %v751
    %v944 = vpop.f32.mrf.mxu0
    %v945 = vadd.f32 %v739, %v944
    %946 = vdwg.mxu0
    %947 = vmatpush.msra.mxu0 %v349
    %948 = vmatpush.msra.mxu0 %v345
    %949 = vmatpush.msra.mxu0 %v341
    %950 = vmatpush.msra.mxu0 %v337
    %951 = vmatpush.msra.mxu0 %v333
    %952 = vmatpush.msra.mxu0 %v329
    %953 = vmatpush.msra.mxu0 %v325
    %954 = vmatpush.msra.mxu0 %v321
    %955 = vmatpush.msra.mxu0 %v317
    %956 = vmatpush.msra.mxu0 %v313
    %957 = vmatpush.msra.mxu0 %v309
    %958 = vmatpush.msra.mxu0 %v305
    %959 = vmatpush.msra.mxu0 %v301
    %960 = vmatpush.msra.mxu0 %v297
    %961 = vmatpush.msra.mxu0 %v293
    %962 = vmatpush.msra.mxu0 %v289
    %963 = vmatmul.f32.gmra.mxu0 %v752
    %v964 = vpop.f32.mrf.mxu0
    %v965 = vadd.f32 %v945, %v964
    %966 = vdwg.mxu0
    %967 = vmatpush.msra.mxu0 %v413
    %968 = vmatpush.msra.mxu0 %v409
    %969 = vmatpush.msra.mxu0 %v405
    %970 = vmatpush.msra.mxu0 %v401
    %971 = vmatpush.msra.mxu0 %v397
    %972 = vmatpush.msra.mxu0 %v393
    %973 = vmatpush.msra.mxu0 %v389
    %974 = vmatpush.msra.mxu0 %v385
    %975 = vmatpush.msra.mxu0 %v381
    %976 = vmatpush.msra.mxu0 %v377
    %977 = vmatpush.msra.mxu0 %v373
    %978 = vmatpush.msra.mxu0 %v369
    %979 = vmatpush.msra.mxu0 %v365
    %980 = vmatpush.msra.mxu0 %v361
    %981 = vmatpush.msra.mxu0 %v357
    %982 = vmatpush.msra.mxu0 %v353
    %983 = vmatmul.f32.gmra.mxu0 %v753
    %v984 = vpop.f32.mrf.mxu0
    %v985 = vadd.f32 %v965, %v984
    %986 = vdwg.mxu0
    %987 = vmatpush.msra.mxu0 %v477
    %988 = vmatpush.msra.mxu0 %v473
    %989 = vmatpush.msra.mxu0 %v469
    %990 = vmatpush.msra.mxu0 %v465
    %991 = vmatpush.msra.mxu0 %v461
    %992 = vmatpush.msra.mxu0 %v457
    %993 = vmatpush.msra.mxu0 %v453
    %994 = vmatpush.msra.mxu0 %v449
    %995 = vmatpush.msra.mxu0 %v445
    %996 = vmatpush.msra.mxu0 %v441
    %997 = vmatpush.msra.mxu0 %v437
    %998 = vmatpush.msra.mxu0 %v433
    %999 = vmatpush.msra.mxu0 %v429
    %1000 = vmatpush.msra.mxu0 %v425
    %1001 = vmatpush.msra.mxu0 %v421
    %1002 = vmatpush.msra.mxu0 %v417
    %1003 = vmatmul.f32.gmra.mxu0 %v754
    %v1004 = vpop.f32.mrf.mxu0
    %v1005 = vadd.f32 %v985, %v1004
    %1006 = vdwg.mxu0
    %1007 = vmatpush.msra.mxu0 %v541
    %1008 = vmatpush.msra.mxu0 %v537
    %1009 = vmatpush.msra.mxu0 %v533
    %1010 = vmatpush.msra.mxu0 %v529
    %1011 = vmatpush.msra.mxu0 %v525
    %1012 = vmatpush.msra.mxu0 %v521
    %1013 = vmatpush.msra.mxu0 %v517
    %1014 = vmatpush.msra.mxu0 %v513
    %1015 = vmatpush.msra.mxu0 %v509
    %1016 = vmatpush.msra.mxu0 %v505
    %1017 = vmatpush.msra.mxu0 %v501
    %1018 = vmatpush.msra.mxu0 %v497
    %1019 = vmatpush.msra.mxu0 %v493
    %1020 = vmatpush.msra.mxu0 %v489
    %1021 = vmatpush.msra.mxu0 %v485
    %1022 = vmatpush.msra.mxu0 %v481
    %1023 = vmatmul.f32.gmra.mxu0 %v755
    %v1024 = vpop.f32.mrf.mxu0
    %v1025 = vadd.f32 %v1005, %v1024
    %1026 = vdwg.mxu0
    %1027 = vmatpush.msra.mxu0 %v605
    %1028 = vmatpush.msra.mxu0 %v601
    %1029 = vmatpush.msra.mxu0 %v597
    %1030 = vmatpush.msra.mxu0 %v593
    %1031 = vmatpush.msra.mxu0 %v589
    %1032 = vmatpush.msra.mxu0 %v585
    %1033 = vmatpush.msra.mxu0 %v581
    %1034 = vmatpush.msra.mxu0 %v577
    %1035 = vmatpush.msra.mxu0 %v573
    %1036 = vmatpush.msra.mxu0 %v569
    %1037 = vmatpush.msra.mxu0 %v565
    %1038 = vmatpush.msra.mxu0 %v561
    %1039 = vmatpush.msra.mxu0 %v557
    %1040 = vmatpush.msra.mxu0 %v553
    %1041 = vmatpush.msra.mxu0 %v549
    %1042 = vmatpush.msra.mxu0 %v545
    %1043 = vmatmul.f32.gmra.mxu0 %v756
    %v1044 = vpop.f32.mrf.mxu0
    %v1045 = vadd.f32 %v1025, %v1044
    %1046 = vdwg.mxu0
    %1047 = vmatpush.msra.mxu0 %v669
    %1048 = vmatpush.msra.mxu0 %v665
    %1049 = vmatpush.msra.mxu0 %v661
    %1050 = vmatpush.msra.mxu0 %v657
    %1051 = vmatpush.msra.mxu0 %v653
    %1052 = vmatpush.msra.mxu0 %v649
    %1053 = vmatpush.msra.mxu0 %v645
    %1054 = vmatpush.msra.mxu0 %v641
    %1055 = vmatpush.msra.mxu0 %v637
    %1056 = vmatpush.msra.mxu0 %v633
    %1057 = vmatpush.msra.mxu0 %v629
    %1058 = vmatpush.msra.mxu0 %v625
    %1059 = vmatpush.msra.mxu0 %v621
    %1060 = vmatpush.msra.mxu0 %v617
    %1061 = vmatpush.msra.mxu0 %v613
    %1062 = vmatpush.msra.mxu0 %v609
    %1063 = vmatmul.f32.gmra.mxu0 %v757
    %v1064 = vpop.f32.mrf.mxu0
    %v1065 = vadd.f32 %v1045, %v1064
    %1066 = vdwg.mxu0
    %1067 = vmatpush.msra.mxu0 %v733
    %1068 = vmatpush.msra.mxu0 %v729
    %1069 = vmatpush.msra.mxu0 %v725
    %1070 = vmatpush.msra.mxu0 %v721
    %1071 = vmatpush.msra.mxu0 %v717
    %1072 = vmatpush.msra.mxu0 %v713
    %1073 = vmatpush.msra.mxu0 %v709
    %1074 = vmatpush.msra.mxu0 %v705
    %1075 = vmatpush.msra.mxu0 %v701
    %1076 = vmatpush.msra.mxu0 %v697
    %1077 = vmatpush.msra.mxu0 %v693
    %1078 = vmatpush.msra.mxu0 %v689
    %1079 = vmatpush.msra.mxu0 %v685
    %1080 = vmatpush.msra.mxu0 %v681
    %1081 = vmatpush.msra.mxu0 %v677
    %1082 = vmatpush.msra.mxu0 %v673
    %1083 = vmatmul.f32.gmra.mxu0 %v758
    %v1084 = vpop.f32.mrf.mxu0
    %v1085 = vadd.f32 %v1065, %v1084
    %1086 = vdwg.mxu0
    %1087 = vmatpush.msra.mxu0 %v286
    %1088 = vmatpush.msra.mxu0 %v282
    %1089 = vmatpush.msra.mxu0 %v278
    %1090 = vmatpush.msra.mxu0 %v274
    %1091 = vmatpush.msra.mxu0 %v270
    %1092 = vmatpush.msra.mxu0 %v266
    %1093 = vmatpush.msra.mxu0 %v262
    %1094 = vmatpush.msra.mxu0 %v258
    %1095 = vmatpush.msra.mxu0 %v254
    %1096 = vmatpush.msra.mxu0 %v250
    %1097 = vmatpush.msra.mxu0 %v246
    %1098 = vmatpush.msra.mxu0 %v242
    %1099 = vmatpush.msra.mxu0 %v238
    %1100 = vmatpush.msra.mxu0 %v234
    %1101 = vmatpush.msra.mxu0 %v230
    %1102 = vmatpush.msra.mxu0 %v226
    %1103 = vmatmul.f32.gmra.mxu0 %v751
    %v1104 = vpop.f32.mrf.mxu0
    %v1105 = vadd.f32 %v740, %v1104
    %1106 = vdwg.mxu0
    %1107 = vmatpush.msra.mxu0 %v350
    %1108 = vmatpush.msra.mxu0 %v346
    %1109 = vmatpush.msra.mxu0 %v342
    %1110 = vmatpush.msra.mxu0 %v338
    %1111 = vmatpush.msra.mxu0 %v334
    %1112 = vmatpush.msra.mxu0 %v330
    %1113 = vmatpush.msra.mxu0 %v326
    %1114 = vmatpush.msra.mxu0 %v322
    %1115 = vmatpush.msra.mxu0 %v318
    %1116 = vmatpush.msra.mxu0 %v314
    %1117 = vmatpush.msra.mxu0 %v310
    %1118 = vmatpush.msra.mxu0 %v306
    %1119 = vmatpush.msra.mxu0 %v302
    %1120 = vmatpush.msra.mxu0 %v298
    %1121 = vmatpush.msra.mxu0 %v294
    %1122 = vmatpush.msra.mxu0 %v290
    %1123 = vmatmul.f32.gmra.mxu0 %v752
    %v1124 = vpop.f32.mrf.mxu0
    %v1125 = vadd.f32 %v1105, %v1124
    %1126 = vdwg.mxu0
    %1127 = vmatpush.msra.mxu0 %v414
    %1128 = vmatpush.msra.mxu0 %v410
    %1129 = vmatpush.msra.mxu0 %v406
    %1130 = vmatpush.msra.mxu0 %v402
    %1131 = vmatpush.msra.mxu0 %v398
    %1132 = vmatpush.msra.mxu0 %v394
    %1133 = vmatpush.msra.mxu0 %v390
    %1134 = vmatpush.msra.mxu0 %v386
    %1135 = vmatpush.msra.mxu0 %v382
    %1136 = vmatpush.msra.mxu0 %v378
    %1137 = vmatpush.msra.mxu0 %v374
    %1138 = vmatpush.msra.mxu0 %v370
    %1139 = vmatpush.msra.mxu0 %v366
    %1140 = vmatpush.msra.mxu0 %v362
    %1141 = vmatpush.msra.mxu0 %v358
    %1142 = vmatpush.msra.mxu0 %v354
    %1143 = vmatmul.f32.gmra.mxu0 %v753
    %v1144 = vpop.f32.mrf.mxu0
    %v1145 = vadd.f32 %v1125, %v1144
    %1146 = vdwg.mxu0
    %1147 = vmatpush.msra.mxu0 %v478
    %1148 = vmatpush.msra.mxu0 %v474
    %1149 = vmatpush.msra.mxu0 %v470
    %1150 = vmatpush.msra.mxu0 %v466
    %1151 = vmatpush.msra.mxu0 %v462
    %1152 = vmatpush.msra.mxu0 %v458
    %1153 = vmatpush.msra.mxu0 %v454
    %1154 = vmatpush.msra.mxu0 %v450
    %1155 = vmatpush.msra.mxu0 %v446
    %1156 = vmatpush.msra.mxu0 %v442
    %1157 = vmatpush.msra.mxu0 %v438
    %1158 = vmatpush.msra.mxu0 %v434
    %1159 = vmatpush.msra.mxu0 %v430
    %1160 = vmatpush.msra.mxu0 %v426
    %1161 = vmatpush.msra.mxu0 %v422
    %1162 = vmatpush.msra.mxu0 %v418
    %1163 = vmatmul.f32.gmra.mxu0 %v754
    %v1164 = vpop.f32.mrf.mxu0
    %v1165 = vadd.f32 %v1145, %v1164
    %1166 = vdwg.mxu0
    %1167 = vmatpush.msra.mxu0 %v542
    %1168 = vmatpush.msra.mxu0 %v538
    %1169 = vmatpush.msra.mxu0 %v534
    %1170 = vmatpush.msra.mxu0 %v530
    %1171 = vmatpush.msra.mxu0 %v526
    %1172 = vmatpush.msra.mxu0 %v522
    %1173 = vmatpush.msra.mxu0 %v518
    %1174 = vmatpush.msra.mxu0 %v514
    %1175 = vmatpush.msra.mxu0 %v510
    %1176 = vmatpush.msra.mxu0 %v506
    %1177 = vmatpush.msra.mxu0 %v502
    %1178 = vmatpush.msra.mxu0 %v498
    %1179 = vmatpush.msra.mxu0 %v494
    %1180 = vmatpush.msra.mxu0 %v490
    %1181 = vmatpush.msra.mxu0 %v486
    %1182 = vmatpush.msra.mxu0 %v482
    %1183 = vmatmul.f32.gmra.mxu0 %v755
    %v1184 = vpop.f32.mrf.mxu0
    %v1185 = vadd.f32 %v1165, %v1184
    %1186 = vdwg.mxu0
    %1187 = vmatpush.msra.mxu0 %v606
    %1188 = vmatpush.msra.mxu0 %v602
    %1189 = vmatpush.msra.mxu0 %v598
    %1190 = vmatpush.msra.mxu0 %v594
    %1191 = vmatpush.msra.mxu0 %v590
    %1192 = vmatpush.msra.mxu0 %v586
    %1193 = vmatpush.msra.mxu0 %v582
    %1194 = vmatpush.msra.mxu0 %v578
    %1195 = vmatpush.msra.mxu0 %v574
    %1196 = vmatpush.msra.mxu0 %v570
    %1197 = vmatpush.msra.mxu0 %v566
    %1198 = vmatpush.msra.mxu0 %v562
    %1199 = vmatpush.msra.mxu0 %v558
    %1200 = vmatpush.msra.mxu0 %v554
    %1201 = vmatpush.msra.mxu0 %v550
    %1202 = vmatpush.msra.mxu0 %v546
    %1203 = vmatmul.f32.gmra.mxu0 %v756
    %v1204 = vpop.f32.mrf.mxu0
    %v1205 = vadd.f32 %v1185, %v1204
    %1206 = vdwg.mxu0
    %1207 = vmatpush.msra.mxu0 %v670
    %1208 = vmatpush.msra.mxu0 %v666
    %1209 = vmatpush.msra.mxu0 %v662
    %1210 = vmatpush.msra.mxu0 %v658
    %1211 = vmatpush.msra.mxu0 %v654
    %1212 = vmatpush.msra.mxu0 %v650
    %1213 = vmatpush.msra.mxu0 %v646
    %1214 = vmatpush.msra.mxu0 %v642
    %1215 = vmatpush.msra.mxu0 %v638
    %1216 = vmatpush.msra.mxu0 %v634
    %1217 = vmatpush.msra.mxu0 %v630
    %1218 = vmatpush.msra.mxu0 %v626
    %1219 = vmatpush.msra.mxu0 %v622
    %1220 = vmatpush.msra.mxu0 %v618
    %1221 = vmatpush.msra.mxu0 %v614
    %1222 = vmatpush.msra.mxu0 %v610
    %1223 = vmatmul.f32.gmra.mxu0 %v757
    %v1224 = vpop.f32.mrf.mxu0
    %v1225 = vadd.f32 %v1205, %v1224
    %1226 = vdwg.mxu0
    %1227 = vmatpush.msra.mxu0 %v734
    %1228 = vmatpush.msra.mxu0 %v730
    %1229 = vmatpush.msra.mxu0 %v726
    %1230 = vmatpush.msra.mxu0 %v722
    %1231 = vmatpush.msra.mxu0 %v718
    %1232 = vmatpush.msra.mxu0 %v714
    %1233 = vmatpush.msra.mxu0 %v710
    %1234 = vmatpush.msra.mxu0 %v706
    %1235 = vmatpush.msra.mxu0 %v702
    %1236 = vmatpush.msra.mxu0 %v698
    %1237 = vmatpush.msra.mxu0 %v694
    %1238 = vmatpush.msra.mxu0 %v690
    %1239 = vmatpush.msra.mxu0 %v686
    %1240 = vmatpush.msra.mxu0 %v682
    %1241 = vmatpush.msra.mxu0 %v678
    %1242 = vmatpush.msra.mxu0 %v674
    %1243 = vmatmul.f32.gmra.mxu0 %v758
    %v1244 = vpop.f32.mrf.mxu0
    %v1245 = vadd.f32 %v1225, %v1244
    %1246 = vdwg.mxu0
    %1247 = vmatpush.msra.mxu0 %v287
    %1248 = vmatpush.msra.mxu0 %v283
    %1249 = vmatpush.msra.mxu0 %v279
    %1250 = vmatpush.msra.mxu0 %v275
    %1251 = vmatpush.msra.mxu0 %v271
    %1252 = vmatpush.msra.mxu0 %v267
    %1253 = vmatpush.msra.mxu0 %v263
    %1254 = vmatpush.msra.mxu0 %v259
    %1255 = vmatpush.msra.mxu0 %v255
    %1256 = vmatpush.msra.mxu0 %v251
    %1257 = vmatpush.msra.mxu0 %v247
    %1258 = vmatpush.msra.mxu0 %v243
    %1259 = vmatpush.msra.mxu0 %v239
    %1260 = vmatpush.msra.mxu0 %v235
    %1261 = vmatpush.msra.mxu0 %v231
    %1262 = vmatpush.msra.mxu0 %v227
    %1263 = vmatmul.f32.gmra.mxu0 %v751
    %v1264 = vpop.f32.mrf.mxu0
    %v1265 = vadd.f32 %v741, %v1264
    %1266 = vdwg.mxu0
    %1267 = vmatpush.msra.mxu0 %v351
    %1268 = vmatpush.msra.mxu0 %v347
    %1269 = vmatpush.msra.mxu0 %v343
    %1270 = vmatpush.msra.mxu0 %v339
    %1271 = vmatpush.msra.mxu0 %v335
    %1272 = vmatpush.msra.mxu0 %v331
    %1273 = vmatpush.msra.mxu0 %v327
    %1274 = vmatpush.msra.mxu0 %v323
    %1275 = vmatpush.msra.mxu0 %v319
    %1276 = vmatpush.msra.mxu0 %v315
    %1277 = vmatpush.msra.mxu0 %v311
    %1278 = vmatpush.msra.mxu0 %v307
    %1279 = vmatpush.msra.mxu0 %v303
    %1280 = vmatpush.msra.mxu0 %v299
    %1281 = vmatpush.msra.mxu0 %v295
    %1282 = vmatpush.msra.mxu0 %v291
    %1283 = vmatmul.f32.gmra.mxu0 %v752
    %v1284 = vpop.f32.mrf.mxu0
    %v1285 = vadd.f32 %v1265, %v1284
    %1286 = vdwg.mxu0
    %1287 = vmatpush.msra.mxu0 %v415
    %1288 = vmatpush.msra.mxu0 %v411
    %1289 = vmatpush.msra.mxu0 %v407
    %1290 = vmatpush.msra.mxu0 %v403
    %1291 = vmatpush.msra.mxu0 %v399
    %1292 = vmatpush.msra.mxu0 %v395
    %1293 = vmatpush.msra.mxu0 %v391
    %1294 = vmatpush.msra.mxu0 %v387
    %1295 = vmatpush.msra.mxu0 %v383
    %1296 = vmatpush.msra.mxu0 %v379
    %1297 = vmatpush.msra.mxu0 %v375
    %1298 = vmatpush.msra.mxu0 %v371
    %1299 = vmatpush.msra.mxu0 %v367
    %1300 = vmatpush.msra.mxu0 %v363
    %1301 = vmatpush.msra.mxu0 %v359
    %1302 = vmatpush.msra.mxu0 %v355
    %1303 = vmatmul.f32.gmra.mxu0 %v753
    %v1304 = vpop.f32.mrf.mxu0
    %v1305 = vadd.f32 %v1285, %v1304
    %1306 = vdwg.mxu0
    %1307 = vmatpush.msra.mxu0 %v479
    %1308 = vmatpush.msra.mxu0 %v475
    %1309 = vmatpush.msra.mxu0 %v471
    %1310 = vmatpush.msra.mxu0 %v467
    %1311 = vmatpush.msra.mxu0 %v463
    %1312 = vmatpush.msra.mxu0 %v459
    %1313 = vmatpush.msra.mxu0 %v455
    %1314 = vmatpush.msra.mxu0 %v451
    %1315 = vmatpush.msra.mxu0 %v447
    %1316 = vmatpush.msra.mxu0 %v443
    %1317 = vmatpush.msra.mxu0 %v439
    %1318 = vmatpush.msra.mxu0 %v435
    %1319 = vmatpush.msra.mxu0 %v431
    %1320 = vmatpush.msra.mxu0 %v427
    %1321 = vmatpush.msra.mxu0 %v423
    %1322 = vmatpush.msra.mxu0 %v419
    %1323 = vmatmul.f32.gmra.mxu0 %v754
    %v1324 = vpop.f32.mrf.mxu0
    %v1325 = vadd.f32 %v1305, %v1324
    %1326 = vdwg.mxu0
    %1327 = vmatpush.msra.mxu0 %v543
    %1328 = vmatpush.msra.mxu0 %v539
    %1329 = vmatpush.msra.mxu0 %v535
    %1330 = vmatpush.msra.mxu0 %v531
    %1331 = vmatpush.msra.mxu0 %v527
    %1332 = vmatpush.msra.mxu0 %v523
    %1333 = vmatpush.msra.mxu0 %v519
    %1334 = vmatpush.msra.mxu0 %v515
    %1335 = vmatpush.msra.mxu0 %v511
    %1336 = vmatpush.msra.mxu0 %v507
    %1337 = vmatpush.msra.mxu0 %v503
    %1338 = vmatpush.msra.mxu0 %v499
    %1339 = vmatpush.msra.mxu0 %v495
    %1340 = vmatpush.msra.mxu0 %v491
    %1341 = vmatpush.msra.mxu0 %v487
    %1342 = vmatpush.msra.mxu0 %v483
    %1343 = vmatmul.f32.gmra.mxu0 %v755
    %v1344 = vpop.f32.mrf.mxu0
    %v1345 = vadd.f32 %v1325, %v1344
    %1346 = vdwg.mxu0
    %1347 = vmatpush.msra.mxu0 %v607
    %1348 = vmatpush.msra.mxu0 %v603
    %1349 = vmatpush.msra.mxu0 %v599
    %1350 = vmatpush.msra.mxu0 %v595
    %1351 = vmatpush.msra.mxu0 %v591
    %1352 = vmatpush.msra.mxu0 %v587
    %1353 = vmatpush.msra.mxu0 %v583
    %1354 = vmatpush.msra.mxu0 %v579
    %1355 = vmatpush.msra.mxu0 %v575
    %1356 = vmatpush.msra.mxu0 %v571
    %1357 = vmatpush.msra.mxu0 %v567
    %1358 = vmatpush.msra.mxu0 %v563
    %1359 = vmatpush.msra.mxu0 %v559
    %1360 = vmatpush.msra.mxu0 %v555
    %1361 = vmatpush.msra.mxu0 %v551
    %1362 = vmatpush.msra.mxu0 %v547
    %1363 = vmatmul.f32.gmra.mxu0 %v756
    %v1364 = vpop.f32.mrf.mxu0
    %v1365 = vadd.f32 %v1345, %v1364
    %1366 = vdwg.mxu0
    %1367 = vmatpush.msra.mxu0 %v671
    %1368 = vmatpush.msra.mxu0 %v667
    %1369 = vmatpush.msra.mxu0 %v663
    %1370 = vmatpush.msra.mxu0 %v659
    %1371 = vmatpush.msra.mxu0 %v655
    %1372 = vmatpush.msra.mxu0 %v651
    %1373 = vmatpush.msra.mxu0 %v647
    %1374 = vmatpush.msra.mxu0 %v643
    %1375 = vmatpush.msra.mxu0 %v639
    %1376 = vmatpush.msra.mxu0 %v635
    %1377 = vmatpush.msra.mxu0 %v631
    %1378 = vmatpush.msra.mxu0 %v627
    %1379 = vmatpush.msra.mxu0 %v623
    %1380 = vmatpush.msra.mxu0 %v619
    %1381 = vmatpush.msra.mxu0 %v615
    %1382 = vmatpush.msra.mxu0 %v611
    %1383 = vmatmul.f32.gmra.mxu0 %v757
    %v1384 = vpop.f32.mrf.mxu0
    %v1385 = vadd.f32 %v1365, %v1384
    %1386 = vdwg.mxu0
    %1387 = vmatpush.msra.mxu0 %v735
    %1388 = vmatpush.msra.mxu0 %v731
    %1389 = vmatpush.msra.mxu0 %v727
    %1390 = vmatpush.msra.mxu0 %v723
    %1391 = vmatpush.msra.mxu0 %v719
    %1392 = vmatpush.msra.mxu0 %v715
    %1393 = vmatpush.msra.mxu0 %v711
    %1394 = vmatpush.msra.mxu0 %v707
    %1395 = vmatpush.msra.mxu0 %v703
    %1396 = vmatpush.msra.mxu0 %v699
    %1397 = vmatpush.msra.mxu0 %v695
    %1398 = vmatpush.msra.mxu0 %v691
    %1399 = vmatpush.msra.mxu0 %v687
    %1400 = vmatpush.msra.mxu0 %v683
    %1401 = vmatpush.msra.mxu0 %v679
    %1402 = vmatpush.msra.mxu0 %v675
    %1403 = vmatmul.f32.gmra.mxu0 %v758
    %v1404 = vpop.f32.mrf.mxu0
    %v1405 = vadd.f32 %v1385, %v1404
    %1406 = vdwg.mxu0
    %v1407 = vmax.f32 %v925, 0.0
    %v1408 = vmax.f32 %v1085, 0.0
    %v1409 = vmax.f32 %v1245, 0.0
    %v1410 = vmax.f32 %v1405, 0.0
    %v1411 = vld [vmem:[#allocation7] sm:$0xff]
    %v1412 = vld [vmem:[#allocation7 + $0x8] sm:$0xff]
    %v1413 = vld [vmem:[#allocation7 + $0x10] sm:$0xff]
    %v1414 = vld [vmem:[#allocation7 + $0x18] sm:$0xff]
    %v1415 = vld [vmem:[#allocation7 + $0x20] sm:$0xff]
    %v1416 = vld [vmem:[#allocation7 + $0x28] sm:$0xff]
    %v1417 = vld [vmem:[#allocation7 + $0x30] sm:$0xff]
    %v1418 = vld [vmem:[#allocation7 + $0x38] sm:$0xff]
    %v1419 = vld [vmem:[#allocation7 + $0x40] sm:$0xff]
    %v1420 = vld [vmem:[#allocation7 + $0x48] sm:$0xff]
    %v1421 = vld [vmem:[#allocation7 + $0x50] sm:$0xff]
    %v1422 = vld [vmem:[#allocation7 + $0x58] sm:$0xff]
    %v1423 = vld [vmem:[#allocation7 + $0x60] sm:$0xff]
    %v1424 = vld [vmem:[#allocation7 + $0x68] sm:$0xff]
    %v1425 = vld [vmem:[#allocation7 + $0x70] sm:$0xff]
    %v1426 = vld [vmem:[#allocation7 + $0x78] sm:$0xff]
    %v1427 = vld [vmem:[#allocation7 + $0x80] sm:$0xff]
    %v1428 = vld [vmem:[#allocation7 + $0x88] sm:$0xff]
    %v1429 = vld [vmem:[#allocation7 + $0x90] sm:$0xff]
    %v1430 = vld [vmem:[#allocation7 + $0x98] sm:$0xff]
    %v1431 = vld [vmem:[#allocation7 + $0xa0] sm:$0xff]
    %v1432 = vld [vmem:[#allocation7 + $0xa8] sm:$0xff]
    %v1433 = vld [vmem:[#allocation7 + $0xb0] sm:$0xff]
    %v1434 = vld [vmem:[#allocation7 + $0xb8] sm:$0xff]
    %v1435 = vld [vmem:[#allocation7 + $0xc0] sm:$0xff]
    %v1436 = vld [vmem:[#allocation7 + $0xc8] sm:$0xff]
    %v1437 = vld [vmem:[#allocation7 + $0xd0] sm:$0xff]
    %v1438 = vld [vmem:[#allocation7 + $0xd8] sm:$0xff]
    %v1439 = vld [vmem:[#allocation7 + $0xe0] sm:$0xff]
    %v1440 = vld [vmem:[#allocation7 + $0xe8] sm:$0xff]
    %v1441 = vld [vmem:[#allocation7 + $0xf0] sm:$0xff]
    %v1442 = vld [vmem:[#allocation7 + $0xf8] sm:$0xff]
    %v1443 = vld [vmem:[#allocation7 + $0x100] sm:$0xff]
    %v1444 = vld [vmem:[#allocation7 + $0x108] sm:$0xff]
    %v1445 = vld [vmem:[#allocation7 + $0x110] sm:$0xff]
    %v1446 = vld [vmem:[#allocation7 + $0x118] sm:$0xff]
    %v1447 = vld [vmem:[#allocation7 + $0x120] sm:$0xff]
    %v1448 = vld [vmem:[#allocation7 + $0x128] sm:$0xff]
    %v1449 = vld [vmem:[#allocation7 + $0x130] sm:$0xff]
    %v1450 = vld [vmem:[#allocation7 + $0x138] sm:$0xff]
    %v1451 = vld [vmem:[#allocation7 + $0x140] sm:$0xff]
    %v1452 = vld [vmem:[#allocation7 + $0x148] sm:$0xff]
    %v1453 = vld [vmem:[#allocation7 + $0x150] sm:$0xff]
    %v1454 = vld [vmem:[#allocation7 + $0x158] sm:$0xff]
    %v1455 = vld [vmem:[#allocation7 + $0x160] sm:$0xff]
    %v1456 = vld [vmem:[#allocation7 + $0x168] sm:$0xff]
    %v1457 = vld [vmem:[#allocation7 + $0x170] sm:$0xff]
    %v1458 = vld [vmem:[#allocation7 + $0x178] sm:$0xff]
    %v1459 = vld [vmem:[#allocation7 + $0x180] sm:$0xff]
    %v1460 = vld [vmem:[#allocation7 + $0x188] sm:$0xff]
    %v1461 = vld [vmem:[#allocation7 + $0x190] sm:$0xff]
    %v1462 = vld [vmem:[#allocation7 + $0x198] sm:$0xff]
    %v1463 = vld [vmem:[#allocation7 + $0x1a0] sm:$0xff]
    %v1464 = vld [vmem:[#allocation7 + $0x1a8] sm:$0xff]
    %v1465 = vld [vmem:[#allocation7 + $0x1b0] sm:$0xff]
    %v1466 = vld [vmem:[#allocation7 + $0x1b8] sm:$0xff]
    %v1467 = vld [vmem:[#allocation7 + $0x1c0] sm:$0xff]
    %v1468 = vld [vmem:[#allocation7 + $0x1c8] sm:$0xff]
    %v1469 = vld [vmem:[#allocation7 + $0x1d0] sm:$0xff]
    %v1470 = vld [vmem:[#allocation7 + $0x1d8] sm:$0xff]
    %v1471 = vld [vmem:[#allocation7 + $0x1e0] sm:$0xff]
    %v1472 = vld [vmem:[#allocation7 + $0x1e8] sm:$0xff]
    %v1473 = vld [vmem:[#allocation7 + $0x1f0] sm:$0xff]
    %v1474 = vld [vmem:[#allocation7 + $0x1f8] sm:$0xff]
    %v1475 = vld [vmem:[#allocation7 + $0x200] sm:$0xff]
    %v1476 = vld [vmem:[#allocation7 + $0x208] sm:$0xff]
    %v1477 = vld [vmem:[#allocation7 + $0x210] sm:$0xff]
    %v1478 = vld [vmem:[#allocation7 + $0x218] sm:$0xff]
    %v1479 = vld [vmem:[#allocation7 + $0x220] sm:$0xff]
    %v1480 = vld [vmem:[#allocation7 + $0x228] sm:$0xff]
    %v1481 = vld [vmem:[#allocation7 + $0x230] sm:$0xff]
    %v1482 = vld [vmem:[#allocation7 + $0x238] sm:$0xff]
    %v1483 = vld [vmem:[#allocation7 + $0x240] sm:$0xff]
    %v1484 = vld [vmem:[#allocation7 + $0x248] sm:$0xff]
    %v1485 = vld [vmem:[#allocation7 + $0x250] sm:$0xff]
    %v1486 = vld [vmem:[#allocation7 + $0x258] sm:$0xff]
    %v1487 = vld [vmem:[#allocation7 + $0x260] sm:$0xff]
    %v1488 = vld [vmem:[#allocation7 + $0x268] sm:$0xff]
    %v1489 = vld [vmem:[#allocation7 + $0x270] sm:$0xff]
    %v1490 = vld [vmem:[#allocation7 + $0x278] sm:$0xff]
    %v1491 = vld [vmem:[#allocation7 + $0x280] sm:$0xff]
    %v1492 = vld [vmem:[#allocation7 + $0x288] sm:$0xff]
    %v1493 = vld [vmem:[#allocation7 + $0x290] sm:$0xff]
    %v1494 = vld [vmem:[#allocation7 + $0x298] sm:$0xff]
    %v1495 = vld [vmem:[#allocation7 + $0x2a0] sm:$0xff]
    %v1496 = vld [vmem:[#allocation7 + $0x2a8] sm:$0xff]
    %v1497 = vld [vmem:[#allocation7 + $0x2b0] sm:$0xff]
    %v1498 = vld [vmem:[#allocation7 + $0x2b8] sm:$0xff]
    %v1499 = vld [vmem:[#allocation7 + $0x2c0] sm:$0xff]
    %v1500 = vld [vmem:[#allocation7 + $0x2c8] sm:$0xff]
    %v1501 = vld [vmem:[#allocation7 + $0x2d0] sm:$0xff]
    %v1502 = vld [vmem:[#allocation7 + $0x2d8] sm:$0xff]
    %v1503 = vld [vmem:[#allocation7 + $0x2e0] sm:$0xff]
    %v1504 = vld [vmem:[#allocation7 + $0x2e8] sm:$0xff]
    %v1505 = vld [vmem:[#allocation7 + $0x2f0] sm:$0xff]
    %v1506 = vld [vmem:[#allocation7 + $0x2f8] sm:$0xff]
    %v1507 = vld [vmem:[#allocation7 + $0x300] sm:$0xff]
    %v1508 = vld [vmem:[#allocation7 + $0x308] sm:$0xff]
    %v1509 = vld [vmem:[#allocation7 + $0x310] sm:$0xff]
    %v1510 = vld [vmem:[#allocation7 + $0x318] sm:$0xff]
    %v1511 = vld [vmem:[#allocation7 + $0x320] sm:$0xff]
    %v1512 = vld [vmem:[#allocation7 + $0x328] sm:$0xff]
    %v1513 = vld [vmem:[#allocation7 + $0x330] sm:$0xff]
    %v1514 = vld [vmem:[#allocation7 + $0x338] sm:$0xff]
    %v1515 = vld [vmem:[#allocation7 + $0x340] sm:$0xff]
    %v1516 = vld [vmem:[#allocation7 + $0x348] sm:$0xff]
    %v1517 = vld [vmem:[#allocation7 + $0x350] sm:$0xff]
    %v1518 = vld [vmem:[#allocation7 + $0x358] sm:$0xff]
    %v1519 = vld [vmem:[#allocation7 + $0x360] sm:$0xff]
    %v1520 = vld [vmem:[#allocation7 + $0x368] sm:$0xff]
    %v1521 = vld [vmem:[#allocation7 + $0x370] sm:$0xff]
    %v1522 = vld [vmem:[#allocation7 + $0x378] sm:$0xff]
    %v1523 = vld [vmem:[#allocation7 + $0x380] sm:$0xff]
    %v1524 = vld [vmem:[#allocation7 + $0x388] sm:$0xff]
    %v1525 = vld [vmem:[#allocation7 + $0x390] sm:$0xff]
    %v1526 = vld [vmem:[#allocation7 + $0x398] sm:$0xff]
    %v1527 = vld [vmem:[#allocation7 + $0x3a0] sm:$0xff]
    %v1528 = vld [vmem:[#allocation7 + $0x3a8] sm:$0xff]
    %v1529 = vld [vmem:[#allocation7 + $0x3b0] sm:$0xff]
    %v1530 = vld [vmem:[#allocation7 + $0x3b8] sm:$0xff]
    %v1531 = vld [vmem:[#allocation7 + $0x3c0] sm:$0xff]
    %v1532 = vld [vmem:[#allocation7 + $0x3c8] sm:$0xff]
    %v1533 = vld [vmem:[#allocation7 + $0x3d0] sm:$0xff]
    %v1534 = vld [vmem:[#allocation7 + $0x3d8] sm:$0xff]
    %v1535 = vld [vmem:[#allocation7 + $0x3e0] sm:$0xff]
    %v1536 = vld [vmem:[#allocation7 + $0x3e8] sm:$0xff]
    %v1537 = vld [vmem:[#allocation7 + $0x3f0] sm:$0xff]
    %v1538 = vld [vmem:[#allocation7 + $0x3f8] sm:$0xff]
    %v1539 = vld [vmem:[#allocation9] sm:$0x3]
    %v1541 = vperm.slane %v1539, 0
    %v1542 = vperm.slane %v1539, 1
    %1545 = vmatpush.msra.mxu0 %v1441
    %1546 = vmatpush.msra.mxu0 %v1439
    %1547 = vmatpush.msra.mxu0 %v1437
    %1548 = vmatpush.msra.mxu0 %v1435
    %1549 = vmatpush.msra.mxu0 %v1433
    %1550 = vmatpush.msra.mxu0 %v1431
    %1551 = vmatpush.msra.mxu0 %v1429
    %1552 = vmatpush.msra.mxu0 %v1427
    %1553 = vmatpush.msra.mxu0 %v1425
    %1554 = vmatpush.msra.mxu0 %v1423
    %1555 = vmatpush.msra.mxu0 %v1421
    %1556 = vmatpush.msra.mxu0 %v1419
    %1557 = vmatpush.msra.mxu0 %v1417
    %1558 = vmatpush.msra.mxu0 %v1415
    %1559 = vmatpush.msra.mxu0 %v1413
    %1560 = vmatpush.msra.mxu0 %v1411
    %1561 = vmatmul.f32.gmra.mxu0 %v1407
    %v1562 = vpop.f32.mrf.mxu0
    %v1563 = vadd.f32 %v1541, %v1562
    %1564 = vdwg.mxu0
    %1565 = vmatpush.msra.mxu0 %v1473
    %1566 = vmatpush.msra.mxu0 %v1471
    %1567 = vmatpush.msra.mxu0 %v1469
    %1568 = vmatpush.msra.mxu0 %v1467
    %1569 = vmatpush.msra.mxu0 %v1465
    %1570 = vmatpush.msra.mxu0 %v1463
    %1571 = vmatpush.msra.mxu0 %v1461
    %1572 = vmatpush.msra.mxu0 %v1459
    %1573 = vmatpush.msra.mxu0 %v1457
    %1574 = vmatpush.msra.mxu0 %v1455
    %1575 = vmatpush.msra.mxu0 %v1453
    %1576 = vmatpush.msra.mxu0 %v1451
    %1577 = vmatpush.msra.mxu0 %v1449
    %1578 = vmatpush.msra.mxu0 %v1447
    %1579 = vmatpush.msra.mxu0 %v1445
    %1580 = vmatpush.msra.mxu0 %v1443
    %1581 = vmatmul.f32.gmra.mxu0 %v1408
    %v1582 = vpop.f32.mrf.mxu0
    %v1583 = vadd.f32 %v1563, %v1582
    %1584 = vdwg.mxu0
    %1585 = vmatpush.msra.mxu0 %v1505
    %1586 = vmatpush.msra.mxu0 %v1503
    %1587 = vmatpush.msra.mxu0 %v1501
    %1588 = vmatpush.msra.mxu0 %v1499
    %1589 = vmatpush.msra.mxu0 %v1497
    %1590 = vmatpush.msra.mxu0 %v1495
    %1591 = vmatpush.msra.mxu0 %v1493
    %1592 = vmatpush.msra.mxu0 %v1491
    %1593 = vmatpush.msra.mxu0 %v1489
    %1594 = vmatpush.msra.mxu0 %v1487
    %1595 = vmatpush.msra.mxu0 %v1485
    %1596 = vmatpush.msra.mxu0 %v1483
    %1597 = vmatpush.msra.mxu0 %v1481
    %1598 = vmatpush.msra.mxu0 %v1479
    %1599 = vmatpush.msra.mxu0 %v1477
    %1600 = vmatpush.msra.mxu0 %v1475
    %1601 = vmatmul.f32.gmra.mxu0 %v1409
    %v1602 = vpop.f32.mrf.mxu0
    %v1603 = vadd.f32 %v1583, %v1602
    %1604 = vdwg.mxu0
    %1605 = vmatpush.msra.mxu0 %v1537
    %1606 = vmatpush.msra.mxu0 %v1535
    %1607 = vmatpush.msra.mxu0 %v1533
    %1608 = vmatpush.msra.mxu0 %v1531
    %1609 = vmatpush.msra.mxu0 %v1529
    %1610 = vmatpush.msra.mxu0 %v1527
    %1611 = vmatpush.msra.mxu0 %v1525
    %1612 = vmatpush.msra.mxu0 %v1523
    %1613 = vmatpush.msra.mxu0 %v1521
    %1614 = vmatpush.msra.mxu0 %v1519
    %1615 = vmatpush.msra.mxu0 %v1517
    %1616 = vmatpush.msra.mxu0 %v1515
    %1617 = vmatpush.msra.mxu0 %v1513
    %1618 = vmatpush.msra.mxu0 %v1511
    %1619 = vmatpush.msra.mxu0 %v1509
    %1620 = vmatpush.msra.mxu0 %v1507
    %1621 = vmatmul.f32.gmra.mxu0 %v1410
    %v1622 = vpop.f32.mrf.mxu0
    %v1623 = vadd.f32 %v1603, %v1622
    %1624 = vdwg.mxu0
    %1625 = vmatpush.msra.mxu0 %v1442
    %1626 = vmatpush.msra.mxu0 %v1440
    %1627 = vmatpush.msra.mxu0 %v1438
    %1628 = vmatpush.msra.mxu0 %v1436
    %1629 = vmatpush.msra.mxu0 %v1434
    %1630 = vmatpush.msra.mxu0 %v1432
    %1631 = vmatpush.msra.mxu0 %v1430
    %1632 = vmatpush.msra.mxu0 %v1428
    %1633 = vmatpush.msra.mxu0 %v1426
    %1634 = vmatpush.msra.mxu0 %v1424
    %1635 = vmatpush.msra.mxu0 %v1422
    %1636 = vmatpush.msra.mxu0 %v1420
    %1637 = vmatpush.msra.mxu0 %v1418
    %1638 = vmatpush.msra.mxu0 %v1416
    %1639 = vmatpush.msra.mxu0 %v1414
    %1640 = vmatpush.msra.mxu0 %v1412
    %1641 = vmatmul.f32.gmra.mxu0 %v1407
    %v1642 = vpop.f32.mrf.mxu0
    %v1643 = vadd.f32 %v1542, %v1642
    %1644 = vdwg.mxu0
    %1645 = vmatpush.msra.mxu0 %v1474
    %1646 = vmatpush.msra.mxu0 %v1472
    %1647 = vmatpush.msra.mxu0 %v1470
    %1648 = vmatpush.msra.mxu0 %v1468
    %1649 = vmatpush.msra.mxu0 %v1466
    %1650 = vmatpush.msra.mxu0 %v1464
    %1651 = vmatpush.msra.mxu0 %v1462
    %1652 = vmatpush.msra.mxu0 %v1460
    %1653 = vmatpush.msra.mxu0 %v1458
    %1654 = vmatpush.msra.mxu0 %v1456
    %1655 = vmatpush.msra.mxu0 %v1454
    %1656 = vmatpush.msra.mxu0 %v1452
    %1657 = vmatpush.msra.mxu0 %v1450
    %1658 = vmatpush.msra.mxu0 %v1448
    %1659 = vmatpush.msra.mxu0 %v1446
    %1660 = vmatpush.msra.mxu0 %v1444
    %1661 = vmatmul.f32.gmra.mxu0 %v1408
    %v1662 = vpop.f32.mrf.mxu0
    %v1663 = vadd.f32 %v1643, %v1662
    %1664 = vdwg.mxu0
    %1665 = vmatpush.msra.mxu0 %v1506
    %1666 = vmatpush.msra.mxu0 %v1504
    %1667 = vmatpush.msra.mxu0 %v1502
    %1668 = vmatpush.msra.mxu0 %v1500
    %1669 = vmatpush.msra.mxu0 %v1498
    %1670 = vmatpush.msra.mxu0 %v1496
    %1671 = vmatpush.msra.mxu0 %v1494
    %1672 = vmatpush.msra.mxu0 %v1492
    %1673 = vmatpush.msra.mxu0 %v1490
    %1674 = vmatpush.msra.mxu0 %v1488
    %1675 = vmatpush.msra.mxu0 %v1486
    %1676 = vmatpush.msra.mxu0 %v1484
    %1677 = vmatpush.msra.mxu0 %v1482
    %1678 = vmatpush.msra.mxu0 %v1480
    %1679 = vmatpush.msra.mxu0 %v1478
    %1680 = vmatpush.msra.mxu0 %v1476
    %1681 = vmatmul.f32.gmra.mxu0 %v1409
    %v1682 = vpop.f32.mrf.mxu0
    %v1683 = vadd.f32 %v1663, %v1682
    %1684 = vdwg.mxu0
    %1685 = vmatpush.msra.mxu0 %v1538
    %1686 = vmatpush.msra.mxu0 %v1536
    %1687 = vmatpush.msra.mxu0 %v1534
    %1688 = vmatpush.msra.mxu0 %v1532
    %1689 = vmatpush.msra.mxu0 %v1530
    %1690 = vmatpush.msra.mxu0 %v1528
    %1691 = vmatpush.msra.mxu0 %v1526
    %1692 = vmatpush.msra.mxu0 %v1524
    %1693 = vmatpush.msra.mxu0 %v1522
    %1694 = vmatpush.msra.mxu0 %v1520
    %1695 = vmatpush.msra.mxu0 %v1518
    %1696 = vmatpush.msra.mxu0 %v1516
    %1697 = vmatpush.msra.mxu0 %v1514
    %1698 = vmatpush.msra.mxu0 %v1512
    %1699 = vmatpush.msra.mxu0 %v1510
    %1700 = vmatpush.msra.mxu0 %v1508
    %1701 = vmatmul.f32.gmra.mxu0 %v1410
    %v1702 = vpop.f32.mrf.mxu0
    %v1703 = vadd.f32 %v1683, %v1702
    %1704 = vdwg.mxu0
    %v1705 = vmax.f32 %v1623, 0.0
    %v1706 = vmax.f32 %v1703, 0.0
    %v1707 = vld [vmem:[%s6] sm:$0xff]
    %v1708 = vld [vmem:[%s6 + $0x8] sm:$0xff]
    %v1709 = vld [vmem:[%s6 + $0x10] sm:$0xff]
    %v1710 = vld [vmem:[%s6 + $0x18] sm:$0xff]
    %v1711 = vld [vmem:[%s6 + $0x20] sm:$0xff]
    %v1712 = vld [vmem:[%s6 + $0x28] sm:$0xff]
    %v1713 = vld [vmem:[%s6 + $0x30] sm:$0xff]
    %v1714 = vld [vmem:[%s6 + $0x38] sm:$0xff]
    %v1715 = vld [vmem:[%s6 + $0x40] sm:$0xff]
    %v1716 = vld [vmem:[%s6 + $0x48] sm:$0xff]
    %v1717 = vld [vmem:[%s6 + $0x50] sm:$0xff]
    %v1718 = vld [vmem:[%s6 + $0x58] sm:$0xff]
    %v1719 = vld [vmem:[%s6 + $0x60] sm:$0xff]
    %v1720 = vld [vmem:[%s6 + $0x68] sm:$0xff]
    %v1721 = vld [vmem:[%s6 + $0x70] sm:$0xff]
    %v1722 = vld [vmem:[%s6 + $0x78] sm:$0xff]
    %v1723 = vld [vmem:[%s6 + $0x80] sm:$0xff]
    %v1724 = vld [vmem:[%s6 + $0x88] sm:$0xff]
    %v1725 = vld [vmem:[%s6 + $0x90] sm:$0xff]
    %v1726 = vld [vmem:[%s6 + $0x98] sm:$0xff]
    %v1727 = vld [vmem:[%s6 + $0xa0] sm:$0xff]
    %v1728 = vld [vmem:[%s6 + $0xa8] sm:$0xff]
    %v1729 = vld [vmem:[%s6 + $0xb0] sm:$0xff]
    %v1730 = vld [vmem:[%s6 + $0xb8] sm:$0xff]
    %v1731 = vld [vmem:[%s6 + $0xc0] sm:$0xff]
    %v1732 = vld [vmem:[%s6 + $0xc8] sm:$0xff]
    %v1733 = vld [vmem:[%s6 + $0xd0] sm:$0xff]
    %v1734 = vld [vmem:[%s6 + $0xd8] sm:$0xff]
    %v1735 = vld [vmem:[%s6 + $0xe0] sm:$0xff]
    %v1736 = vld [vmem:[%s6 + $0xe8] sm:$0xff]
    %v1737 = vld [vmem:[%s6 + $0xf0] sm:$0xff]
    %v1738 = vld [vmem:[%s6 + $0xf8] sm:$0xff]
    %v1739 = vld [vmem:[#allocation10] sm:$0x1]
    %v1741 = vperm.slane %v1739, 0
    %1743 = vmatpush.msra.mxu0 %v1722
    %1744 = vmatpush.msra.mxu0 %v1721
    %1745 = vmatpush.msra.mxu0 %v1720
    %1746 = vmatpush.msra.mxu0 %v1719
    %1747 = vmatpush.msra.mxu0 %v1718
    %1748 = vmatpush.msra.mxu0 %v1717
    %1749 = vmatpush.msra.mxu0 %v1716
    %1750 = vmatpush.msra.mxu0 %v1715
    %1751 = vmatpush.msra.mxu0 %v1714
    %1752 = vmatpush.msra.mxu0 %v1713
    %1753 = vmatpush.msra.mxu0 %v1712
    %1754 = vmatpush.msra.mxu0 %v1711
    %1755 = vmatpush.msra.mxu0 %v1710
    %1756 = vmatpush.msra.mxu0 %v1709
    %1757 = vmatpush.msra.mxu0 %v1708
    %1758 = vmatpush.msra.mxu0 %v1707
    %1759 = vmatmul.f32.gmra.mxu0 %v1705
    %v1760 = vpop.f32.mrf.mxu0
    %v1761 = vadd.f32 %v1741, %v1760
    %1762 = vdwg.mxu0
    %1763 = vmatpush.msra.mxu0 %v1738
    %1764 = vmatpush.msra.mxu0 %v1737
    %1765 = vmatpush.msra.mxu0 %v1736
    %1766 = vmatpush.msra.mxu0 %v1735
    %1767 = vmatpush.msra.mxu0 %v1734
    %1768 = vmatpush.msra.mxu0 %v1733
    %1769 = vmatpush.msra.mxu0 %v1732
    %1770 = vmatpush.msra.mxu0 %v1731
    %1771 = vmatpush.msra.mxu0 %v1730
    %1772 = vmatpush.msra.mxu0 %v1729
    %1773 = vmatpush.msra.mxu0 %v1728
    %1774 = vmatpush.msra.mxu0 %v1727
    %1775 = vmatpush.msra.mxu0 %v1726
    %1776 = vmatpush.msra.mxu0 %v1725
    %1777 = vmatpush.msra.mxu0 %v1724
    %1778 = vmatpush.msra.mxu0 %v1723
    %1779 = vmatmul.f32.gmra.mxu0 %v1706
    %v1780 = vpop.f32.mrf.mxu0
    %v1781 = vadd.f32 %v1761, %v1780
    %1782 = vdwg.mxu0
    %v1783 = vld [vmem:[#allocation2] sm:$0x3]
    %v1784 = vmul.f32 %v1781, 0.5
    %v1785 = vmul.f32 %v1784, 1.442695
    %v1786 = vpow.pop %v1785
    %1788 = vrot.lane.b32.xlu0 %v1786, 112
    %v1789 = vpop.permute.xlu0 %1788
    %v1791 = vmul.f32 %v1783, %v1789
    %v1792 = vadd.f32 %v1781, %v1791
    %v1793 = vld [vmem:[#allocation12] sm:$0xff]
    %v1794 = vld [vmem:[#allocation12 + $0x8] sm:$0xff]
    %v1795 = vld [vmem:[#allocation12 + $0x10] sm:$0xff]
    %v1796 = vld [vmem:[#allocation12 + $0x18] sm:$0xff]
    %v1797 = vld [vmem:[#allocation13] sm:$0x3]
    %v1799 = vperm.slane %v1797, 0
    %v1800 = vperm.slane %v1797, 1
    %vm1803 = vcmask 130048
    %v1805 = vsel %vm1803, %v1792, 0
    %1807 = vmatpush.msra.mxu0 0.0
    %1808 = vmatpush.msra.mxu0 0.0
    %1809 = vmatpush.msra.mxu0 0.0
    %1810 = vmatpush.msra.mxu0 0.0
    %1811 = vmatpush.msra.mxu0 0.0
    %1812 = vmatpush.msra.mxu0 0.0
    %1813 = vmatpush.msra.mxu0 0.0
    %1814 = vmatpush.msra.mxu0 0.0
    %1815 = vmatpush.msra.mxu0 0.0
    %1816 = vmatpush.msra.mxu0 0.0
    %1817 = vmatpush.msra.mxu0 0.0
    %1818 = vmatpush.msra.mxu0 0.0
    %1819 = vmatpush.msra.mxu0 0.0
    %1820 = vmatpush.msra.mxu0 0.0
    %1821 = vmatpush.msra.mxu0 %v1795
    %1822 = vmatpush.msra.mxu0 %v1793
    %1823 = vmatmul.f32.gmra.mxu0 %v1805
    %v1824 = vpop.f32.mrf.mxu0
    %v1825 = vadd.f32 %v1799, %v1824
    %1826 = vdwg.mxu0
    %1827 = vmatpush.msra.mxu0 0.0
    %1828 = vmatpush.msra.mxu0 0.0
    %1829 = vmatpush.msra.mxu0 0.0
    %1830 = vmatpush.msra.mxu0 0.0
    %1831 = vmatpush.msra.mxu0 0.0
    %1832 = vmatpush.msra.mxu0 0.0
    %1833 = vmatpush.msra.mxu0 0.0
    %1834 = vmatpush.msra.mxu0 0.0
    %1835 = vmatpush.msra.mxu0 0.0
    %1836 = vmatpush.msra.mxu0 0.0
    %1837 = vmatpush.msra.mxu0 0.0
    %1838 = vmatpush.msra.mxu0 0.0
    %1839 = vmatpush.msra.mxu0 0.0
    %1840 = vmatpush.msra.mxu0 0.0
    %1841 = vmatpush.msra.mxu0 %v1796
    %1842 = vmatpush.msra.mxu0 %v1794
    %1843 = vmatmul.f32.gmra.mxu0 %v1805
    %v1844 = vpop.f32.mrf.mxu0
    %v1845 = vadd.f32 %v1800, %v1844
    %1846 = vdwg.mxu0
    %v1847 = vmax.f32 %v1825, 0.0
    %v1848 = vmax.f32 %v1845, 0.0
    %v1849 = vld [vmem:[#allocation15] sm:$0xff]
    %v1850 = vld [vmem:[#allocation15 + $0x8] sm:$0xff]
    %v1851 = vld [vmem:[#allocation15 + $0x10] sm:$0xff]
    %v1852 = vld [vmem:[#allocation15 + $0x18] sm:$0xff]
    %v1853 = vld [vmem:[#allocation15 + $0x20] sm:$0xff]
    %v1854 = vld [vmem:[#allocation15 + $0x28] sm:$0xff]
    %v1855 = vld [vmem:[#allocation15 + $0x30] sm:$0xff]
    %v1856 = vld [vmem:[#allocation15 + $0x38] sm:$0xff]
    %v1857 = vld [vmem:[#allocation15 + $0x40] sm:$0xff]
    %v1858 = vld [vmem:[#allocation15 + $0x48] sm:$0xff]
    %v1859 = vld [vmem:[#allocation15 + $0x50] sm:$0xff]
    %v1860 = vld [vmem:[#allocation15 + $0x58] sm:$0xff]
    %v1861 = vld [vmem:[#allocation15 + $0x60] sm:$0xff]
    %v1862 = vld [vmem:[#allocation15 + $0x68] sm:$0xff]
    %v1863 = vld [vmem:[#allocation15 + $0x70] sm:$0xff]
    %v1864 = vld [vmem:[#allocation15 + $0x78] sm:$0xff]
    %v1865 = vld [vmem:[#allocation15 + $0x80] sm:$0xff]
    %v1866 = vld [vmem:[#allocation15 + $0x88] sm:$0xff]
    %v1867 = vld [vmem:[#allocation15 + $0x90] sm:$0xff]
    %v1868 = vld [vmem:[#allocation15 + $0x98] sm:$0xff]
    %v1869 = vld [vmem:[#allocation15 + $0xa0] sm:$0xff]
    %v1870 = vld [vmem:[#allocation15 + $0xa8] sm:$0xff]
    %v1871 = vld [vmem:[#allocation15 + $0xb0] sm:$0xff]
    %v1872 = vld [vmem:[#allocation15 + $0xb8] sm:$0xff]
    %v1873 = vld [vmem:[#allocation15 + $0xc0] sm:$0xff]
    %v1874 = vld [vmem:[#allocation15 + $0xc8] sm:$0xff]
    %v1875 = vld [vmem:[#allocation15 + $0xd0] sm:$0xff]
    %v1876 = vld [vmem:[#allocation15 + $0xd8] sm:$0xff]
    %v1877 = vld [vmem:[#allocation15 + $0xe0] sm:$0xff]
    %v1878 = vld [vmem:[#allocation15 + $0xe8] sm:$0xff]
    %v1879 = vld [vmem:[#allocation15 + $0xf0] sm:$0xff]
    %v1880 = vld [vmem:[#allocation15 + $0xf8] sm:$0xff]
    %v1881 = vld [vmem:[#allocation15 + $0x100] sm:$0xff]
    %v1882 = vld [vmem:[#allocation15 + $0x108] sm:$0xff]
    %v1883 = vld [vmem:[#allocation15 + $0x110] sm:$0xff]
    %v1884 = vld [vmem:[#allocation15 + $0x118] sm:$0xff]
    %v1885 = vld [vmem:[#allocation15 + $0x120] sm:$0xff]
    %v1886 = vld [vmem:[#allocation15 + $0x128] sm:$0xff]
    %v1887 = vld [vmem:[#allocation15 + $0x130] sm:$0xff]
    %v1888 = vld [vmem:[#allocation15 + $0x138] sm:$0xff]
    %v1889 = vld [vmem:[#allocation15 + $0x140] sm:$0xff]
    %v1890 = vld [vmem:[#allocation15 + $0x148] sm:$0xff]
    %v1891 = vld [vmem:[#allocation15 + $0x150] sm:$0xff]
    %v1892 = vld [vmem:[#allocation15 + $0x158] sm:$0xff]
    %v1893 = vld [vmem:[#allocation15 + $0x160] sm:$0xff]
    %v1894 = vld [vmem:[#allocation15 + $0x168] sm:$0xff]
    %v1895 = vld [vmem:[#allocation15 + $0x170] sm:$0xff]
    %v1896 = vld [vmem:[#allocation15 + $0x178] sm:$0xff]
    %v1897 = vld [vmem:[#allocation15 + $0x180] sm:$0xff]
    %v1898 = vld [vmem:[#allocation15 + $0x188] sm:$0xff]
    %v1899 = vld [vmem:[#allocation15 + $0x190] sm:$0xff]
    %v1900 = vld [vmem:[#allocation15 + $0x198] sm:$0xff]
    %v1901 = vld [vmem:[#allocation15 + $0x1a0] sm:$0xff]
    %v1902 = vld [vmem:[#allocation15 + $0x1a8] sm:$0xff]
    %v1903 = vld [vmem:[#allocation15 + $0x1b0] sm:$0xff]
    %v1904 = vld [vmem:[#allocation15 + $0x1b8] sm:$0xff]
    %v1905 = vld [vmem:[#allocation15 + $0x1c0] sm:$0xff]
    %v1906 = vld [vmem:[#allocation15 + $0x1c8] sm:$0xff]
    %v1907 = vld [vmem:[#allocation15 + $0x1d0] sm:$0xff]
    %v1908 = vld [vmem:[#allocation15 + $0x1d8] sm:$0xff]
    %v1909 = vld [vmem:[#allocation15 + $0x1e0] sm:$0xff]
    %v1910 = vld [vmem:[#allocation15 + $0x1e8] sm:$0xff]
    %v1911 = vld [vmem:[#allocation15 + $0x1f0] sm:$0xff]
    %v1912 = vld [vmem:[#allocation15 + $0x1f8] sm:$0xff]
    %v1913 = vld [vmem:[#allocation15 + $0x200] sm:$0xff]
    %v1914 = vld [vmem:[#allocation15 + $0x208] sm:$0xff]
    %v1915 = vld [vmem:[#allocation15 + $0x210] sm:$0xff]
    %v1916 = vld [vmem:[#allocation15 + $0x218] sm:$0xff]
    %v1917 = vld [vmem:[#allocation15 + $0x220] sm:$0xff]
    %v1918 = vld [vmem:[#allocation15 + $0x228] sm:$0xff]
    %v1919 = vld [vmem:[#allocation15 + $0x230] sm:$0xff]
    %v1920 = vld [vmem:[#allocation15 + $0x238] sm:$0xff]
    %v1921 = vld [vmem:[#allocation15 + $0x240] sm:$0xff]
    %v1922 = vld [vmem:[#allocation15 + $0x248] sm:$0xff]
    %v1923 = vld [vmem:[#allocation15 + $0x250] sm:$0xff]
    %v1924 = vld [vmem:[#allocation15 + $0x258] sm:$0xff]
    %v1925 = vld [vmem:[#allocation15 + $0x260] sm:$0xff]
    %v1926 = vld [vmem:[#allocation15 + $0x268] sm:$0xff]
    %v1927 = vld [vmem:[#allocation15 + $0x270] sm:$0xff]
    %v1928 = vld [vmem:[#allocation15 + $0x278] sm:$0xff]
    %v1929 = vld [vmem:[#allocation15 + $0x280] sm:$0xff]
    %v1930 = vld [vmem:[#allocation15 + $0x288] sm:$0xff]
    %v1931 = vld [vmem:[#allocation15 + $0x290] sm:$0xff]
    %v1932 = vld [vmem:[#allocation15 + $0x298] sm:$0xff]
    %v1933 = vld [vmem:[#allocation15 + $0x2a0] sm:$0xff]
    %v1934 = vld [vmem:[#allocation15 + $0x2a8] sm:$0xff]
    %v1935 = vld [vmem:[#allocation15 + $0x2b0] sm:$0xff]
    %v1936 = vld [vmem:[#allocation15 + $0x2b8] sm:$0xff]
    %v1937 = vld [vmem:[#allocation15 + $0x2c0] sm:$0xff]
    %v1938 = vld [vmem:[#allocation15 + $0x2c8] sm:$0xff]
    %v1939 = vld [vmem:[#allocation15 + $0x2d0] sm:$0xff]
    %v1940 = vld [vmem:[#allocation15 + $0x2d8] sm:$0xff]
    %v1941 = vld [vmem:[#allocation15 + $0x2e0] sm:$0xff]
    %v1942 = vld [vmem:[#allocation15 + $0x2e8] sm:$0xff]
    %v1943 = vld [vmem:[#allocation15 + $0x2f0] sm:$0xff]
    %v1944 = vld [vmem:[#allocation15 + $0x2f8] sm:$0xff]
    %v1945 = vld [vmem:[#allocation15 + $0x300] sm:$0xff]
    %v1946 = vld [vmem:[#allocation15 + $0x308] sm:$0xff]
    %v1947 = vld [vmem:[#allocation15 + $0x310] sm:$0xff]
    %v1948 = vld [vmem:[#allocation15 + $0x318] sm:$0xff]
    %v1949 = vld [vmem:[#allocation15 + $0x320] sm:$0xff]
    %v1950 = vld [vmem:[#allocation15 + $0x328] sm:$0xff]
    %v1951 = vld [vmem:[#allocation15 + $0x330] sm:$0xff]
    %v1952 = vld [vmem:[#allocation15 + $0x338] sm:$0xff]
    %v1953 = vld [vmem:[#allocation15 + $0x340] sm:$0xff]
    %v1954 = vld [vmem:[#allocation15 + $0x348] sm:$0xff]
    %v1955 = vld [vmem:[#allocation15 + $0x350] sm:$0xff]
    %v1956 = vld [vmem:[#allocation15 + $0x358] sm:$0xff]
    %v1957 = vld [vmem:[#allocation15 + $0x360] sm:$0xff]
    %v1958 = vld [vmem:[#allocation15 + $0x368] sm:$0xff]
    %v1959 = vld [vmem:[#allocation15 + $0x370] sm:$0xff]
    %v1960 = vld [vmem:[#allocation15 + $0x378] sm:$0xff]
    %v1961 = vld [vmem:[#allocation15 + $0x380] sm:$0xff]
    %v1962 = vld [vmem:[#allocation15 + $0x388] sm:$0xff]
    %v1963 = vld [vmem:[#allocation15 + $0x390] sm:$0xff]
    %v1964 = vld [vmem:[#allocation15 + $0x398] sm:$0xff]
    %v1965 = vld [vmem:[#allocation15 + $0x3a0] sm:$0xff]
    %v1966 = vld [vmem:[#allocation15 + $0x3a8] sm:$0xff]
    %v1967 = vld [vmem:[#allocation15 + $0x3b0] sm:$0xff]
    %v1968 = vld [vmem:[#allocation15 + $0x3b8] sm:$0xff]
    %v1969 = vld [vmem:[#allocation15 + $0x3c0] sm:$0xff]
    %v1970 = vld [vmem:[#allocation15 + $0x3c8] sm:$0xff]
    %v1971 = vld [vmem:[#allocation15 + $0x3d0] sm:$0xff]
    %v1972 = vld [vmem:[#allocation15 + $0x3d8] sm:$0xff]
    %v1973 = vld [vmem:[#allocation15 + $0x3e0] sm:$0xff]
    %v1974 = vld [vmem:[#allocation15 + $0x3e8] sm:$0xff]
    %v1975 = vld [vmem:[#allocation15 + $0x3f0] sm:$0xff]
    %v1976 = vld [vmem:[#allocation15 + $0x3f8] sm:$0xff]
    %v1977 = vld [vmem:[#allocation16] sm:$0xf]
    %v1979 = vperm.slane %v1977, 0
    %v1980 = vperm.slane %v1977, 1
    %v1981 = vperm.slane %v1977, 2
    %v1982 = vperm.slane %v1977, 3
    %1987 = vmatpush.msra.mxu0 %v1909
    %1988 = vmatpush.msra.mxu0 %v1905
    %1989 = vmatpush.msra.mxu0 %v1901
    %1990 = vmatpush.msra.mxu0 %v1897
    %1991 = vmatpush.msra.mxu0 %v1893
    %1992 = vmatpush.msra.mxu0 %v1889
    %1993 = vmatpush.msra.mxu0 %v1885
    %1994 = vmatpush.msra.mxu0 %v1881
    %1995 = vmatpush.msra.mxu0 %v1877
    %1996 = vmatpush.msra.mxu0 %v1873
    %1997 = vmatpush.msra.mxu0 %v1869
    %1998 = vmatpush.msra.mxu0 %v1865
    %1999 = vmatpush.msra.mxu0 %v1861
    %2000 = vmatpush.msra.mxu0 %v1857
    %2001 = vmatpush.msra.mxu0 %v1853
    %2002 = vmatpush.msra.mxu0 %v1849
    %2003 = vmatmul.f32.gmra.mxu0 %v1847
    %v2004 = vpop.f32.mrf.mxu0
    %v2005 = vadd.f32 %v1979, %v2004
    %2006 = vdwg.mxu0
    %2007 = vmatpush.msra.mxu0 %v1973
    %2008 = vmatpush.msra.mxu0 %v1969
    %2009 = vmatpush.msra.mxu0 %v1965
    %2010 = vmatpush.msra.mxu0 %v1961
    %2011 = vmatpush.msra.mxu0 %v1957
    %2012 = vmatpush.msra.mxu0 %v1953
    %2013 = vmatpush.msra.mxu0 %v1949
    %2014 = vmatpush.msra.mxu0 %v1945
    %2015 = vmatpush.msra.mxu0 %v1941
    %2016 = vmatpush.msra.mxu0 %v1937
    %2017 = vmatpush.msra.mxu0 %v1933
    %2018 = vmatpush.msra.mxu0 %v1929
    %2019 = vmatpush.msra.mxu0 %v1925
    %2020 = vmatpush.msra.mxu0 %v1921
    %2021 = vmatpush.msra.mxu0 %v1917
    %2022 = vmatpush.msra.mxu0 %v1913
    %2023 = vmatmul.f32.gmra.mxu0 %v1848
    %v2024 = vpop.f32.mrf.mxu0
    %v2025 = vadd.f32 %v2005, %v2024
    %2026 = vdwg.mxu0
    %2027 = vmatpush.msra.mxu0 %v1910
    %2028 = vmatpush.msra.mxu0 %v1906
    %2029 = vmatpush.msra.mxu0 %v1902
    %2030 = vmatpush.msra.mxu0 %v1898
    %2031 = vmatpush.msra.mxu0 %v1894
    %2032 = vmatpush.msra.mxu0 %v1890
    %2033 = vmatpush.msra.mxu0 %v1886
    %2034 = vmatpush.msra.mxu0 %v1882
    %2035 = vmatpush.msra.mxu0 %v1878
    %2036 = vmatpush.msra.mxu0 %v1874
    %2037 = vmatpush.msra.mxu0 %v1870
    %2038 = vmatpush.msra.mxu0 %v1866
    %2039 = vmatpush.msra.mxu0 %v1862
    %2040 = vmatpush.msra.mxu0 %v1858
    %2041 = vmatpush.msra.mxu0 %v1854
    %2042 = vmatpush.msra.mxu0 %v1850
    %2043 = vmatmul.f32.gmra.mxu0 %v1847
    %v2044 = vpop.f32.mrf.mxu0
    %v2045 = vadd.f32 %v1980, %v2044
    %2046 = vdwg.mxu0
    %2047 = vmatpush.msra.mxu0 %v1974
    %2048 = vmatpush.msra.mxu0 %v1970
    %2049 = vmatpush.msra.mxu0 %v1966
    %2050 = vmatpush.msra.mxu0 %v1962
    %2051 = vmatpush.msra.mxu0 %v1958
    %2052 = vmatpush.msra.mxu0 %v1954
    %2053 = vmatpush.msra.mxu0 %v1950
    %2054 = vmatpush.msra.mxu0 %v1946
    %2055 = vmatpush.msra.mxu0 %v1942
    %2056 = vmatpush.msra.mxu0 %v1938
    %2057 = vmatpush.msra.mxu0 %v1934
    %2058 = vmatpush.msra.mxu0 %v1930
    %2059 = vmatpush.msra.mxu0 %v1926
    %2060 = vmatpush.msra.mxu0 %v1922
    %2061 = vmatpush.msra.mxu0 %v1918
    %2062 = vmatpush.msra.mxu0 %v1914
    %2063 = vmatmul.f32.gmra.mxu0 %v1848
    %v2064 = vpop.f32.mrf.mxu0
    %v2065 = vadd.f32 %v2045, %v2064
    %2066 = vdwg.mxu0
    %2067 = vmatpush.msra.mxu0 %v1911
    %2068 = vmatpush.msra.mxu0 %v1907
    %2069 = vmatpush.msra.mxu0 %v1903
    %2070 = vmatpush.msra.mxu0 %v1899
    %2071 = vmatpush.msra.mxu0 %v1895
    %2072 = vmatpush.msra.mxu0 %v1891
    %2073 = vmatpush.msra.mxu0 %v1887
    %2074 = vmatpush.msra.mxu0 %v1883
    %2075 = vmatpush.msra.mxu0 %v1879
    %2076 = vmatpush.msra.mxu0 %v1875
    %2077 = vmatpush.msra.mxu0 %v1871
    %2078 = vmatpush.msra.mxu0 %v1867
    %2079 = vmatpush.msra.mxu0 %v1863
    %2080 = vmatpush.msra.mxu0 %v1859
    %2081 = vmatpush.msra.mxu0 %v1855
    %2082 = vmatpush.msra.mxu0 %v1851
    %2083 = vmatmul.f32.gmra.mxu0 %v1847
    %v2084 = vpop.f32.mrf.mxu0
    %v2085 = vadd.f32 %v1981, %v2084
    %2086 = vdwg.mxu0
    %2087 = vmatpush.msra.mxu0 %v1975
    %2088 = vmatpush.msra.mxu0 %v1971
    %2089 = vmatpush.msra.mxu0 %v1967
    %2090 = vmatpush.msra.mxu0 %v1963
    %2091 = vmatpush.msra.mxu0 %v1959
    %2092 = vmatpush.msra.mxu0 %v1955
    %2093 = vmatpush.msra.mxu0 %v1951
    %2094 = vmatpush.msra.mxu0 %v1947
    %2095 = vmatpush.msra.mxu0 %v1943
    %2096 = vmatpush.msra.mxu0 %v1939
    %2097 = vmatpush.msra.mxu0 %v1935
    %2098 = vmatpush.msra.mxu0 %v1931
    %2099 = vmatpush.msra.mxu0 %v1927
    %2100 = vmatpush.msra.mxu0 %v1923
    %2101 = vmatpush.msra.mxu0 %v1919
    %2102 = vmatpush.msra.mxu0 %v1915
    %2103 = vmatmul.f32.gmra.mxu0 %v1848
    %v2104 = vpop.f32.mrf.mxu0
    %v2105 = vadd.f32 %v2085, %v2104
    %2106 = vdwg.mxu0
    %2107 = vmatpush.msra.mxu0 %v1912
    %2108 = vmatpush.msra.mxu0 %v1908
    %2109 = vmatpush.msra.mxu0 %v1904
    %2110 = vmatpush.msra.mxu0 %v1900
    %2111 = vmatpush.msra.mxu0 %v1896
    %2112 = vmatpush.msra.mxu0 %v1892
    %2113 = vmatpush.msra.mxu0 %v1888
    %2114 = vmatpush.msra.mxu0 %v1884
    %2115 = vmatpush.msra.mxu0 %v1880
    %2116 = vmatpush.msra.mxu0 %v1876
    %2117 = vmatpush.msra.mxu0 %v1872
    %2118 = vmatpush.msra.mxu0 %v1868
    %2119 = vmatpush.msra.mxu0 %v1864
    %2120 = vmatpush.msra.mxu0 %v1860
    %2121 = vmatpush.msra.mxu0 %v1856
    %2122 = vmatpush.msra.mxu0 %v1852
    %2123 = vmatmul.f32.gmra.mxu0 %v1847
    %v2124 = vpop.f32.mrf.mxu0
    %v2125 = vadd.f32 %v1982, %v2124
    %2126 = vdwg.mxu0
    %2127 = vmatpush.msra.mxu0 %v1976
    %2128 = vmatpush.msra.mxu0 %v1972
    %2129 = vmatpush.msra.mxu0 %v1968
    %2130 = vmatpush.msra.mxu0 %v1964
    %2131 = vmatpush.msra.mxu0 %v1960
    %2132 = vmatpush.msra.mxu0 %v1956
    %2133 = vmatpush.msra.mxu0 %v1952
    %2134 = vmatpush.msra.mxu0 %v1948
    %2135 = vmatpush.msra.mxu0 %v1944
    %2136 = vmatpush.msra.mxu0 %v1940
    %2137 = vmatpush.msra.mxu0 %v1936
    %2138 = vmatpush.msra.mxu0 %v1932
    %2139 = vmatpush.msra.mxu0 %v1928
    %2140 = vmatpush.msra.mxu0 %v1924
    %2141 = vmatpush.msra.mxu0 %v1920
    %2142 = vmatpush.msra.mxu0 %v1916
    %2143 = vmatmul.f32.gmra.mxu0 %v1848
    %v2144 = vpop.f32.mrf.mxu0
    %v2145 = vadd.f32 %v2125, %v2144
    %2146 = vdwg.mxu0
    %v2147 = vmax.f32 %v2025, 0.0
    %v2148 = vmax.f32 %v2065, 0.0
    %v2149 = vmax.f32 %v2105, 0.0
    %v2150 = vmax.f32 %v2145, 0.0
    %v2151 = vld [vmem:[#allocation18] sm:$0xff]
    %v2152 = vld [vmem:[#allocation18 + $0x8] sm:$0xff]
    %v2153 = vld [vmem:[#allocation18 + $0x10] sm:$0xff]
    %v2154 = vld [vmem:[#allocation18 + $0x18] sm:$0xff]
    %v2155 = vld [vmem:[#allocation18 + $0x20] sm:$0xff]
    %v2156 = vld [vmem:[#allocation18 + $0x28] sm:$0xff]
    %v2157 = vld [vmem:[#allocation18 + $0x30] sm:$0xff]
    %v2158 = vld [vmem:[#allocation18 + $0x38] sm:$0xff]
    %v2159 = vld [vmem:[#allocation18 + $0x40] sm:$0xff]
    %v2160 = vld [vmem:[#allocation18 + $0x48] sm:$0xff]
    %v2161 = vld [vmem:[#allocation18 + $0x50] sm:$0xff]
    %v2162 = vld [vmem:[#allocation18 + $0x58] sm:$0xff]
    %v2163 = vld [vmem:[#allocation18 + $0x60] sm:$0xff]
    %v2164 = vld [vmem:[#allocation18 + $0x68] sm:$0xff]
    %v2165 = vld [vmem:[#allocation18 + $0x70] sm:$0xff]
    %v2166 = vld [vmem:[#allocation18 + $0x78] sm:$0xff]
    %v2167 = vld [vmem:[#allocation18 + $0x80] sm:$0xff]
    %v2168 = vld [vmem:[#allocation18 + $0x88] sm:$0xff]
    %v2169 = vld [vmem:[#allocation18 + $0x90] sm:$0xff]
    %v2170 = vld [vmem:[#allocation18 + $0x98] sm:$0xff]
    %v2171 = vld [vmem:[#allocation18 + $0xa0] sm:$0xff]
    %v2172 = vld [vmem:[#allocation18 + $0xa8] sm:$0xff]
    %v2173 = vld [vmem:[#allocation18 + $0xb0] sm:$0xff]
    %v2174 = vld [vmem:[#allocation18 + $0xb8] sm:$0xff]
    %v2175 = vld [vmem:[#allocation18 + $0xc0] sm:$0xff]
    %v2176 = vld [vmem:[#allocation18 + $0xc8] sm:$0xff]
    %v2177 = vld [vmem:[#allocation18 + $0xd0] sm:$0xff]
    %v2178 = vld [vmem:[#allocation18 + $0xd8] sm:$0xff]
    %v2179 = vld [vmem:[#allocation18 + $0xe0] sm:$0xff]
    %v2180 = vld [vmem:[#allocation18 + $0xe8] sm:$0xff]
    %v2181 = vld [vmem:[#allocation18 + $0xf0] sm:$0xff]
    %v2182 = vld [vmem:[#allocation18 + $0xf8] sm:$0xff]
    %v2183 = vld [vmem:[#allocation18 + $0x100] sm:$0xff]
    %v2184 = vld [vmem:[#allocation18 + $0x108] sm:$0xff]
    %v2185 = vld [vmem:[#allocation18 + $0x110] sm:$0xff]
    %v2186 = vld [vmem:[#allocation18 + $0x118] sm:$0xff]
    %v2187 = vld [vmem:[#allocation18 + $0x120] sm:$0xff]
    %v2188 = vld [vmem:[#allocation18 + $0x128] sm:$0xff]
    %v2189 = vld [vmem:[#allocation18 + $0x130] sm:$0xff]
    %v2190 = vld [vmem:[#allocation18 + $0x138] sm:$0xff]
    %v2191 = vld [vmem:[#allocation18 + $0x140] sm:$0xff]
    %v2192 = vld [vmem:[#allocation18 + $0x148] sm:$0xff]
    %v2193 = vld [vmem:[#allocation18 + $0x150] sm:$0xff]
    %v2194 = vld [vmem:[#allocation18 + $0x158] sm:$0xff]
    %v2195 = vld [vmem:[#allocation18 + $0x160] sm:$0xff]
    %v2196 = vld [vmem:[#allocation18 + $0x168] sm:$0xff]
    %v2197 = vld [vmem:[#allocation18 + $0x170] sm:$0xff]
    %v2198 = vld [vmem:[#allocation18 + $0x178] sm:$0xff]
    %v2199 = vld [vmem:[#allocation18 + $0x180] sm:$0xff]
    %v2200 = vld [vmem:[#allocation18 + $0x188] sm:$0xff]
    %v2201 = vld [vmem:[#allocation18 + $0x190] sm:$0xff]
    %v2202 = vld [vmem:[#allocation18 + $0x198] sm:$0xff]
    %v2203 = vld [vmem:[#allocation18 + $0x1a0] sm:$0xff]
    %v2204 = vld [vmem:[#allocation18 + $0x1a8] sm:$0xff]
    %v2205 = vld [vmem:[#allocation18 + $0x1b0] sm:$0xff]
    %v2206 = vld [vmem:[#allocation18 + $0x1b8] sm:$0xff]
    %v2207 = vld [vmem:[#allocation18 + $0x1c0] sm:$0xff]
    %v2208 = vld [vmem:[#allocation18 + $0x1c8] sm:$0xff]
    %v2209 = vld [vmem:[#allocation18 + $0x1d0] sm:$0xff]
    %v2210 = vld [vmem:[#allocation18 + $0x1d8] sm:$0xff]
    %v2211 = vld [vmem:[#allocation18 + $0x1e0] sm:$0xff]
    %v2212 = vld [vmem:[#allocation18 + $0x1e8] sm:$0xff]
    %v2213 = vld [vmem:[#allocation18 + $0x1f0] sm:$0xff]
    %v2214 = vld [vmem:[#allocation18 + $0x1f8] sm:$0xff]
    %v2215 = vld [vmem:[#allocation18 + $0x200] sm:$0xff]
    %v2216 = vld [vmem:[#allocation18 + $0x208] sm:$0xff]
    %v2217 = vld [vmem:[#allocation18 + $0x210] sm:$0xff]
    %v2218 = vld [vmem:[#allocation18 + $0x218] sm:$0xff]
    %v2219 = vld [vmem:[#allocation18 + $0x220] sm:$0xff]
    %v2220 = vld [vmem:[#allocation18 + $0x228] sm:$0xff]
    %v2221 = vld [vmem:[#allocation18 + $0x230] sm:$0xff]
    %v2222 = vld [vmem:[#allocation18 + $0x238] sm:$0xff]
    %v2223 = vld [vmem:[#allocation18 + $0x240] sm:$0xff]
    %v2224 = vld [vmem:[#allocation18 + $0x248] sm:$0xff]
    %v2225 = vld [vmem:[#allocation18 + $0x250] sm:$0xff]
    %v2226 = vld [vmem:[#allocation18 + $0x258] sm:$0xff]
    %v2227 = vld [vmem:[#allocation18 + $0x260] sm:$0xff]
    %v2228 = vld [vmem:[#allocation18 + $0x268] sm:$0xff]
    %v2229 = vld [vmem:[#allocation18 + $0x270] sm:$0xff]
    %v2230 = vld [vmem:[#allocation18 + $0x278] sm:$0xff]
    %v2231 = vld [vmem:[#allocation18 + $0x280] sm:$0xff]
    %v2232 = vld [vmem:[#allocation18 + $0x288] sm:$0xff]
    %v2233 = vld [vmem:[#allocation18 + $0x290] sm:$0xff]
    %v2234 = vld [vmem:[#allocation18 + $0x298] sm:$0xff]
    %v2235 = vld [vmem:[#allocation18 + $0x2a0] sm:$0xff]
    %v2236 = vld [vmem:[#allocation18 + $0x2a8] sm:$0xff]
    %v2237 = vld [vmem:[#allocation18 + $0x2b0] sm:$0xff]
    %v2238 = vld [vmem:[#allocation18 + $0x2b8] sm:$0xff]
    %v2239 = vld [vmem:[#allocation18 + $0x2c0] sm:$0xff]
    %v2240 = vld [vmem:[#allocation18 + $0x2c8] sm:$0xff]
    %v2241 = vld [vmem:[#allocation18 + $0x2d0] sm:$0xff]
    %v2242 = vld [vmem:[#allocation18 + $0x2d8] sm:$0xff]
    %v2243 = vld [vmem:[#allocation18 + $0x2e0] sm:$0xff]
    %v2244 = vld [vmem:[#allocation18 + $0x2e8] sm:$0xff]
    %v2245 = vld [vmem:[#allocation18 + $0x2f0] sm:$0xff]
    %v2246 = vld [vmem:[#allocation18 + $0x2f8] sm:$0xff]
    %v2247 = vld [vmem:[#allocation18 + $0x300] sm:$0xff]
    %v2248 = vld [vmem:[#allocation18 + $0x308] sm:$0xff]
    %v2249 = vld [vmem:[#allocation18 + $0x310] sm:$0xff]
    %v2250 = vld [vmem:[#allocation18 + $0x318] sm:$0xff]
    %v2251 = vld [vmem:[#allocation18 + $0x320] sm:$0xff]
    %v2252 = vld [vmem:[#allocation18 + $0x328] sm:$0xff]
    %v2253 = vld [vmem:[#allocation18 + $0x330] sm:$0xff]
    %v2254 = vld [vmem:[#allocation18 + $0x338] sm:$0xff]
    %v2255 = vld [vmem:[#allocation18 + $0x340] sm:$0xff]
    %v2256 = vld [vmem:[#allocation18 + $0x348] sm:$0xff]
    %v2257 = vld [vmem:[#allocation18 + $0x350] sm:$0xff]
    %v2258 = vld [vmem:[#allocation18 + $0x358] sm:$0xff]
    %v2259 = vld [vmem:[#allocation18 + $0x360] sm:$0xff]
    %v2260 = vld [vmem:[#allocation18 + $0x368] sm:$0xff]
    %v2261 = vld [vmem:[#allocation18 + $0x370] sm:$0xff]
    %v2262 = vld [vmem:[#allocation18 + $0x378] sm:$0xff]
    %v2263 = vld [vmem:[#allocation18 + $0x380] sm:$0xff]
    %v2264 = vld [vmem:[#allocation18 + $0x388] sm:$0xff]
    %v2265 = vld [vmem:[#allocation18 + $0x390] sm:$0xff]
    %v2266 = vld [vmem:[#allocation18 + $0x398] sm:$0xff]
    %v2267 = vld [vmem:[#allocation18 + $0x3a0] sm:$0xff]
    %v2268 = vld [vmem:[#allocation18 + $0x3a8] sm:$0xff]
    %v2269 = vld [vmem:[#allocation18 + $0x3b0] sm:$0xff]
    %v2270 = vld [vmem:[#allocation18 + $0x3b8] sm:$0xff]
    %v2271 = vld [vmem:[#allocation18 + $0x3c0] sm:$0xff]
    %v2272 = vld [vmem:[#allocation18 + $0x3c8] sm:$0xff]
    %v2273 = vld [vmem:[#allocation18 + $0x3d0] sm:$0xff]
    %v2274 = vld [vmem:[#allocation18 + $0x3d8] sm:$0xff]
    %v2275 = vld [vmem:[#allocation18 + $0x3e0] sm:$0xff]
    %v2276 = vld [vmem:[#allocation18 + $0x3e8] sm:$0xff]
    %v2277 = vld [vmem:[#allocation18 + $0x3f0] sm:$0xff]
    %v2278 = vld [vmem:[#allocation18 + $0x3f8] sm:$0xff]
    %v2279 = vld [vmem:[#allocation18 + $0x400] sm:$0xff]
    %v2280 = vld [vmem:[#allocation18 + $0x408] sm:$0xff]
    %v2281 = vld [vmem:[#allocation18 + $0x410] sm:$0xff]
    %v2282 = vld [vmem:[#allocation18 + $0x418] sm:$0xff]
    %v2283 = vld [vmem:[#allocation18 + $0x420] sm:$0xff]
    %v2284 = vld [vmem:[#allocation18 + $0x428] sm:$0xff]
    %v2285 = vld [vmem:[#allocation18 + $0x430] sm:$0xff]
    %v2286 = vld [vmem:[#allocation18 + $0x438] sm:$0xff]
    %v2287 = vld [vmem:[#allocation18 + $0x440] sm:$0xff]
    %v2288 = vld [vmem:[#allocation18 + $0x448] sm:$0xff]
    %v2289 = vld [vmem:[#allocation18 + $0x450] sm:$0xff]
    %v2290 = vld [vmem:[#allocation18 + $0x458] sm:$0xff]
    %v2291 = vld [vmem:[#allocation18 + $0x460] sm:$0xff]
    %v2292 = vld [vmem:[#allocation18 + $0x468] sm:$0xff]
    %v2293 = vld [vmem:[#allocation18 + $0x470] sm:$0xff]
    %v2294 = vld [vmem:[#allocation18 + $0x478] sm:$0xff]
    %v2295 = vld [vmem:[#allocation18 + $0x480] sm:$0xff]
    %v2296 = vld [vmem:[#allocation18 + $0x488] sm:$0xff]
    %v2297 = vld [vmem:[#allocation18 + $0x490] sm:$0xff]
    %v2298 = vld [vmem:[#allocation18 + $0x498] sm:$0xff]
    %v2299 = vld [vmem:[#allocation18 + $0x4a0] sm:$0xff]
    %v2300 = vld [vmem:[#allocation18 + $0x4a8] sm:$0xff]
    %v2301 = vld [vmem:[#allocation18 + $0x4b0] sm:$0xff]
    %v2302 = vld [vmem:[#allocation18 + $0x4b8] sm:$0xff]
    %v2303 = vld [vmem:[#allocation18 + $0x4c0] sm:$0xff]
    %v2304 = vld [vmem:[#allocation18 + $0x4c8] sm:$0xff]
    %v2305 = vld [vmem:[#allocation18 + $0x4d0] sm:$0xff]
    %v2306 = vld [vmem:[#allocation18 + $0x4d8] sm:$0xff]
    %v2307 = vld [vmem:[#allocation18 + $0x4e0] sm:$0xff]
    %v2308 = vld [vmem:[#allocation18 + $0x4e8] sm:$0xff]
    %v2309 = vld [vmem:[#allocation18 + $0x4f0] sm:$0xff]
    %v2310 = vld [vmem:[#allocation18 + $0x4f8] sm:$0xff]
    %v2311 = vld [vmem:[#allocation18 + $0x500] sm:$0xff]
    %v2312 = vld [vmem:[#allocation18 + $0x508] sm:$0xff]
    %v2313 = vld [vmem:[#allocation18 + $0x510] sm:$0xff]
    %v2314 = vld [vmem:[#allocation18 + $0x518] sm:$0xff]
    %v2315 = vld [vmem:[#allocation18 + $0x520] sm:$0xff]
    %v2316 = vld [vmem:[#allocation18 + $0x528] sm:$0xff]
    %v2317 = vld [vmem:[#allocation18 + $0x530] sm:$0xff]
    %v2318 = vld [vmem:[#allocation18 + $0x538] sm:$0xff]
    %v2319 = vld [vmem:[#allocation18 + $0x540] sm:$0xff]
    %v2320 = vld [vmem:[#allocation18 + $0x548] sm:$0xff]
    %v2321 = vld [vmem:[#allocation18 + $0x550] sm:$0xff]
    %v2322 = vld [vmem:[#allocation18 + $0x558] sm:$0xff]
    %v2323 = vld [vmem:[#allocation18 + $0x560] sm:$0xff]
    %v2324 = vld [vmem:[#allocation18 + $0x568] sm:$0xff]
    %v2325 = vld [vmem:[#allocation18 + $0x570] sm:$0xff]
    %v2326 = vld [vmem:[#allocation18 + $0x578] sm:$0xff]
    %v2327 = vld [vmem:[#allocation18 + $0x580] sm:$0xff]
    %v2328 = vld [vmem:[#allocation18 + $0x588] sm:$0xff]
    %v2329 = vld [vmem:[#allocation18 + $0x590] sm:$0xff]
    %v2330 = vld [vmem:[#allocation18 + $0x598] sm:$0xff]
    %v2331 = vld [vmem:[#allocation18 + $0x5a0] sm:$0xff]
    %v2332 = vld [vmem:[#allocation18 + $0x5a8] sm:$0xff]
    %v2333 = vld [vmem:[#allocation18 + $0x5b0] sm:$0xff]
    %v2334 = vld [vmem:[#allocation18 + $0x5b8] sm:$0xff]
    %v2335 = vld [vmem:[#allocation18 + $0x5c0] sm:$0xff]
    %v2336 = vld [vmem:[#allocation18 + $0x5c8] sm:$0xff]
    %v2337 = vld [vmem:[#allocation18 + $0x5d0] sm:$0xff]
    %v2338 = vld [vmem:[#allocation18 + $0x5d8] sm:$0xff]
    %v2339 = vld [vmem:[#allocation18 + $0x5e0] sm:$0xff]
    %v2340 = vld [vmem:[#allocation18 + $0x5e8] sm:$0xff]
    %v2341 = vld [vmem:[#allocation18 + $0x5f0] sm:$0xff]
    %v2342 = vld [vmem:[#allocation18 + $0x5f8] sm:$0xff]
    %v2343 = vld [vmem:[#allocation18 + $0x600] sm:$0xff]
    %v2344 = vld [vmem:[#allocation18 + $0x608] sm:$0xff]
    %v2345 = vld [vmem:[#allocation18 + $0x610] sm:$0xff]
    %v2346 = vld [vmem:[#allocation18 + $0x618] sm:$0xff]
    %v2347 = vld [vmem:[#allocation18 + $0x620] sm:$0xff]
    %v2348 = vld [vmem:[#allocation18 + $0x628] sm:$0xff]
    %v2349 = vld [vmem:[#allocation18 + $0x630] sm:$0xff]
    %v2350 = vld [vmem:[#allocation18 + $0x638] sm:$0xff]
    %v2351 = vld [vmem:[#allocation18 + $0x640] sm:$0xff]
    %v2352 = vld [vmem:[#allocation18 + $0x648] sm:$0xff]
    %v2353 = vld [vmem:[#allocation18 + $0x650] sm:$0xff]
    %v2354 = vld [vmem:[#allocation18 + $0x658] sm:$0xff]
    %v2355 = vld [vmem:[#allocation18 + $0x660] sm:$0xff]
    %v2356 = vld [vmem:[#allocation18 + $0x668] sm:$0xff]
    %v2357 = vld [vmem:[#allocation18 + $0x670] sm:$0xff]
    %v2358 = vld [vmem:[#allocation18 + $0x678] sm:$0xff]
    %v2359 = vld [vmem:[#allocation18 + $0x680] sm:$0xff]
    %v2360 = vld [vmem:[#allocation18 + $0x688] sm:$0xff]
    %v2361 = vld [vmem:[#allocation18 + $0x690] sm:$0xff]
    %v2362 = vld [vmem:[#allocation18 + $0x698] sm:$0xff]
    %v2363 = vld [vmem:[#allocation18 + $0x6a0] sm:$0xff]
    %v2364 = vld [vmem:[#allocation18 + $0x6a8] sm:$0xff]
    %v2365 = vld [vmem:[#allocation18 + $0x6b0] sm:$0xff]
    %v2366 = vld [vmem:[#allocation18 + $0x6b8] sm:$0xff]
    %v2367 = vld [vmem:[#allocation18 + $0x6c0] sm:$0xff]
    %v2368 = vld [vmem:[#allocation18 + $0x6c8] sm:$0xff]
    %v2369 = vld [vmem:[#allocation18 + $0x6d0] sm:$0xff]
    %v2370 = vld [vmem:[#allocation18 + $0x6d8] sm:$0xff]
    %v2371 = vld [vmem:[#allocation18 + $0x6e0] sm:$0xff]
    %v2372 = vld [vmem:[#allocation18 + $0x6e8] sm:$0xff]
    %v2373 = vld [vmem:[#allocation18 + $0x6f0] sm:$0xff]
    %v2374 = vld [vmem:[#allocation18 + $0x6f8] sm:$0xff]
    %v2375 = vld [vmem:[#allocation18 + $0x700] sm:$0xff]
    %v2376 = vld [vmem:[#allocation18 + $0x708] sm:$0xff]
    %v2377 = vld [vmem:[#allocation18 + $0x710] sm:$0xff]
    %v2378 = vld [vmem:[#allocation18 + $0x718] sm:$0xff]
    %v2379 = vld [vmem:[#allocation18 + $0x720] sm:$0xff]
    %v2380 = vld [vmem:[#allocation18 + $0x728] sm:$0xff]
    %v2381 = vld [vmem:[#allocation18 + $0x730] sm:$0xff]
    %v2382 = vld [vmem:[#allocation18 + $0x738] sm:$0xff]
    %v2383 = vld [vmem:[#allocation18 + $0x740] sm:$0xff]
    %v2384 = vld [vmem:[#allocation18 + $0x748] sm:$0xff]
    %v2385 = vld [vmem:[#allocation18 + $0x750] sm:$0xff]
    %v2386 = vld [vmem:[#allocation18 + $0x758] sm:$0xff]
    %v2387 = vld [vmem:[#allocation18 + $0x760] sm:$0xff]
    %v2388 = vld [vmem:[#allocation18 + $0x768] sm:$0xff]
    %v2389 = vld [vmem:[#allocation18 + $0x770] sm:$0xff]
    %v2390 = vld [vmem:[#allocation18 + $0x778] sm:$0xff]
    %v2391 = vld [vmem:[#allocation18 + $0x780] sm:$0xff]
    %v2392 = vld [vmem:[#allocation18 + $0x788] sm:$0xff]
    %v2393 = vld [vmem:[#allocation18 + $0x790] sm:$0xff]
    %v2394 = vld [vmem:[#allocation18 + $0x798] sm:$0xff]
    %v2395 = vld [vmem:[#allocation18 + $0x7a0] sm:$0xff]
    %v2396 = vld [vmem:[#allocation18 + $0x7a8] sm:$0xff]
    %v2397 = vld [vmem:[#allocation18 + $0x7b0] sm:$0xff]
    %v2398 = vld [vmem:[#allocation18 + $0x7b8] sm:$0xff]
    %v2399 = vld [vmem:[#allocation18 + $0x7c0] sm:$0xff]
    %v2400 = vld [vmem:[#allocation18 + $0x7c8] sm:$0xff]
    %v2401 = vld [vmem:[#allocation18 + $0x7d0] sm:$0xff]
    %v2402 = vld [vmem:[#allocation18 + $0x7d8] sm:$0xff]
    %v2403 = vld [vmem:[#allocation18 + $0x7e0] sm:$0xff]
    %v2404 = vld [vmem:[#allocation18 + $0x7e8] sm:$0xff]
    %v2405 = vld [vmem:[#allocation18 + $0x7f0] sm:$0xff]
    %v2406 = vld [vmem:[#allocation18 + $0x7f8] sm:$0xff]
    %v2407 = vld [vmem:[#allocation18 + $0x800] sm:$0xff]
    %v2408 = vld [vmem:[#allocation18 + $0x808] sm:$0xff]
    %v2409 = vld [vmem:[#allocation18 + $0x810] sm:$0xff]
    %v2410 = vld [vmem:[#allocation18 + $0x818] sm:$0xff]
    %v2411 = vld [vmem:[#allocation18 + $0x820] sm:$0xff]
    %v2412 = vld [vmem:[#allocation18 + $0x828] sm:$0xff]
    %v2413 = vld [vmem:[#allocation18 + $0x830] sm:$0xff]
    %v2414 = vld [vmem:[#allocation18 + $0x838] sm:$0xff]
    %v2415 = vld [vmem:[#allocation18 + $0x840] sm:$0xff]
    %v2416 = vld [vmem:[#allocation18 + $0x848] sm:$0xff]
    %v2417 = vld [vmem:[#allocation18 + $0x850] sm:$0xff]
    %v2418 = vld [vmem:[#allocation18 + $0x858] sm:$0xff]
    %v2419 = vld [vmem:[#allocation18 + $0x860] sm:$0xff]
    %v2420 = vld [vmem:[#allocation18 + $0x868] sm:$0xff]
    %v2421 = vld [vmem:[#allocation18 + $0x870] sm:$0xff]
    %v2422 = vld [vmem:[#allocation18 + $0x878] sm:$0xff]
    %v2423 = vld [vmem:[#allocation18 + $0x880] sm:$0xff]
    %v2424 = vld [vmem:[#allocation18 + $0x888] sm:$0xff]
    %v2425 = vld [vmem:[#allocation18 + $0x890] sm:$0xff]
    %v2426 = vld [vmem:[#allocation18 + $0x898] sm:$0xff]
    %v2427 = vld [vmem:[#allocation18 + $0x8a0] sm:$0xff]
    %v2428 = vld [vmem:[#allocation18 + $0x8a8] sm:$0xff]
    %v2429 = vld [vmem:[#allocation18 + $0x8b0] sm:$0xff]
    %v2430 = vld [vmem:[#allocation18 + $0x8b8] sm:$0xff]
    %v2431 = vld [vmem:[#allocation18 + $0x8c0] sm:$0xff]
    %v2432 = vld [vmem:[#allocation18 + $0x8c8] sm:$0xff]
    %v2433 = vld [vmem:[#allocation18 + $0x8d0] sm:$0xff]
    %v2434 = vld [vmem:[#allocation18 + $0x8d8] sm:$0xff]
    %v2435 = vld [vmem:[#allocation18 + $0x8e0] sm:$0xff]
    %v2436 = vld [vmem:[#allocation18 + $0x8e8] sm:$0xff]
    %v2437 = vld [vmem:[#allocation18 + $0x8f0] sm:$0xff]
    %v2438 = vld [vmem:[#allocation18 + $0x8f8] sm:$0xff]
    %v2439 = vld [vmem:[#allocation18 + $0x900] sm:$0xff]
    %v2440 = vld [vmem:[#allocation18 + $0x908] sm:$0xff]
    %v2441 = vld [vmem:[#allocation18 + $0x910] sm:$0xff]
    %v2442 = vld [vmem:[#allocation18 + $0x918] sm:$0xff]
    %v2443 = vld [vmem:[#allocation18 + $0x920] sm:$0xff]
    %v2444 = vld [vmem:[#allocation18 + $0x928] sm:$0xff]
    %v2445 = vld [vmem:[#allocation18 + $0x930] sm:$0xff]
    %v2446 = vld [vmem:[#allocation18 + $0x938] sm:$0xff]
    %v2447 = vld [vmem:[#allocation18 + $0x940] sm:$0xff]
    %v2448 = vld [vmem:[#allocation18 + $0x948] sm:$0xff]
    %v2449 = vld [vmem:[#allocation18 + $0x950] sm:$0xff]
    %v2450 = vld [vmem:[#allocation18 + $0x958] sm:$0xff]
    %v2451 = vld [vmem:[#allocation18 + $0x960] sm:$0xff]
    %v2452 = vld [vmem:[#allocation18 + $0x968] sm:$0xff]
    %v2453 = vld [vmem:[#allocation18 + $0x970] sm:$0xff]
    %v2454 = vld [vmem:[#allocation18 + $0x978] sm:$0xff]
    %v2455 = vld [vmem:[#allocation18 + $0x980] sm:$0xff]
    %v2456 = vld [vmem:[#allocation18 + $0x988] sm:$0xff]
    %v2457 = vld [vmem:[#allocation18 + $0x990] sm:$0xff]
    %v2458 = vld [vmem:[#allocation18 + $0x998] sm:$0xff]
    %v2459 = vld [vmem:[#allocation18 + $0x9a0] sm:$0xff]
    %v2460 = vld [vmem:[#allocation18 + $0x9a8] sm:$0xff]
    %v2461 = vld [vmem:[#allocation18 + $0x9b0] sm:$0xff]
    %v2462 = vld [vmem:[#allocation18 + $0x9b8] sm:$0xff]
    %v2463 = vld [vmem:[#allocation18 + $0x9c0] sm:$0xff]
    %v2464 = vld [vmem:[#allocation18 + $0x9c8] sm:$0xff]
    %v2465 = vld [vmem:[#allocation18 + $0x9d0] sm:$0xff]
    %v2466 = vld [vmem:[#allocation18 + $0x9d8] sm:$0xff]
    %v2467 = vld [vmem:[#allocation18 + $0x9e0] sm:$0xff]
    %v2468 = vld [vmem:[#allocation18 + $0x9e8] sm:$0xff]
    %v2469 = vld [vmem:[#allocation18 + $0x9f0] sm:$0xff]
    %v2470 = vld [vmem:[#allocation18 + $0x9f8] sm:$0xff]
    %v2471 = vld [vmem:[#allocation18 + $0xa00] sm:$0xff]
    %v2472 = vld [vmem:[#allocation18 + $0xa08] sm:$0xff]
    %v2473 = vld [vmem:[#allocation18 + $0xa10] sm:$0xff]
    %v2474 = vld [vmem:[#allocation18 + $0xa18] sm:$0xff]
    %v2475 = vld [vmem:[#allocation18 + $0xa20] sm:$0xff]
    %v2476 = vld [vmem:[#allocation18 + $0xa28] sm:$0xff]
    %v2477 = vld [vmem:[#allocation18 + $0xa30] sm:$0xff]
    %v2478 = vld [vmem:[#allocation18 + $0xa38] sm:$0xff]
    %v2479 = vld [vmem:[#allocation18 + $0xa40] sm:$0xff]
    %v2480 = vld [vmem:[#allocation18 + $0xa48] sm:$0xff]
    %v2481 = vld [vmem:[#allocation18 + $0xa50] sm:$0xff]
    %v2482 = vld [vmem:[#allocation18 + $0xa58] sm:$0xff]
    %v2483 = vld [vmem:[#allocation18 + $0xa60] sm:$0xff]
    %v2484 = vld [vmem:[#allocation18 + $0xa68] sm:$0xff]
    %v2485 = vld [vmem:[#allocation18 + $0xa70] sm:$0xff]
    %v2486 = vld [vmem:[#allocation18 + $0xa78] sm:$0xff]
    %v2487 = vld [vmem:[#allocation18 + $0xa80] sm:$0xff]
    %v2488 = vld [vmem:[#allocation18 + $0xa88] sm:$0xff]
    %v2489 = vld [vmem:[#allocation18 + $0xa90] sm:$0xff]
    %v2490 = vld [vmem:[#allocation18 + $0xa98] sm:$0xff]
    %v2491 = vld [vmem:[#allocation18 + $0xaa0] sm:$0xff]
    %v2492 = vld [vmem:[#allocation18 + $0xaa8] sm:$0xff]
    %v2493 = vld [vmem:[#allocation18 + $0xab0] sm:$0xff]
    %v2494 = vld [vmem:[#allocation18 + $0xab8] sm:$0xff]
    %v2495 = vld [vmem:[#allocation18 + $0xac0] sm:$0xff]
    %v2496 = vld [vmem:[#allocation18 + $0xac8] sm:$0xff]
    %v2497 = vld [vmem:[#allocation18 + $0xad0] sm:$0xff]
    %v2498 = vld [vmem:[#allocation18 + $0xad8] sm:$0xff]
    %v2499 = vld [vmem:[#allocation18 + $0xae0] sm:$0xff]
    %v2500 = vld [vmem:[#allocation18 + $0xae8] sm:$0xff]
    %v2501 = vld [vmem:[#allocation18 + $0xaf0] sm:$0xff]
    %v2502 = vld [vmem:[#allocation18 + $0xaf8] sm:$0xff]
    %v2503 = vld [vmem:[#allocation18 + $0xb00] sm:$0xff]
    %v2504 = vld [vmem:[#allocation18 + $0xb08] sm:$0xff]
    %v2505 = vld [vmem:[#allocation18 + $0xb10] sm:$0xff]
    %v2506 = vld [vmem:[#allocation18 + $0xb18] sm:$0xff]
    %v2507 = vld [vmem:[#allocation18 + $0xb20] sm:$0xff]
    %v2508 = vld [vmem:[#allocation18 + $0xb28] sm:$0xff]
    %v2509 = vld [vmem:[#allocation18 + $0xb30] sm:$0xff]
    %v2510 = vld [vmem:[#allocation18 + $0xb38] sm:$0xff]
    %v2511 = vld [vmem:[#allocation18 + $0xb40] sm:$0xff]
    %v2512 = vld [vmem:[#allocation18 + $0xb48] sm:$0xff]
    %v2513 = vld [vmem:[#allocation18 + $0xb50] sm:$0xff]
    %v2514 = vld [vmem:[#allocation18 + $0xb58] sm:$0xff]
    %v2515 = vld [vmem:[#allocation18 + $0xb60] sm:$0xff]
    %v2516 = vld [vmem:[#allocation18 + $0xb68] sm:$0xff]
    %v2517 = vld [vmem:[#allocation18 + $0xb70] sm:$0xff]
    %v2518 = vld [vmem:[#allocation18 + $0xb78] sm:$0xff]
    %v2519 = vld [vmem:[#allocation18 + $0xb80] sm:$0xff]
    %v2520 = vld [vmem:[#allocation18 + $0xb88] sm:$0xff]
    %v2521 = vld [vmem:[#allocation18 + $0xb90] sm:$0xff]
    %v2522 = vld [vmem:[#allocation18 + $0xb98] sm:$0xff]
    %v2523 = vld [vmem:[#allocation18 + $0xba0] sm:$0xff]
    %v2524 = vld [vmem:[#allocation18 + $0xba8] sm:$0xff]
    %v2525 = vld [vmem:[#allocation18 + $0xbb0] sm:$0xff]
    %v2526 = vld [vmem:[#allocation18 + $0xbb8] sm:$0xff]
    %v2527 = vld [vmem:[#allocation18 + $0xbc0] sm:$0xff]
    %v2528 = vld [vmem:[#allocation18 + $0xbc8] sm:$0xff]
    %v2529 = vld [vmem:[#allocation18 + $0xbd0] sm:$0xff]
    %v2530 = vld [vmem:[#allocation18 + $0xbd8] sm:$0xff]
    %v2531 = vld [vmem:[#allocation18 + $0xbe0] sm:$0xff]
    %v2532 = vld [vmem:[#allocation18 + $0xbe8] sm:$0xff]
    %v2533 = vld [vmem:[#allocation18 + $0xbf0] sm:$0xff]
    %v2534 = vld [vmem:[#allocation18 + $0xbf8] sm:$0xff]
    %v2535 = vld [vmem:[#allocation18 + $0xc00] sm:$0xff]
    %v2536 = vld [vmem:[#allocation18 + $0xc08] sm:$0xff]
    %v2537 = vld [vmem:[#allocation18 + $0xc10] sm:$0xff]
    %v2538 = vld [vmem:[#allocation18 + $0xc18] sm:$0xff]
    %v2539 = vld [vmem:[#allocation18 + $0xc20] sm:$0xff]
    %v2540 = vld [vmem:[#allocation18 + $0xc28] sm:$0xff]
    %v2541 = vld [vmem:[#allocation18 + $0xc30] sm:$0xff]
    %v2542 = vld [vmem:[#allocation18 + $0xc38] sm:$0xff]
    %v2543 = vld [vmem:[#allocation18 + $0xc40] sm:$0xff]
    %v2544 = vld [vmem:[#allocation18 + $0xc48] sm:$0xff]
    %v2545 = vld [vmem:[#allocation18 + $0xc50] sm:$0xff]
    %v2546 = vld [vmem:[#allocation18 + $0xc58] sm:$0xff]
    %v2547 = vld [vmem:[#allocation18 + $0xc60] sm:$0xff]
    %v2548 = vld [vmem:[#allocation18 + $0xc68] sm:$0xff]
    %v2549 = vld [vmem:[#allocation18 + $0xc70] sm:$0xff]
    %v2550 = vld [vmem:[#allocation18 + $0xc78] sm:$0xff]
    %v2551 = vld [vmem:[#allocation18 + $0xc80] sm:$0xff]
    %v2552 = vld [vmem:[#allocation18 + $0xc88] sm:$0xff]
    %v2553 = vld [vmem:[#allocation18 + $0xc90] sm:$0xff]
    %v2554 = vld [vmem:[#allocation18 + $0xc98] sm:$0xff]
    %v2555 = vld [vmem:[#allocation18 + $0xca0] sm:$0xff]
    %v2556 = vld [vmem:[#allocation18 + $0xca8] sm:$0xff]
    %v2557 = vld [vmem:[#allocation18 + $0xcb0] sm:$0xff]
    %v2558 = vld [vmem:[#allocation18 + $0xcb8] sm:$0xff]
    %v2559 = vld [vmem:[#allocation18 + $0xcc0] sm:$0xff]
    %v2560 = vld [vmem:[#allocation18 + $0xcc8] sm:$0xff]
    %v2561 = vld [vmem:[#allocation18 + $0xcd0] sm:$0xff]
    %v2562 = vld [vmem:[#allocation18 + $0xcd8] sm:$0xff]
    %v2563 = vld [vmem:[#allocation18 + $0xce0] sm:$0xff]
    %v2564 = vld [vmem:[#allocation18 + $0xce8] sm:$0xff]
    %v2565 = vld [vmem:[#allocation18 + $0xcf0] sm:$0xff]
    %v2566 = vld [vmem:[#allocation18 + $0xcf8] sm:$0xff]
    %v2567 = vld [vmem:[#allocation18 + $0xd00] sm:$0xff]
    %v2568 = vld [vmem:[#allocation18 + $0xd08] sm:$0xff]
    %v2569 = vld [vmem:[#allocation18 + $0xd10] sm:$0xff]
    %v2570 = vld [vmem:[#allocation18 + $0xd18] sm:$0xff]
    %v2571 = vld [vmem:[#allocation18 + $0xd20] sm:$0xff]
    %v2572 = vld [vmem:[#allocation18 + $0xd28] sm:$0xff]
    %v2573 = vld [vmem:[#allocation18 + $0xd30] sm:$0xff]
    %v2574 = vld [vmem:[#allocation18 + $0xd38] sm:$0xff]
    %v2575 = vld [vmem:[#allocation18 + $0xd40] sm:$0xff]
    %v2576 = vld [vmem:[#allocation18 + $0xd48] sm:$0xff]
    %v2577 = vld [vmem:[#allocation18 + $0xd50] sm:$0xff]
    %v2578 = vld [vmem:[#allocation18 + $0xd58] sm:$0xff]
    %v2579 = vld [vmem:[#allocation18 + $0xd60] sm:$0xff]
    %v2580 = vld [vmem:[#allocation18 + $0xd68] sm:$0xff]
    %v2581 = vld [vmem:[#allocation18 + $0xd70] sm:$0xff]
    %v2582 = vld [vmem:[#allocation18 + $0xd78] sm:$0xff]
    %v2583 = vld [vmem:[#allocation18 + $0xd80] sm:$0xff]
    %v2584 = vld [vmem:[#allocation18 + $0xd88] sm:$0xff]
    %v2585 = vld [vmem:[#allocation18 + $0xd90] sm:$0xff]
    %v2586 = vld [vmem:[#allocation18 + $0xd98] sm:$0xff]
    %v2587 = vld [vmem:[#allocation18 + $0xda0] sm:$0xff]
    %v2588 = vld [vmem:[#allocation18 + $0xda8] sm:$0xff]
    %v2589 = vld [vmem:[#allocation18 + $0xdb0] sm:$0xff]
    %v2590 = vld [vmem:[#allocation18 + $0xdb8] sm:$0xff]
    %v2591 = vld [vmem:[#allocation18 + $0xdc0] sm:$0xff]
    %v2592 = vld [vmem:[#allocation18 + $0xdc8] sm:$0xff]
    %v2593 = vld [vmem:[#allocation18 + $0xdd0] sm:$0xff]
    %v2594 = vld [vmem:[#allocation18 + $0xdd8] sm:$0xff]
    %v2595 = vld [vmem:[#allocation18 + $0xde0] sm:$0xff]
    %v2596 = vld [vmem:[#allocation18 + $0xde8] sm:$0xff]
    %v2597 = vld [vmem:[#allocation18 + $0xdf0] sm:$0xff]
    %v2598 = vld [vmem:[#allocation18 + $0xdf8] sm:$0xff]
    %v2599 = vld [vmem:[#allocation18 + $0xe00] sm:$0xff]
    %v2600 = vld [vmem:[#allocation18 + $0xe08] sm:$0xff]
    %v2601 = vld [vmem:[#allocation18 + $0xe10] sm:$0xff]
    %v2602 = vld [vmem:[#allocation18 + $0xe18] sm:$0xff]
    %v2603 = vld [vmem:[#allocation18 + $0xe20] sm:$0xff]
    %v2604 = vld [vmem:[#allocation18 + $0xe28] sm:$0xff]
    %v2605 = vld [vmem:[#allocation18 + $0xe30] sm:$0xff]
    %v2606 = vld [vmem:[#allocation18 + $0xe38] sm:$0xff]
    %v2607 = vld [vmem:[#allocation18 + $0xe40] sm:$0xff]
    %v2608 = vld [vmem:[#allocation18 + $0xe48] sm:$0xff]
    %v2609 = vld [vmem:[#allocation18 + $0xe50] sm:$0xff]
    %v2610 = vld [vmem:[#allocation18 + $0xe58] sm:$0xff]
    %v2611 = vld [vmem:[#allocation18 + $0xe60] sm:$0xff]
    %v2612 = vld [vmem:[#allocation18 + $0xe68] sm:$0xff]
    %v2613 = vld [vmem:[#allocation18 + $0xe70] sm:$0xff]
    %v2614 = vld [vmem:[#allocation18 + $0xe78] sm:$0xff]
    %v2615 = vld [vmem:[#allocation18 + $0xe80] sm:$0xff]
    %v2616 = vld [vmem:[#allocation18 + $0xe88] sm:$0xff]
    %v2617 = vld [vmem:[#allocation18 + $0xe90] sm:$0xff]
    %v2618 = vld [vmem:[#allocation18 + $0xe98] sm:$0xff]
    %v2619 = vld [vmem:[#allocation18 + $0xea0] sm:$0xff]
    %v2620 = vld [vmem:[#allocation18 + $0xea8] sm:$0xff]
    %v2621 = vld [vmem:[#allocation18 + $0xeb0] sm:$0xff]
    %v2622 = vld [vmem:[#allocation18 + $0xeb8] sm:$0xff]
    %v2623 = vld [vmem:[#allocation18 + $0xec0] sm:$0xff]
    %v2624 = vld [vmem:[#allocation18 + $0xec8] sm:$0xff]
    %v2625 = vld [vmem:[#allocation18 + $0xed0] sm:$0xff]
    %v2626 = vld [vmem:[#allocation18 + $0xed8] sm:$0xff]
    %v2627 = vld [vmem:[#allocation18 + $0xee0] sm:$0xff]
    %v2628 = vld [vmem:[#allocation18 + $0xee8] sm:$0xff]
    %v2629 = vld [vmem:[#allocation18 + $0xef0] sm:$0xff]
    %v2630 = vld [vmem:[#allocation18 + $0xef8] sm:$0xff]
    %v2631 = vld [vmem:[#allocation18 + $0xf00] sm:$0xff]
    %v2632 = vld [vmem:[#allocation18 + $0xf08] sm:$0xff]
    %v2633 = vld [vmem:[#allocation18 + $0xf10] sm:$0xff]
    %v2634 = vld [vmem:[#allocation18 + $0xf18] sm:$0xff]
    %v2635 = vld [vmem:[#allocation18 + $0xf20] sm:$0xff]
    %v2636 = vld [vmem:[#allocation18 + $0xf28] sm:$0xff]
    %v2637 = vld [vmem:[#allocation18 + $0xf30] sm:$0xff]
    %v2638 = vld [vmem:[#allocation18 + $0xf38] sm:$0xff]
    %v2639 = vld [vmem:[#allocation18 + $0xf40] sm:$0xff]
    %v2640 = vld [vmem:[#allocation18 + $0xf48] sm:$0xff]
    %v2641 = vld [vmem:[#allocation18 + $0xf50] sm:$0xff]
    %v2642 = vld [vmem:[#allocation18 + $0xf58] sm:$0xff]
    %v2643 = vld [vmem:[#allocation18 + $0xf60] sm:$0xff]
    %v2644 = vld [vmem:[#allocation18 + $0xf68] sm:$0xff]
    %v2645 = vld [vmem:[#allocation18 + $0xf70] sm:$0xff]
    %v2646 = vld [vmem:[#allocation18 + $0xf78] sm:$0xff]
    %v2647 = vld [vmem:[#allocation18 + $0xf80] sm:$0xff]
    %v2648 = vld [vmem:[#allocation18 + $0xf88] sm:$0xff]
    %v2649 = vld [vmem:[#allocation18 + $0xf90] sm:$0xff]
    %v2650 = vld [vmem:[#allocation18 + $0xf98] sm:$0xff]
    %v2651 = vld [vmem:[#allocation18 + $0xfa0] sm:$0xff]
    %v2652 = vld [vmem:[#allocation18 + $0xfa8] sm:$0xff]
    %v2653 = vld [vmem:[#allocation18 + $0xfb0] sm:$0xff]
    %v2654 = vld [vmem:[#allocation18 + $0xfb8] sm:$0xff]
    %v2655 = vld [vmem:[#allocation18 + $0xfc0] sm:$0xff]
    %v2656 = vld [vmem:[#allocation18 + $0xfc8] sm:$0xff]
    %v2657 = vld [vmem:[#allocation18 + $0xfd0] sm:$0xff]
    %v2658 = vld [vmem:[#allocation18 + $0xfd8] sm:$0xff]
    %v2659 = vld [vmem:[#allocation18 + $0xfe0] sm:$0xff]
    %v2660 = vld [vmem:[#allocation18 + $0xfe8] sm:$0xff]
    %v2661 = vld [vmem:[#allocation18 + $0xff0] sm:$0xff]
    %v2662 = vld [vmem:[#allocation18 + $0xff8] sm:$0xff]
    %v2663 = vld [vmem:[#allocation19] sm:$0xff]
    %v2665 = vperm.slane %v2663, 0
    %v2666 = vperm.slane %v2663, 1
    %v2667 = vperm.slane %v2663, 2
    %v2668 = vperm.slane %v2663, 3
    %v2669 = vperm.slane %v2663, 4
    %v2670 = vperm.slane %v2663, 5
    %v2671 = vperm.slane %v2663, 6
    %v2672 = vperm.slane %v2663, 7
    %2681 = vmatpush.msra.mxu0 %v2271
    %2682 = vmatpush.msra.mxu0 %v2263
    %2683 = vmatpush.msra.mxu0 %v2255
    %2684 = vmatpush.msra.mxu0 %v2247
    %2685 = vmatpush.msra.mxu0 %v2239
    %2686 = vmatpush.msra.mxu0 %v2231
    %2687 = vmatpush.msra.mxu0 %v2223
    %2688 = vmatpush.msra.mxu0 %v2215
    %2689 = vmatpush.msra.mxu0 %v2207
    %2690 = vmatpush.msra.mxu0 %v2199
    %2691 = vmatpush.msra.mxu0 %v2191
    %2692 = vmatpush.msra.mxu0 %v2183
    %2693 = vmatpush.msra.mxu0 %v2175
    %2694 = vmatpush.msra.mxu0 %v2167
    %2695 = vmatpush.msra.mxu0 %v2159
    %2696 = vmatpush.msra.mxu0 %v2151
    %2697 = vmatmul.f32.gmra.mxu0 %v2147
    %v2698 = vpop.f32.mrf.mxu0
    %v2699 = vadd.f32 %v2665, %v2698
    %2700 = vdwg.mxu0
    %2701 = vmatpush.msra.mxu0 %v2399
    %2702 = vmatpush.msra.mxu0 %v2391
    %2703 = vmatpush.msra.mxu0 %v2383
    %2704 = vmatpush.msra.mxu0 %v2375
    %2705 = vmatpush.msra.mxu0 %v2367
    %2706 = vmatpush.msra.mxu0 %v2359
    %2707 = vmatpush.msra.mxu0 %v2351
    %2708 = vmatpush.msra.mxu0 %v2343
    %2709 = vmatpush.msra.mxu0 %v2335
    %2710 = vmatpush.msra.mxu0 %v2327
    %2711 = vmatpush.msra.mxu0 %v2319
    %2712 = vmatpush.msra.mxu0 %v2311
    %2713 = vmatpush.msra.mxu0 %v2303
    %2714 = vmatpush.msra.mxu0 %v2295
    %2715 = vmatpush.msra.mxu0 %v2287
    %2716 = vmatpush.msra.mxu0 %v2279
    %2717 = vmatmul.f32.gmra.mxu0 %v2148
    %v2718 = vpop.f32.mrf.mxu0
    %v2719 = vadd.f32 %v2699, %v2718
    %2720 = vdwg.mxu0
    %2721 = vmatpush.msra.mxu0 %v2527
    %2722 = vmatpush.msra.mxu0 %v2519
    %2723 = vmatpush.msra.mxu0 %v2511
    %2724 = vmatpush.msra.mxu0 %v2503
    %2725 = vmatpush.msra.mxu0 %v2495
    %2726 = vmatpush.msra.mxu0 %v2487
    %2727 = vmatpush.msra.mxu0 %v2479
    %2728 = vmatpush.msra.mxu0 %v2471
    %2729 = vmatpush.msra.mxu0 %v2463
    %2730 = vmatpush.msra.mxu0 %v2455
    %2731 = vmatpush.msra.mxu0 %v2447
    %2732 = vmatpush.msra.mxu0 %v2439
    %2733 = vmatpush.msra.mxu0 %v2431
    %2734 = vmatpush.msra.mxu0 %v2423
    %2735 = vmatpush.msra.mxu0 %v2415
    %2736 = vmatpush.msra.mxu0 %v2407
    %2737 = vmatmul.f32.gmra.mxu0 %v2149
    %v2738 = vpop.f32.mrf.mxu0
    %v2739 = vadd.f32 %v2719, %v2738
    %2740 = vdwg.mxu0
    %2741 = vmatpush.msra.mxu0 %v2655
    %2742 = vmatpush.msra.mxu0 %v2647
    %2743 = vmatpush.msra.mxu0 %v2639
    %2744 = vmatpush.msra.mxu0 %v2631
    %2745 = vmatpush.msra.mxu0 %v2623
    %2746 = vmatpush.msra.mxu0 %v2615
    %2747 = vmatpush.msra.mxu0 %v2607
    %2748 = vmatpush.msra.mxu0 %v2599
    %2749 = vmatpush.msra.mxu0 %v2591
    %2750 = vmatpush.msra.mxu0 %v2583
    %2751 = vmatpush.msra.mxu0 %v2575
    %2752 = vmatpush.msra.mxu0 %v2567
    %2753 = vmatpush.msra.mxu0 %v2559
    %2754 = vmatpush.msra.mxu0 %v2551
    %2755 = vmatpush.msra.mxu0 %v2543
    %2756 = vmatpush.msra.mxu0 %v2535
    %2757 = vmatmul.f32.gmra.mxu0 %v2150
    %v2758 = vpop.f32.mrf.mxu0
    %v2759 = vadd.f32 %v2739, %v2758
    %2760 = vdwg.mxu0
    %2761 = vmatpush.msra.mxu0 %v2272
    %2762 = vmatpush.msra.mxu0 %v2264
    %2763 = vmatpush.msra.mxu0 %v2256
    %2764 = vmatpush.msra.mxu0 %v2248
    %2765 = vmatpush.msra.mxu0 %v2240
    %2766 = vmatpush.msra.mxu0 %v2232
    %2767 = vmatpush.msra.mxu0 %v2224
    %2768 = vmatpush.msra.mxu0 %v2216
    %2769 = vmatpush.msra.mxu0 %v2208
    %2770 = vmatpush.msra.mxu0 %v2200
    %2771 = vmatpush.msra.mxu0 %v2192
    %2772 = vmatpush.msra.mxu0 %v2184
    %2773 = vmatpush.msra.mxu0 %v2176
    %2774 = vmatpush.msra.mxu0 %v2168
    %2775 = vmatpush.msra.mxu0 %v2160
    %2776 = vmatpush.msra.mxu0 %v2152
    %2777 = vmatmul.f32.gmra.mxu0 %v2147
    %v2778 = vpop.f32.mrf.mxu0
    %v2779 = vadd.f32 %v2666, %v2778
    %2780 = vdwg.mxu0
    %2781 = vmatpush.msra.mxu0 %v2400
    %2782 = vmatpush.msra.mxu0 %v2392
    %2783 = vmatpush.msra.mxu0 %v2384
    %2784 = vmatpush.msra.mxu0 %v2376
    %2785 = vmatpush.msra.mxu0 %v2368
    %2786 = vmatpush.msra.mxu0 %v2360
    %2787 = vmatpush.msra.mxu0 %v2352
    %2788 = vmatpush.msra.mxu0 %v2344
    %2789 = vmatpush.msra.mxu0 %v2336
    %2790 = vmatpush.msra.mxu0 %v2328
    %2791 = vmatpush.msra.mxu0 %v2320
    %2792 = vmatpush.msra.mxu0 %v2312
    %2793 = vmatpush.msra.mxu0 %v2304
    %2794 = vmatpush.msra.mxu0 %v2296
    %2795 = vmatpush.msra.mxu0 %v2288
    %2796 = vmatpush.msra.mxu0 %v2280
    %2797 = vmatmul.f32.gmra.mxu0 %v2148
    %v2798 = vpop.f32.mrf.mxu0
    %v2799 = vadd.f32 %v2779, %v2798
    %2800 = vdwg.mxu0
    %2801 = vmatpush.msra.mxu0 %v2528
    %2802 = vmatpush.msra.mxu0 %v2520
    %2803 = vmatpush.msra.mxu0 %v2512
    %2804 = vmatpush.msra.mxu0 %v2504
    %2805 = vmatpush.msra.mxu0 %v2496
    %2806 = vmatpush.msra.mxu0 %v2488
    %2807 = vmatpush.msra.mxu0 %v2480
    %2808 = vmatpush.msra.mxu0 %v2472
    %2809 = vmatpush.msra.mxu0 %v2464
    %2810 = vmatpush.msra.mxu0 %v2456
    %2811 = vmatpush.msra.mxu0 %v2448
    %2812 = vmatpush.msra.mxu0 %v2440
    %2813 = vmatpush.msra.mxu0 %v2432
    %2814 = vmatpush.msra.mxu0 %v2424
    %2815 = vmatpush.msra.mxu0 %v2416
    %2816 = vmatpush.msra.mxu0 %v2408
    %2817 = vmatmul.f32.gmra.mxu0 %v2149
    %v2818 = vpop.f32.mrf.mxu0
    %v2819 = vadd.f32 %v2799, %v2818
    %2820 = vdwg.mxu0
    %2821 = vmatpush.msra.mxu0 %v2656
    %2822 = vmatpush.msra.mxu0 %v2648
    %2823 = vmatpush.msra.mxu0 %v2640
    %2824 = vmatpush.msra.mxu0 %v2632
    %2825 = vmatpush.msra.mxu0 %v2624
    %2826 = vmatpush.msra.mxu0 %v2616
    %2827 = vmatpush.msra.mxu0 %v2608
    %2828 = vmatpush.msra.mxu0 %v2600
    %2829 = vmatpush.msra.mxu0 %v2592
    %2830 = vmatpush.msra.mxu0 %v2584
    %2831 = vmatpush.msra.mxu0 %v2576
    %2832 = vmatpush.msra.mxu0 %v2568
    %2833 = vmatpush.msra.mxu0 %v2560
    %2834 = vmatpush.msra.mxu0 %v2552
    %2835 = vmatpush.msra.mxu0 %v2544
    %2836 = vmatpush.msra.mxu0 %v2536
    %2837 = vmatmul.f32.gmra.mxu0 %v2150
    %v2838 = vpop.f32.mrf.mxu0
    %v2839 = vadd.f32 %v2819, %v2838
    %2840 = vdwg.mxu0
    %2841 = vmatpush.msra.mxu0 %v2273
    %2842 = vmatpush.msra.mxu0 %v2265
    %2843 = vmatpush.msra.mxu0 %v2257
    %2844 = vmatpush.msra.mxu0 %v2249
    %2845 = vmatpush.msra.mxu0 %v2241
    %2846 = vmatpush.msra.mxu0 %v2233
    %2847 = vmatpush.msra.mxu0 %v2225
    %2848 = vmatpush.msra.mxu0 %v2217
    %2849 = vmatpush.msra.mxu0 %v2209
    %2850 = vmatpush.msra.mxu0 %v2201
    %2851 = vmatpush.msra.mxu0 %v2193
    %2852 = vmatpush.msra.mxu0 %v2185
    %2853 = vmatpush.msra.mxu0 %v2177
    %2854 = vmatpush.msra.mxu0 %v2169
    %2855 = vmatpush.msra.mxu0 %v2161
    %2856 = vmatpush.msra.mxu0 %v2153
    %2857 = vmatmul.f32.gmra.mxu0 %v2147
    %v2858 = vpop.f32.mrf.mxu0
    %v2859 = vadd.f32 %v2667, %v2858
    %2860 = vdwg.mxu0
    %2861 = vmatpush.msra.mxu0 %v2401
    %2862 = vmatpush.msra.mxu0 %v2393
    %2863 = vmatpush.msra.mxu0 %v2385
    %2864 = vmatpush.msra.mxu0 %v2377
    %2865 = vmatpush.msra.mxu0 %v2369
    %2866 = vmatpush.msra.mxu0 %v2361
    %2867 = vmatpush.msra.mxu0 %v2353
    %2868 = vmatpush.msra.mxu0 %v2345
    %2869 = vmatpush.msra.mxu0 %v2337
    %2870 = vmatpush.msra.mxu0 %v2329
    %2871 = vmatpush.msra.mxu0 %v2321
    %2872 = vmatpush.msra.mxu0 %v2313
    %2873 = vmatpush.msra.mxu0 %v2305
    %2874 = vmatpush.msra.mxu0 %v2297
    %2875 = vmatpush.msra.mxu0 %v2289
    %2876 = vmatpush.msra.mxu0 %v2281
    %2877 = vmatmul.f32.gmra.mxu0 %v2148
    %v2878 = vpop.f32.mrf.mxu0
    %v2879 = vadd.f32 %v2859, %v2878
    %2880 = vdwg.mxu0
    %2881 = vmatpush.msra.mxu0 %v2529
    %2882 = vmatpush.msra.mxu0 %v2521
    %2883 = vmatpush.msra.mxu0 %v2513
    %2884 = vmatpush.msra.mxu0 %v2505
    %2885 = vmatpush.msra.mxu0 %v2497
    %2886 = vmatpush.msra.mxu0 %v2489
    %2887 = vmatpush.msra.mxu0 %v2481
    %2888 = vmatpush.msra.mxu0 %v2473
    %2889 = vmatpush.msra.mxu0 %v2465
    %2890 = vmatpush.msra.mxu0 %v2457
    %2891 = vmatpush.msra.mxu0 %v2449
    %2892 = vmatpush.msra.mxu0 %v2441
    %2893 = vmatpush.msra.mxu0 %v2433
    %2894 = vmatpush.msra.mxu0 %v2425
    %2895 = vmatpush.msra.mxu0 %v2417
    %2896 = vmatpush.msra.mxu0 %v2409
    %2897 = vmatmul.f32.gmra.mxu0 %v2149
    %v2898 = vpop.f32.mrf.mxu0
    %v2899 = vadd.f32 %v2879, %v2898
    %2900 = vdwg.mxu0
    %2901 = vmatpush.msra.mxu0 %v2657
    %2902 = vmatpush.msra.mxu0 %v2649
    %2903 = vmatpush.msra.mxu0 %v2641
    %2904 = vmatpush.msra.mxu0 %v2633
    %2905 = vmatpush.msra.mxu0 %v2625
    %2906 = vmatpush.msra.mxu0 %v2617
    %2907 = vmatpush.msra.mxu0 %v2609
    %2908 = vmatpush.msra.mxu0 %v2601
    %2909 = vmatpush.msra.mxu0 %v2593
    %2910 = vmatpush.msra.mxu0 %v2585
    %2911 = vmatpush.msra.mxu0 %v2577
    %2912 = vmatpush.msra.mxu0 %v2569
    %2913 = vmatpush.msra.mxu0 %v2561
    %2914 = vmatpush.msra.mxu0 %v2553
    %2915 = vmatpush.msra.mxu0 %v2545
    %2916 = vmatpush.msra.mxu0 %v2537
    %2917 = vmatmul.f32.gmra.mxu0 %v2150
    %v2918 = vpop.f32.mrf.mxu0
    %v2919 = vadd.f32 %v2899, %v2918
    %2920 = vdwg.mxu0
    %2921 = vmatpush.msra.mxu0 %v2274
    %2922 = vmatpush.msra.mxu0 %v2266
    %2923 = vmatpush.msra.mxu0 %v2258
    %2924 = vmatpush.msra.mxu0 %v2250
    %2925 = vmatpush.msra.mxu0 %v2242
    %2926 = vmatpush.msra.mxu0 %v2234
    %2927 = vmatpush.msra.mxu0 %v2226
    %2928 = vmatpush.msra.mxu0 %v2218
    %2929 = vmatpush.msra.mxu0 %v2210
    %2930 = vmatpush.msra.mxu0 %v2202
    %2931 = vmatpush.msra.mxu0 %v2194
    %2932 = vmatpush.msra.mxu0 %v2186
    %2933 = vmatpush.msra.mxu0 %v2178
    %2934 = vmatpush.msra.mxu0 %v2170
    %2935 = vmatpush.msra.mxu0 %v2162
    %2936 = vmatpush.msra.mxu0 %v2154
    %2937 = vmatmul.f32.gmra.mxu0 %v2147
    %v2938 = vpop.f32.mrf.mxu0
    %v2939 = vadd.f32 %v2668, %v2938
    %2940 = vdwg.mxu0
    %2941 = vmatpush.msra.mxu0 %v2402
    %2942 = vmatpush.msra.mxu0 %v2394
    %2943 = vmatpush.msra.mxu0 %v2386
    %2944 = vmatpush.msra.mxu0 %v2378
    %2945 = vmatpush.msra.mxu0 %v2370
    %2946 = vmatpush.msra.mxu0 %v2362
    %2947 = vmatpush.msra.mxu0 %v2354
    %2948 = vmatpush.msra.mxu0 %v2346
    %2949 = vmatpush.msra.mxu0 %v2338
    %2950 = vmatpush.msra.mxu0 %v2330
    %2951 = vmatpush.msra.mxu0 %v2322
    %2952 = vmatpush.msra.mxu0 %v2314
    %2953 = vmatpush.msra.mxu0 %v2306
    %2954 = vmatpush.msra.mxu0 %v2298
    %2955 = vmatpush.msra.mxu0 %v2290
    %2956 = vmatpush.msra.mxu0 %v2282
    %2957 = vmatmul.f32.gmra.mxu0 %v2148
    %v2958 = vpop.f32.mrf.mxu0
    %v2959 = vadd.f32 %v2939, %v2958
    %2960 = vdwg.mxu0
    %2961 = vmatpush.msra.mxu0 %v2530
    %2962 = vmatpush.msra.mxu0 %v2522
    %2963 = vmatpush.msra.mxu0 %v2514
    %2964 = vmatpush.msra.mxu0 %v2506
    %2965 = vmatpush.msra.mxu0 %v2498
    %2966 = vmatpush.msra.mxu0 %v2490
    %2967 = vmatpush.msra.mxu0 %v2482
    %2968 = vmatpush.msra.mxu0 %v2474
    %2969 = vmatpush.msra.mxu0 %v2466
    %2970 = vmatpush.msra.mxu0 %v2458
    %2971 = vmatpush.msra.mxu0 %v2450
    %2972 = vmatpush.msra.mxu0 %v2442
    %2973 = vmatpush.msra.mxu0 %v2434
    %2974 = vmatpush.msra.mxu0 %v2426
    %2975 = vmatpush.msra.mxu0 %v2418
    %2976 = vmatpush.msra.mxu0 %v2410
    %2977 = vmatmul.f32.gmra.mxu0 %v2149
    %v2978 = vpop.f32.mrf.mxu0
    %v2979 = vadd.f32 %v2959, %v2978
    %2980 = vdwg.mxu0
    %2981 = vmatpush.msra.mxu0 %v2658
    %2982 = vmatpush.msra.mxu0 %v2650
    %2983 = vmatpush.msra.mxu0 %v2642
    %2984 = vmatpush.msra.mxu0 %v2634
    %2985 = vmatpush.msra.mxu0 %v2626
    %2986 = vmatpush.msra.mxu0 %v2618
    %2987 = vmatpush.msra.mxu0 %v2610
    %2988 = vmatpush.msra.mxu0 %v2602
    %2989 = vmatpush.msra.mxu0 %v2594
    %2990 = vmatpush.msra.mxu0 %v2586
    %2991 = vmatpush.msra.mxu0 %v2578
    %2992 = vmatpush.msra.mxu0 %v2570
    %2993 = vmatpush.msra.mxu0 %v2562
    %2994 = vmatpush.msra.mxu0 %v2554
    %2995 = vmatpush.msra.mxu0 %v2546
    %2996 = vmatpush.msra.mxu0 %v2538
    %2997 = vmatmul.f32.gmra.mxu0 %v2150
    %v2998 = vpop.f32.mrf.mxu0
    %v2999 = vadd.f32 %v2979, %v2998
    %3000 = vdwg.mxu0
    %3001 = vmatpush.msra.mxu0 %v2275
    %3002 = vmatpush.msra.mxu0 %v2267
    %3003 = vmatpush.msra.mxu0 %v2259
    %3004 = vmatpush.msra.mxu0 %v2251
    %3005 = vmatpush.msra.mxu0 %v2243
    %3006 = vmatpush.msra.mxu0 %v2235
    %3007 = vmatpush.msra.mxu0 %v2227
    %3008 = vmatpush.msra.mxu0 %v2219
    %3009 = vmatpush.msra.mxu0 %v2211
    %3010 = vmatpush.msra.mxu0 %v2203
    %3011 = vmatpush.msra.mxu0 %v2195
    %3012 = vmatpush.msra.mxu0 %v2187
    %3013 = vmatpush.msra.mxu0 %v2179
    %3014 = vmatpush.msra.mxu0 %v2171
    %3015 = vmatpush.msra.mxu0 %v2163
    %3016 = vmatpush.msra.mxu0 %v2155
    %3017 = vmatmul.f32.gmra.mxu0 %v2147
    %v3018 = vpop.f32.mrf.mxu0
    %v3019 = vadd.f32 %v2669, %v3018
    %3020 = vdwg.mxu0
    %3021 = vmatpush.msra.mxu0 %v2403
    %3022 = vmatpush.msra.mxu0 %v2395
    %3023 = vmatpush.msra.mxu0 %v2387
    %3024 = vmatpush.msra.mxu0 %v2379
    %3025 = vmatpush.msra.mxu0 %v2371
    %3026 = vmatpush.msra.mxu0 %v2363
    %3027 = vmatpush.msra.mxu0 %v2355
    %3028 = vmatpush.msra.mxu0 %v2347
    %3029 = vmatpush.msra.mxu0 %v2339
    %3030 = vmatpush.msra.mxu0 %v2331
    %3031 = vmatpush.msra.mxu0 %v2323
    %3032 = vmatpush.msra.mxu0 %v2315
    %3033 = vmatpush.msra.mxu0 %v2307
    %3034 = vmatpush.msra.mxu0 %v2299
    %3035 = vmatpush.msra.mxu0 %v2291
    %3036 = vmatpush.msra.mxu0 %v2283
    %3037 = vmatmul.f32.gmra.mxu0 %v2148
    %v3038 = vpop.f32.mrf.mxu0
    %v3039 = vadd.f32 %v3019, %v3038
    %3040 = vdwg.mxu0
    %3041 = vmatpush.msra.mxu0 %v2531
    %3042 = vmatpush.msra.mxu0 %v2523
    %3043 = vmatpush.msra.mxu0 %v2515
    %3044 = vmatpush.msra.mxu0 %v2507
    %3045 = vmatpush.msra.mxu0 %v2499
    %3046 = vmatpush.msra.mxu0 %v2491
    %3047 = vmatpush.msra.mxu0 %v2483
    %3048 = vmatpush.msra.mxu0 %v2475
    %3049 = vmatpush.msra.mxu0 %v2467
    %3050 = vmatpush.msra.mxu0 %v2459
    %3051 = vmatpush.msra.mxu0 %v2451
    %3052 = vmatpush.msra.mxu0 %v2443
    %3053 = vmatpush.msra.mxu0 %v2435
    %3054 = vmatpush.msra.mxu0 %v2427
    %3055 = vmatpush.msra.mxu0 %v2419
    %3056 = vmatpush.msra.mxu0 %v2411
    %3057 = vmatmul.f32.gmra.mxu0 %v2149
    %v3058 = vpop.f32.mrf.mxu0
    %v3059 = vadd.f32 %v3039, %v3058
    %3060 = vdwg.mxu0
    %3061 = vmatpush.msra.mxu0 %v2659
    %3062 = vmatpush.msra.mxu0 %v2651
    %3063 = vmatpush.msra.mxu0 %v2643
    %3064 = vmatpush.msra.mxu0 %v2635
    %3065 = vmatpush.msra.mxu0 %v2627
    %3066 = vmatpush.msra.mxu0 %v2619
    %3067 = vmatpush.msra.mxu0 %v2611
    %3068 = vmatpush.msra.mxu0 %v2603
    %3069 = vmatpush.msra.mxu0 %v2595
    %3070 = vmatpush.msra.mxu0 %v2587
    %3071 = vmatpush.msra.mxu0 %v2579
    %3072 = vmatpush.msra.mxu0 %v2571
    %3073 = vmatpush.msra.mxu0 %v2563
    %3074 = vmatpush.msra.mxu0 %v2555
    %3075 = vmatpush.msra.mxu0 %v2547
    %3076 = vmatpush.msra.mxu0 %v2539
    %3077 = vmatmul.f32.gmra.mxu0 %v2150
    %v3078 = vpop.f32.mrf.mxu0
    %v3079 = vadd.f32 %v3059, %v3078
    %3080 = vdwg.mxu0
    %3081 = vmatpush.msra.mxu0 %v2276
    %3082 = vmatpush.msra.mxu0 %v2268
    %3083 = vmatpush.msra.mxu0 %v2260
    %3084 = vmatpush.msra.mxu0 %v2252
    %3085 = vmatpush.msra.mxu0 %v2244
    %3086 = vmatpush.msra.mxu0 %v2236
    %3087 = vmatpush.msra.mxu0 %v2228
    %3088 = vmatpush.msra.mxu0 %v2220
    %3089 = vmatpush.msra.mxu0 %v2212
    %3090 = vmatpush.msra.mxu0 %v2204
    %3091 = vmatpush.msra.mxu0 %v2196
    %3092 = vmatpush.msra.mxu0 %v2188
    %3093 = vmatpush.msra.mxu0 %v2180
    %3094 = vmatpush.msra.mxu0 %v2172
    %3095 = vmatpush.msra.mxu0 %v2164
    %3096 = vmatpush.msra.mxu0 %v2156
    %3097 = vmatmul.f32.gmra.mxu0 %v2147
    %v3098 = vpop.f32.mrf.mxu0
    %v3099 = vadd.f32 %v2670, %v3098
    %3100 = vdwg.mxu0
    %3101 = vmatpush.msra.mxu0 %v2404
    %3102 = vmatpush.msra.mxu0 %v2396
    %3103 = vmatpush.msra.mxu0 %v2388
    %3104 = vmatpush.msra.mxu0 %v2380
    %3105 = vmatpush.msra.mxu0 %v2372
    %3106 = vmatpush.msra.mxu0 %v2364
    %3107 = vmatpush.msra.mxu0 %v2356
    %3108 = vmatpush.msra.mxu0 %v2348
    %3109 = vmatpush.msra.mxu0 %v2340
    %3110 = vmatpush.msra.mxu0 %v2332
    %3111 = vmatpush.msra.mxu0 %v2324
    %3112 = vmatpush.msra.mxu0 %v2316
    %3113 = vmatpush.msra.mxu0 %v2308
    %3114 = vmatpush.msra.mxu0 %v2300
    %3115 = vmatpush.msra.mxu0 %v2292
    %3116 = vmatpush.msra.mxu0 %v2284
    %3117 = vmatmul.f32.gmra.mxu0 %v2148
    %v3118 = vpop.f32.mrf.mxu0
    %v3119 = vadd.f32 %v3099, %v3118
    %3120 = vdwg.mxu0
    %3121 = vmatpush.msra.mxu0 %v2532
    %3122 = vmatpush.msra.mxu0 %v2524
    %3123 = vmatpush.msra.mxu0 %v2516
    %3124 = vmatpush.msra.mxu0 %v2508
    %3125 = vmatpush.msra.mxu0 %v2500
    %3126 = vmatpush.msra.mxu0 %v2492
    %3127 = vmatpush.msra.mxu0 %v2484
    %3128 = vmatpush.msra.mxu0 %v2476
    %3129 = vmatpush.msra.mxu0 %v2468
    %3130 = vmatpush.msra.mxu0 %v2460
    %3131 = vmatpush.msra.mxu0 %v2452
    %3132 = vmatpush.msra.mxu0 %v2444
    %3133 = vmatpush.msra.mxu0 %v2436
    %3134 = vmatpush.msra.mxu0 %v2428
    %3135 = vmatpush.msra.mxu0 %v2420
    %3136 = vmatpush.msra.mxu0 %v2412
    %3137 = vmatmul.f32.gmra.mxu0 %v2149
    %v3138 = vpop.f32.mrf.mxu0
    %v3139 = vadd.f32 %v3119, %v3138
    %3140 = vdwg.mxu0
    %3141 = vmatpush.msra.mxu0 %v2660
    %3142 = vmatpush.msra.mxu0 %v2652
    %3143 = vmatpush.msra.mxu0 %v2644
    %3144 = vmatpush.msra.mxu0 %v2636
    %3145 = vmatpush.msra.mxu0 %v2628
    %3146 = vmatpush.msra.mxu0 %v2620
    %3147 = vmatpush.msra.mxu0 %v2612
    %3148 = vmatpush.msra.mxu0 %v2604
    %3149 = vmatpush.msra.mxu0 %v2596
    %3150 = vmatpush.msra.mxu0 %v2588
    %3151 = vmatpush.msra.mxu0 %v2580
    %3152 = vmatpush.msra.mxu0 %v2572
    %3153 = vmatpush.msra.mxu0 %v2564
    %3154 = vmatpush.msra.mxu0 %v2556
    %3155 = vmatpush.msra.mxu0 %v2548
    %3156 = vmatpush.msra.mxu0 %v2540
    %3157 = vmatmul.f32.gmra.mxu0 %v2150
    %v3158 = vpop.f32.mrf.mxu0
    %v3159 = vadd.f32 %v3139, %v3158
    %3160 = vdwg.mxu0
    %3161 = vmatpush.msra.mxu0 %v2277
    %3162 = vmatpush.msra.mxu0 %v2269
    %3163 = vmatpush.msra.mxu0 %v2261
    %3164 = vmatpush.msra.mxu0 %v2253
    %3165 = vmatpush.msra.mxu0 %v2245
    %3166 = vmatpush.msra.mxu0 %v2237
    %3167 = vmatpush.msra.mxu0 %v2229
    %3168 = vmatpush.msra.mxu0 %v2221
    %3169 = vmatpush.msra.mxu0 %v2213
    %3170 = vmatpush.msra.mxu0 %v2205
    %3171 = vmatpush.msra.mxu0 %v2197
    %3172 = vmatpush.msra.mxu0 %v2189
    %3173 = vmatpush.msra.mxu0 %v2181
    %3174 = vmatpush.msra.mxu0 %v2173
    %3175 = vmatpush.msra.mxu0 %v2165
    %3176 = vmatpush.msra.mxu0 %v2157
    %3177 = vmatmul.f32.gmra.mxu0 %v2147
    %v3178 = vpop.f32.mrf.mxu0
    %v3179 = vadd.f32 %v2671, %v3178
    %3180 = vdwg.mxu0
    %3181 = vmatpush.msra.mxu0 %v2405
    %3182 = vmatpush.msra.mxu0 %v2397
    %3183 = vmatpush.msra.mxu0 %v2389
    %3184 = vmatpush.msra.mxu0 %v2381
    %3185 = vmatpush.msra.mxu0 %v2373
    %3186 = vmatpush.msra.mxu0 %v2365
    %3187 = vmatpush.msra.mxu0 %v2357
    %3188 = vmatpush.msra.mxu0 %v2349
    %3189 = vmatpush.msra.mxu0 %v2341
    %3190 = vmatpush.msra.mxu0 %v2333
    %3191 = vmatpush.msra.mxu0 %v2325
    %3192 = vmatpush.msra.mxu0 %v2317
    %3193 = vmatpush.msra.mxu0 %v2309
    %3194 = vmatpush.msra.mxu0 %v2301
    %3195 = vmatpush.msra.mxu0 %v2293
    %3196 = vmatpush.msra.mxu0 %v2285
    %3197 = vmatmul.f32.gmra.mxu0 %v2148
    %v3198 = vpop.f32.mrf.mxu0
    %v3199 = vadd.f32 %v3179, %v3198
    %3200 = vdwg.mxu0
    %3201 = vmatpush.msra.mxu0 %v2533
    %3202 = vmatpush.msra.mxu0 %v2525
    %3203 = vmatpush.msra.mxu0 %v2517
    %3204 = vmatpush.msra.mxu0 %v2509
    %3205 = vmatpush.msra.mxu0 %v2501
    %3206 = vmatpush.msra.mxu0 %v2493
    %3207 = vmatpush.msra.mxu0 %v2485
    %3208 = vmatpush.msra.mxu0 %v2477
    %3209 = vmatpush.msra.mxu0 %v2469
    %3210 = vmatpush.msra.mxu0 %v2461
    %3211 = vmatpush.msra.mxu0 %v2453
    %3212 = vmatpush.msra.mxu0 %v2445
    %3213 = vmatpush.msra.mxu0 %v2437
    %3214 = vmatpush.msra.mxu0 %v2429
    %3215 = vmatpush.msra.mxu0 %v2421
    %3216 = vmatpush.msra.mxu0 %v2413
    %3217 = vmatmul.f32.gmra.mxu0 %v2149
    %v3218 = vpop.f32.mrf.mxu0
    %v3219 = vadd.f32 %v3199, %v3218
    %3220 = vdwg.mxu0
    %3221 = vmatpush.msra.mxu0 %v2661
    %3222 = vmatpush.msra.mxu0 %v2653
    %3223 = vmatpush.msra.mxu0 %v2645
    %3224 = vmatpush.msra.mxu0 %v2637
    %3225 = vmatpush.msra.mxu0 %v2629
    %3226 = vmatpush.msra.mxu0 %v2621
    %3227 = vmatpush.msra.mxu0 %v2613
    %3228 = vmatpush.msra.mxu0 %v2605
    %3229 = vmatpush.msra.mxu0 %v2597
    %3230 = vmatpush.msra.mxu0 %v2589
    %3231 = vmatpush.msra.mxu0 %v2581
    %3232 = vmatpush.msra.mxu0 %v2573
    %3233 = vmatpush.msra.mxu0 %v2565
    %3234 = vmatpush.msra.mxu0 %v2557
    %3235 = vmatpush.msra.mxu0 %v2549
    %3236 = vmatpush.msra.mxu0 %v2541
    %3237 = vmatmul.f32.gmra.mxu0 %v2150
    %v3238 = vpop.f32.mrf.mxu0
    %v3239 = vadd.f32 %v3219, %v3238
    %3240 = vdwg.mxu0
    %3241 = vmatpush.msra.mxu0 %v2278
    %3242 = vmatpush.msra.mxu0 %v2270
    %3243 = vmatpush.msra.mxu0 %v2262
    %3244 = vmatpush.msra.mxu0 %v2254
    %3245 = vmatpush.msra.mxu0 %v2246
    %3246 = vmatpush.msra.mxu0 %v2238
    %3247 = vmatpush.msra.mxu0 %v2230
    %3248 = vmatpush.msra.mxu0 %v2222
    %3249 = vmatpush.msra.mxu0 %v2214
    %3250 = vmatpush.msra.mxu0 %v2206
    %3251 = vmatpush.msra.mxu0 %v2198
    %3252 = vmatpush.msra.mxu0 %v2190
    %3253 = vmatpush.msra.mxu0 %v2182
    %3254 = vmatpush.msra.mxu0 %v2174
    %3255 = vmatpush.msra.mxu0 %v2166
    %3256 = vmatpush.msra.mxu0 %v2158
    %3257 = vmatmul.f32.gmra.mxu0 %v2147
    %v3258 = vpop.f32.mrf.mxu0
    %v3259 = vadd.f32 %v2672, %v3258
    %3260 = vdwg.mxu0
    %3261 = vmatpush.msra.mxu0 %v2406
    %3262 = vmatpush.msra.mxu0 %v2398
    %3263 = vmatpush.msra.mxu0 %v2390
    %3264 = vmatpush.msra.mxu0 %v2382
    %3265 = vmatpush.msra.mxu0 %v2374
    %3266 = vmatpush.msra.mxu0 %v2366
    %3267 = vmatpush.msra.mxu0 %v2358
    %3268 = vmatpush.msra.mxu0 %v2350
    %3269 = vmatpush.msra.mxu0 %v2342
    %3270 = vmatpush.msra.mxu0 %v2334
    %3271 = vmatpush.msra.mxu0 %v2326
    %3272 = vmatpush.msra.mxu0 %v2318
    %3273 = vmatpush.msra.mxu0 %v2310
    %3274 = vmatpush.msra.mxu0 %v2302
    %3275 = vmatpush.msra.mxu0 %v2294
    %3276 = vmatpush.msra.mxu0 %v2286
    %3277 = vmatmul.f32.gmra.mxu0 %v2148
    %v3278 = vpop.f32.mrf.mxu0
    %v3279 = vadd.f32 %v3259, %v3278
    %3280 = vdwg.mxu0
    %3281 = vmatpush.msra.mxu0 %v2534
    %3282 = vmatpush.msra.mxu0 %v2526
    %3283 = vmatpush.msra.mxu0 %v2518
    %3284 = vmatpush.msra.mxu0 %v2510
    %3285 = vmatpush.msra.mxu0 %v2502
    %3286 = vmatpush.msra.mxu0 %v2494
    %3287 = vmatpush.msra.mxu0 %v2486
    %3288 = vmatpush.msra.mxu0 %v2478
    %3289 = vmatpush.msra.mxu0 %v2470
    %3290 = vmatpush.msra.mxu0 %v2462
    %3291 = vmatpush.msra.mxu0 %v2454
    %3292 = vmatpush.msra.mxu0 %v2446
    %3293 = vmatpush.msra.mxu0 %v2438
    %3294 = vmatpush.msra.mxu0 %v2430
    %3295 = vmatpush.msra.mxu0 %v2422
    %3296 = vmatpush.msra.mxu0 %v2414
    %3297 = vmatmul.f32.gmra.mxu0 %v2149
    %v3298 = vpop.f32.mrf.mxu0
    %v3299 = vadd.f32 %v3279, %v3298
    %3300 = vdwg.mxu0
    %3301 = vmatpush.msra.mxu0 %v2662
    %3302 = vmatpush.msra.mxu0 %v2654
    %3303 = vmatpush.msra.mxu0 %v2646
    %3304 = vmatpush.msra.mxu0 %v2638
    %3305 = vmatpush.msra.mxu0 %v2630
    %3306 = vmatpush.msra.mxu0 %v2622
    %3307 = vmatpush.msra.mxu0 %v2614
    %3308 = vmatpush.msra.mxu0 %v2606
    %3309 = vmatpush.msra.mxu0 %v2598
    %3310 = vmatpush.msra.mxu0 %v2590
    %3311 = vmatpush.msra.mxu0 %v2582
    %3312 = vmatpush.msra.mxu0 %v2574
    %3313 = vmatpush.msra.mxu0 %v2566
    %3314 = vmatpush.msra.mxu0 %v2558
    %3315 = vmatpush.msra.mxu0 %v2550
    %3316 = vmatpush.msra.mxu0 %v2542
    %3317 = vmatmul.f32.gmra.mxu0 %v2150
    %v3318 = vpop.f32.mrf.mxu0
    %v3319 = vadd.f32 %v3299, %v3318
    %3320 = vdwg.mxu0
    %v3321 = vxor.u32 %v2759, 2147483648
    %v3322 = vxor.u32 %v2839, 2147483648
    %v3323 = vxor.u32 %v2919, 2147483648
    %v3324 = vxor.u32 %v2999, 2147483648
    %v3325 = vxor.u32 %v3079, 2147483648
    %v3326 = vxor.u32 %v3159, 2147483648
    %v3327 = vxor.u32 %v3239, 2147483648
    %v3328 = vxor.u32 %v3319, 2147483648
    %v3329 = vmul.f32 %v3321, 1.442695
    %v3330 = vpow.pop %v3329
    %v3331 = vmul.f32 %v3322, 1.442695
    %v3332 = vpow.pop %v3331
    %v3333 = vmul.f32 %v3323, 1.442695
    %v3334 = vpow.pop %v3333
    %v3335 = vmul.f32 %v3324, 1.442695
    %v3336 = vpow.pop %v3335
    %v3337 = vmul.f32 %v3325, 1.442695
    %v3338 = vpow.pop %v3337
    %v3339 = vmul.f32 %v3326, 1.442695
    %v3340 = vpow.pop %v3339
    %v3341 = vmul.f32 %v3327, 1.442695
    %v3342 = vpow.pop %v3341
    %v3343 = vmul.f32 %v3328, 1.442695
    %v3344 = vpow.pop %v3343
    %v3345 = vadd.f32 %v3330, 1.0
    %v3346 = vadd.f32 %v3332, 1.0
    %v3347 = vadd.f32 %v3334, 1.0
    %v3348 = vadd.f32 %v3336, 1.0
    %v3349 = vadd.f32 %v3338, 1.0
    %v3350 = vadd.f32 %v3340, 1.0
    %v3351 = vadd.f32 %v3342, 1.0
    %v3352 = vadd.f32 %v3344, 1.0
    %v3353 = vrcp.pop %v3345
    %v3354 = vmul.f32 %v3345, %v3353
    %v3355 = vsub.f32 1.0, %v3354
    %v3356 = vmul.f32 %v3353, %v3355
    %v3357 = vadd.f32 %v3353, %v3356
    %vm3358 = vweird.f32 %v3345
    %vm3359 = vweird.f32 %v3353
    %vm3360 = vmor %vm3358, %vm3359
    %v3361 = vsel %vm3360, %v3353, %v3357
    %v3362 = vand.u32 2147483647, %v3345
    %vm3363 = vcmp.eq.f32.partialorder %v3362, 8.507059e+37
    %v3364 = vand.u32 %v3345, 2147483648
    %v3365 = vor.u32 1.1754944e-38, %v3364
    %v3366 = vsel %vm3363, %v3365, %v3361
    %v3367 = vmul.f32 1.0, %v3366
    %v3368 = vrcp.pop %v3346
    %v3369 = vmul.f32 %v3346, %v3368
    %v3370 = vsub.f32 1.0, %v3369
    %v3371 = vmul.f32 %v3368, %v3370
    %v3372 = vadd.f32 %v3368, %v3371
    %vm3373 = vweird.f32 %v3346
    %vm3374 = vweird.f32 %v3368
    %vm3375 = vmor %vm3373, %vm3374
    %v3376 = vsel %vm3375, %v3368, %v3372
    %v3377 = vand.u32 2147483647, %v3346
    %vm3378 = vcmp.eq.f32.partialorder %v3377, 8.507059e+37
    %v3379 = vand.u32 %v3346, 2147483648
    %v3380 = vor.u32 1.1754944e-38, %v3379
    %v3381 = vsel %vm3378, %v3380, %v3376
    %v3382 = vmul.f32 1.0, %v3381
    %v3383 = vrcp.pop %v3347
    %v3384 = vmul.f32 %v3347, %v3383
    %v3385 = vsub.f32 1.0, %v3384
    %v3386 = vmul.f32 %v3383, %v3385
    %v3387 = vadd.f32 %v3383, %v3386
    %vm3388 = vweird.f32 %v3347
    %vm3389 = vweird.f32 %v3383
    %vm3390 = vmor %vm3388, %vm3389
    %v3391 = vsel %vm3390, %v3383, %v3387
    %v3392 = vand.u32 2147483647, %v3347
    %vm3393 = vcmp.eq.f32.partialorder %v3392, 8.507059e+37
    %v3394 = vand.u32 %v3347, 2147483648
    %v3395 = vor.u32 1.1754944e-38, %v3394
    %v3396 = vsel %vm3393, %v3395, %v3391
    %v3397 = vmul.f32 1.0, %v3396
    %v3398 = vrcp.pop %v3348
    %v3399 = vmul.f32 %v3348, %v3398
    %v3400 = vsub.f32 1.0, %v3399
    %v3401 = vmul.f32 %v3398, %v3400
    %v3402 = vadd.f32 %v3398, %v3401
    %vm3403 = vweird.f32 %v3348
    %vm3404 = vweird.f32 %v3398
    %vm3405 = vmor %vm3403, %vm3404
    %v3406 = vsel %vm3405, %v3398, %v3402
    %v3407 = vand.u32 2147483647, %v3348
    %vm3408 = vcmp.eq.f32.partialorder %v3407, 8.507059e+37
    %v3409 = vand.u32 %v3348, 2147483648
    %v3410 = vor.u32 1.1754944e-38, %v3409
    %v3411 = vsel %vm3408, %v3410, %v3406
    %v3412 = vmul.f32 1.0, %v3411
    %v3413 = vrcp.pop %v3349
    %v3414 = vmul.f32 %v3349, %v3413
    %v3415 = vsub.f32 1.0, %v3414
    %v3416 = vmul.f32 %v3413, %v3415
    %v3417 = vadd.f32 %v3413, %v3416
    %vm3418 = vweird.f32 %v3349
    %vm3419 = vweird.f32 %v3413
    %vm3420 = vmor %vm3418, %vm3419
    %v3421 = vsel %vm3420, %v3413, %v3417
    %v3422 = vand.u32 2147483647, %v3349
    %vm3423 = vcmp.eq.f32.partialorder %v3422, 8.507059e+37
    %v3424 = vand.u32 %v3349, 2147483648
    %v3425 = vor.u32 1.1754944e-38, %v3424
    %v3426 = vsel %vm3423, %v3425, %v3421
    %v3427 = vmul.f32 1.0, %v3426
    %v3428 = vrcp.pop %v3350
    %v3429 = vmul.f32 %v3350, %v3428
    %v3430 = vsub.f32 1.0, %v3429
    %v3431 = vmul.f32 %v3428, %v3430
    %v3432 = vadd.f32 %v3428, %v3431
    %vm3433 = vweird.f32 %v3350
    %vm3434 = vweird.f32 %v3428
    %vm3435 = vmor %vm3433, %vm3434
    %v3436 = vsel %vm3435, %v3428, %v3432
    %v3437 = vand.u32 2147483647, %v3350
    %vm3438 = vcmp.eq.f32.partialorder %v3437, 8.507059e+37
    %v3439 = vand.u32 %v3350, 2147483648
    %v3440 = vor.u32 1.1754944e-38, %v3439
    %v3441 = vsel %vm3438, %v3440, %v3436
    %v3442 = vmul.f32 1.0, %v3441
    %v3443 = vrcp.pop %v3351
    %v3444 = vmul.f32 %v3351, %v3443
    %v3445 = vsub.f32 1.0, %v3444
    %v3446 = vmul.f32 %v3443, %v3445
    %v3447 = vadd.f32 %v3443, %v3446
    %vm3448 = vweird.f32 %v3351
    %vm3449 = vweird.f32 %v3443
    %vm3450 = vmor %vm3448, %vm3449
    %v3451 = vsel %vm3450, %v3443, %v3447
    %v3452 = vand.u32 2147483647, %v3351
    %vm3453 = vcmp.eq.f32.partialorder %v3452, 8.507059e+37
    %v3454 = vand.u32 %v3351, 2147483648
    %v3455 = vor.u32 1.1754944e-38, %v3454
    %v3456 = vsel %vm3453, %v3455, %v3451
    %v3457 = vmul.f32 1.0, %v3456
    %v3458 = vrcp.pop %v3352
    %v3459 = vmul.f32 %v3352, %v3458
    %v3460 = vsub.f32 1.0, %v3459
    %v3461 = vmul.f32 %v3458, %v3460
    %v3462 = vadd.f32 %v3458, %v3461
    %vm3463 = vweird.f32 %v3352
    %vm3464 = vweird.f32 %v3458
    %vm3465 = vmor %vm3463, %vm3464
    %v3466 = vsel %vm3465, %v3458, %v3462
    %v3467 = vand.u32 2147483647, %v3352
    %vm3468 = vcmp.eq.f32.partialorder %v3467, 8.507059e+37
    %v3469 = vand.u32 %v3352, 2147483648
    %v3470 = vor.u32 1.1754944e-38, %v3469
    %v3471 = vsel %vm3468, %v3470, %v3466
    %v3472 = vmul.f32 1.0, %v3471
    %v3473 = vxor.u32 %v3367, 2147483648
    %v3474 = vxor.u32 %v3382, 2147483648
    %v3475 = vxor.u32 %v3397, 2147483648
    %v3476 = vxor.u32 %v3412, 2147483648
    %v3477 = vxor.u32 %v3427, 2147483648
    %v3478 = vxor.u32 %v3442, 2147483648
    %v3479 = vxor.u32 %v3457, 2147483648
    %v3480 = vxor.u32 %v3472, 2147483648
    %v3481 = vmul.f32 %v3473, 1.442695
    %v3482 = vpow.pop %v3481
    %v3483 = vmul.f32 %v3474, 1.442695
    %v3484 = vpow.pop %v3483
    %v3485 = vmul.f32 %v3475, 1.442695
    %v3486 = vpow.pop %v3485
    %v3487 = vmul.f32 %v3476, 1.442695
    %v3488 = vpow.pop %v3487
    %v3489 = vmul.f32 %v3477, 1.442695
    %v3490 = vpow.pop %v3489
    %v3491 = vmul.f32 %v3478, 1.442695
    %v3492 = vpow.pop %v3491
    %v3493 = vmul.f32 %v3479, 1.442695
    %v3494 = vpow.pop %v3493
    %v3495 = vmul.f32 %v3480, 1.442695
    %v3496 = vpow.pop %v3495
    %v3497 = vadd.f32 %v3482, 1.0
    %v3498 = vadd.f32 %v3484, 1.0
    %v3499 = vadd.f32 %v3486, 1.0
    %v3500 = vadd.f32 %v3488, 1.0
    %v3501 = vadd.f32 %v3490, 1.0
    %v3502 = vadd.f32 %v3492, 1.0
    %v3503 = vadd.f32 %v3494, 1.0
    %v3504 = vadd.f32 %v3496, 1.0
    %v3505 = vrcp.pop %v3497
    %v3506 = vmul.f32 %v3497, %v3505
    %v3507 = vsub.f32 1.0, %v3506
    %v3508 = vmul.f32 %v3505, %v3507
    %v3509 = vadd.f32 %v3505, %v3508
    %vm3510 = vweird.f32 %v3497
    %vm3511 = vweird.f32 %v3505
    %vm3512 = vmor %vm3510, %vm3511
    %v3513 = vsel %vm3512, %v3505, %v3509
    %v3514 = vand.u32 2147483647, %v3497
    %vm3515 = vcmp.eq.f32.partialorder %v3514, 8.507059e+37
    %v3516 = vand.u32 %v3497, 2147483648
    %v3517 = vor.u32 1.1754944e-38, %v3516
    %v3518 = vsel %vm3515, %v3517, %v3513
    %v3519 = vmul.f32 1.0, %v3518
    %v3520 = vrcp.pop %v3498
    %v3521 = vmul.f32 %v3498, %v3520
    %v3522 = vsub.f32 1.0, %v3521
    %v3523 = vmul.f32 %v3520, %v3522
    %v3524 = vadd.f32 %v3520, %v3523
    %vm3525 = vweird.f32 %v3498
    %vm3526 = vweird.f32 %v3520
    %vm3527 = vmor %vm3525, %vm3526
    %v3528 = vsel %vm3527, %v3520, %v3524
    %v3529 = vand.u32 2147483647, %v3498
    %vm3530 = vcmp.eq.f32.partialorder %v3529, 8.507059e+37
    %v3531 = vand.u32 %v3498, 2147483648
    %v3532 = vor.u32 1.1754944e-38, %v3531
    %v3533 = vsel %vm3530, %v3532, %v3528
    %v3534 = vmul.f32 1.0, %v3533
    %v3535 = vrcp.pop %v3499
    %v3536 = vmul.f32 %v3499, %v3535
    %v3537 = vsub.f32 1.0, %v3536
    %v3538 = vmul.f32 %v3535, %v3537
    %v3539 = vadd.f32 %v3535, %v3538
    %vm3540 = vweird.f32 %v3499
    %vm3541 = vweird.f32 %v3535
    %vm3542 = vmor %vm3540, %vm3541
    %v3543 = vsel %vm3542, %v3535, %v3539
    %v3544 = vand.u32 2147483647, %v3499
    %vm3545 = vcmp.eq.f32.partialorder %v3544, 8.507059e+37
    %v3546 = vand.u32 %v3499, 2147483648
    %v3547 = vor.u32 1.1754944e-38, %v3546
    %v3548 = vsel %vm3545, %v3547, %v3543
    %v3549 = vmul.f32 1.0, %v3548
    %v3550 = vrcp.pop %v3500
    %v3551 = vmul.f32 %v3500, %v3550
    %v3552 = vsub.f32 1.0, %v3551
    %v3553 = vmul.f32 %v3550, %v3552
    %v3554 = vadd.f32 %v3550, %v3553
    %vm3555 = vweird.f32 %v3500
    %vm3556 = vweird.f32 %v3550
    %vm3557 = vmor %vm3555, %vm3556
    %v3558 = vsel %vm3557, %v3550, %v3554
    %v3559 = vand.u32 2147483647, %v3500
    %vm3560 = vcmp.eq.f32.partialorder %v3559, 8.507059e+37
    %v3561 = vand.u32 %v3500, 2147483648
    %v3562 = vor.u32 1.1754944e-38, %v3561
    %v3563 = vsel %vm3560, %v3562, %v3558
    %v3564 = vmul.f32 1.0, %v3563
    %v3565 = vrcp.pop %v3501
    %v3566 = vmul.f32 %v3501, %v3565
    %v3567 = vsub.f32 1.0, %v3566
    %v3568 = vmul.f32 %v3565, %v3567
    %v3569 = vadd.f32 %v3565, %v3568
    %vm3570 = vweird.f32 %v3501
    %vm3571 = vweird.f32 %v3565
    %vm3572 = vmor %vm3570, %vm3571
    %v3573 = vsel %vm3572, %v3565, %v3569
    %v3574 = vand.u32 2147483647, %v3501
    %vm3575 = vcmp.eq.f32.partialorder %v3574, 8.507059e+37
    %v3576 = vand.u32 %v3501, 2147483648
    %v3577 = vor.u32 1.1754944e-38, %v3576
    %v3578 = vsel %vm3575, %v3577, %v3573
    %v3579 = vmul.f32 1.0, %v3578
    %v3580 = vrcp.pop %v3502
    %v3581 = vmul.f32 %v3502, %v3580
    %v3582 = vsub.f32 1.0, %v3581
    %v3583 = vmul.f32 %v3580, %v3582
    %v3584 = vadd.f32 %v3580, %v3583
    %vm3585 = vweird.f32 %v3502
    %vm3586 = vweird.f32 %v3580
    %vm3587 = vmor %vm3585, %vm3586
    %v3588 = vsel %vm3587, %v3580, %v3584
    %v3589 = vand.u32 2147483647, %v3502
    %vm3590 = vcmp.eq.f32.partialorder %v3589, 8.507059e+37
    %v3591 = vand.u32 %v3502, 2147483648
    %v3592 = vor.u32 1.1754944e-38, %v3591
    %v3593 = vsel %vm3590, %v3592, %v3588
    %v3594 = vmul.f32 1.0, %v3593
    %v3595 = vrcp.pop %v3503
    %v3596 = vmul.f32 %v3503, %v3595
    %v3597 = vsub.f32 1.0, %v3596
    %v3598 = vmul.f32 %v3595, %v3597
    %v3599 = vadd.f32 %v3595, %v3598
    %vm3600 = vweird.f32 %v3503
    %vm3601 = vweird.f32 %v3595
    %vm3602 = vmor %vm3600, %vm3601
    %v3603 = vsel %vm3602, %v3595, %v3599
    %v3604 = vand.u32 2147483647, %v3503
    %vm3605 = vcmp.eq.f32.partialorder %v3604, 8.507059e+37
    %v3606 = vand.u32 %v3503, 2147483648
    %v3607 = vor.u32 1.1754944e-38, %v3606
    %v3608 = vsel %vm3605, %v3607, %v3603
    %v3609 = vmul.f32 1.0, %v3608
    %v3610 = vrcp.pop %v3504
    %v3611 = vmul.f32 %v3504, %v3610
    %v3612 = vsub.f32 1.0, %v3611
    %v3613 = vmul.f32 %v3610, %v3612
    %v3614 = vadd.f32 %v3610, %v3613
    %vm3615 = vweird.f32 %v3504
    %vm3616 = vweird.f32 %v3610
    %vm3617 = vmor %vm3615, %vm3616
    %v3618 = vsel %vm3617, %v3610, %v3614
    %v3619 = vand.u32 2147483647, %v3504
    %vm3620 = vcmp.eq.f32.partialorder %v3619, 8.507059e+37
    %v3621 = vand.u32 %v3504, 2147483648
    %v3622 = vor.u32 1.1754944e-38, %v3621
    %v3623 = vsel %vm3620, %v3622, %v3618
    %v3624 = vmul.f32 1.0, %v3623
    %vm3625 = vcmask 254976
    %3626 = vst.msk [vmem:[%s14] sm:$0x3] %vm3625, %v1781
    %v3635 = vrot.slane %v3534, 6
    %v3636 = vrot.slane %v3549, 4
    %v3637 = vrot.slane %v3564, 2
    %v3638 = vrot.slane %v3594, 6
    %v3639 = vrot.slane %v3609, 4
    %v3640 = vrot.slane %v3624, 2
    %vm3641 = vcmask 1041408
    %v3642 = vsel %vm3641, %v3519, %v3635
    %vm3643 = vcmask 1045508
    %v3644 = vsel %vm3643, %v3636, %v3637
    %vm3645 = vcmask 1043456
    %v3646 = vsel %vm3645, %v3642, %v3644
    %v3647 = vsel %vm3641, %v3579, %v3638
    %v3648 = vsel %vm3643, %v3639, %v3640
    %v3649 = vsel %vm3645, %v3647, %v3648
    %3652 = vst [vmem:[%s15] sm:$0xff] %v3646
    %3653 = vst [vmem:[%s15 + $0x8] sm:$0xff] %v3649
    // Predicated region
    $region106: #{forward.1} parent=1 // pred_check
      _
    $region107: #{forward.1} parent=1 // pred_check_branch
      %3655 = sbr.rel (0) target = $region109
    $region108: #{forward.1} parent=1 // pred_region
      _
    $region109: #{forward.1} parent=1 // pred_fallthru
      _
    // Predicated region
    $region110: #{forward.1} parent=1 // pred_check
      _
    $region111: #{forward.1} parent=1 // pred_check_branch
      %3657 = sbr.rel (0) target = $region113
    $region112: #{forward.1} parent=1 // pred_region
      _
    $region113: #{forward.1} parent=1 // pred_fallthru
      _
    // Predicated region
    $region114: #{forward.1} parent=1 // pred_check
      _
    $region115: #{forward.1} parent=1 // pred_check_branch
      %3659 = sbr.rel (0) target = $region117
    $region116: #{forward.1} parent=1 // pred_region
      _
    $region117: #{forward.1} parent=1 // pred_fallthru
      _
    // Predicated region
    $region118: #{forward.1} parent=1 // pred_check
      _
    $region119: #{forward.1} parent=1 // pred_check_branch
      %3661 = sbr.rel (0) target = $region121
    $region120: #{forward.1} parent=1 // pred_region
      _
    $region121: #{forward.1} parent=1 // pred_fallthru
      _
    %3662 = vsyncpa [#allocation3], 1
    %3663 = vsyncpa [#allocation5], 1
    %3664 = vsyncpa [#allocation8], 1
    %3665 = vsyncpa [#allocation11], 1
    %3666 = vsyncpa [#allocation14], 1
    %3667 = vsyncpa [#allocation17], 1
    %3668 = vsyncpa [#allocation20], 1

</llo_original>
